<compile_context>
chip_gen: v7x
topology: tpu7x:2x2x1
jax: 0.10.0
libtpu: 0.0.40
codegen_flags: <defaults>
</compile_context>

<pallas_src>
import jax
import jax.numpy as jnp
from jax.experimental import pallas as pl
from jax.experimental.pallas import tpu as pltpu

EPS = 1e-6
NUM_GROUPS = 32


def _silu(v):
    return v * jax.nn.sigmoid(v)


def _make_kernel(bt, HW, HWp, cpg):
    inv_n = 1.0 / (cpg * HW)      # static python scalar -> f32 constant (real HW!)

    def kernel(x_ref, b1_ref, m_ref, mt_ref, g1_ref, be1_ref, w1_ref,
               g2_ref, be2_ref, w2_ref, c2b_ref, o_ref):
        # x_ref block: (bt, C, HWp) — channels on sublanes, pixels on lanes.
        cdt = w1_ref.dtype                  # conv matmul input dtype (bf16 fast path)
        m = m_ref[...]                      # (C, G) one-hot membership, f32
        mt = mt_ref[...]                    # (G, C) one-hot membership, f32
        g1 = g1_ref[...]; be1 = be1_ref[...]
        g2 = g2_ref[...]; be2 = be2_ref[...]
        w1 = w1_ref[...]; w2 = w2_ref[...]
        c2b = c2b_ref[...]

        lane_mask = None
        if HWp != HW:                       # static: only when spatial dim was padded
            lane_mask = jax.lax.broadcasted_iota(jnp.int32, (1, HWp), 1) < HW

        def gn_silu(v, gamma, beta):
            # v: (C, HWp) f32; gamma/beta: (C, 1) f32.
            # Single MXU push reduces sum and sum-of-squares over channels-of-group
            # (f32 membership matmul -> exact stats); only a small (G, 2*HWp) lane
            # reduction remains on the XLU.
            vcat = jnp.concatenate([v, v * v], axis=-1)                        # (C, 2*HWp)
            p = jnp.dot(mt, vcat, preferred_element_type=jnp.float32)          # (G, 2*HWp)
            mean_g = jnp.sum(p[:, :HWp], axis=1, keepdims=True) * inv_n        # (G, 1)
            ex2_g = jnp.sum(p[:, HWp:], axis=1, keepdims=True) * inv_n         # (G, 1)
            var_g = jnp.maximum(ex2_g - mean_g * mean_g, 0.0)
            inv_g = jax.lax.rsqrt(var_g + EPS)
            # Broadcast group stats back to channels (tiny f32 matmuls), fold affine
            # into one scale/shift per channel -> one FMA per element on the VPU.
            mean_c = jnp.dot(m, mean_g, preferred_element_type=jnp.float32)    # (C, 1)
            inv_c = jnp.dot(m, inv_g, preferred_element_type=jnp.float32)      # (C, 1)
            scale = inv_c * gamma
            shift = beta - mean_c * scale
            h = v * scale + shift
            return h * jax.nn.sigmoid(h)    # SiLU (EUP sigmoid), f32

        # Static unroll over the per-step batch tile (bt is small); all matmuls stay 2D.
        for bi in range(bt):
            xv = x_ref[bi].astype(jnp.float32)                                 # (C, HWp)
            # norm1 -> silu -> conv1 (1x1 conv == channel matmul, f32 accumulate)
            h = gn_silu(xv, g1, be1)
            h = jnp.dot(w1, h.astype(cdt),
                        preferred_element_type=jnp.float32) + b1_ref[bi]       # + (temb proj + conv1 bias)
            if lane_mask is not None:
                h = jnp.where(lane_mask, h, 0.0)    # keep padded columns out of norm2 stats
            # norm2 -> silu -> dropout -> conv2
            h = gn_silu(h, g2, be2)
            # TODO(synk): dropout is the identity here (eval/inference mode).
            h = jnp.dot(w2, h.astype(cdt),
                        preferred_element_type=jnp.float32) + c2b
            # residual (in_channels == out_channels -> no shortcut conv)
            o_ref[bi] = (xv + h).astype(o_ref.dtype)

    return kernel


def resnet_block_pallas(x_nchw, temb, params, *, matmul_dtype=jnp.bfloat16,
                        out_dtype=None, bt=None):
    B, C_in, H, W = x_nchw.shape
    HW = H * W
    HWp = ((HW + 127) // 128) * 128                 # lane-dense spatial width
    C_out = params["w1"].shape[1]
    assert C_in == C_out, "this script covers the no-shortcut (in == out) branch"
    assert C_in % NUM_GROUPS == 0
    cpg = C_in // NUM_GROUPS
    out_dtype = x_nchw.dtype if out_dtype is None else jnp.dtype(out_dtype)

    # NCHW -> (B, C, HW): contiguous reshape only (no HBM transpose); pad the lane
    # axis to a multiple of 128 so output stores are never masked sub-128 vst's.
    x_flat = x_nchw.reshape(B, C_in, HW)
    if HWp != HW:
        x_flat = jnp.pad(x_flat, ((0, 0), (0, 0), (0, HWp - HW)))

    # Batch tile per grid step: bigger DMAs / fewer serial grid steps on 1-TC chips,
    # but keep >=2 steps when B>=2 so both v7x TensorCores get work.
    if bt is None:
        per_elem = max(C_in, C_out) * HWp * 4 * 12   # rough f32 working set per element
        bt = 1
        for d in range(1, B + 1):
            if B % d == 0 and d * per_elem <= (8 << 20) and (B < 2 or B // d >= 2):
                bt = d
    assert B % bt == 0

    # Hoisted temb projection with the conv1 bias folded in: (B, C_out, 1) f32.
    bias1 = _silu(temb) @ params["wt"] + params["tb"] + params["c1b"]
    bias1 = bias1[:, :, None].astype(jnp.float32)

    # Group membership matrices (one-hot), kept in f32 so GN statistics are exact.
    M = (jnp.arange(C_in)[:, None] // cpg
         == jnp.arange(NUM_GROUPS)[None, :]).astype(jnp.float32)          # (C, G)
    Mt = jnp.transpose(M)                                                  # (G, C)

    # 1x1 conv weights as (C_out, C_in) so the conv is W^T @ x.
    w1t = params["w1"].T.astype(matmul_dtype)
    w2t = params["w2"].T.astype(matmul_dtype)

    def col(v):  # per-channel vectors as (C, 1) columns (broadcast over lanes)
        return v.reshape(-1, 1).astype(jnp.float32)

    kernel = _make_kernel(bt, HW, HWp, cpg)

    # VMEM budget: double-buffered I/O blocks + weights + live f32 temporaries,
    # capped generation-aware (64 MiB parts vs. 128 MiB parts).
    it = jnp.dtype(matmul_dtype).itemsize
    Cm = max(C_in, C_out)
    vmem_est = (2 * bt * C_in * HWp * x_flat.dtype.itemsize
                + 2 * bt * C_out * HWp * jnp.dtype(out_dtype).itemsize
                + 2 * (C_out * C_in + C_out * C_out) * it
                + 8 * C_in * NUM_GROUPS * 4
                + 64 * Cm * 4
                + 12 * Cm * HWp * 4
                + (4 << 20))
    try:
        vmem_cap = int(pltpu.get_tpu_info().vmem_capacity_bytes)
    except Exception:
        vmem_cap = 64 << 20                          # conservative (v7x-sized) fallback
    vmem_limit = int(min(max(vmem_est, 16 << 20), int(vmem_cap * 0.85)))

    args = (x_flat, bias1, M, Mt,
            col(params["g1"]), col(params["be1"]), w1t,
            col(params["g2"]), col(params["be2"]), w2t, col(params["c2b"]))

    def call(single_buffer_weights):
        wkw = ({"pipeline_mode": pl.Buffered(1)}
               if single_buffer_weights and hasattr(pl, "Buffered") else {})

        def inv(shape):  # grid-invariant operand: single-buffer to save VMEM
            return pl.BlockSpec(shape, lambda b: (0, 0), **wkw)

        in_specs = [
            pl.BlockSpec((bt, C_in, HWp), lambda b: (b, 0, 0)),      # x
            pl.BlockSpec((bt, C_out, 1), lambda b: (b, 0, 0)),       # temb proj + conv1 bias
            inv((C_in, NUM_GROUPS)), inv((NUM_GROUPS, C_in)),         # M, Mt
            inv((C_in, 1)), inv((C_in, 1)),                           # norm1 gamma/beta
            inv((C_out, C_in)),                                       # conv1 weight
            inv((C_out, 1)), inv((C_out, 1)),                         # norm2 gamma/beta
            inv((C_out, C_out)), inv((C_out, 1)),                     # conv2 weight/bias
        ]
        return pl.pallas_call(
            kernel,
            out_shape=jax.ShapeDtypeStruct((B, C_out, HWp), out_dtype),
            grid=(B // bt,),
            in_specs=in_specs,
            out_specs=pl.BlockSpec((bt, C_out, HWp), lambda b: (b, 0, 0)),
            compiler_params=pltpu.CompilerParams(
                dimension_semantics=("parallel",),
                vmem_limit_bytes=vmem_limit),
        )(*args)

    try:
        out = call(True)
    except Exception:
        # Fallback if this JAX build rejects single-buffered (Buffered(1)) operands.
        out = call(False)

    if HWp != HW:
        out = out[:, :, :HW]
    return out.reshape(B, C_out, H, W)


def resnet_block_ref(x, temb, params):
    """Pure-JAX reference matching the PyTorch forward (eval mode)."""
    def gn(v, gamma, beta):
        B, C, H, W = v.shape
        vr = v.reshape(B, NUM_GROUPS, (C // NUM_GROUPS) * H * W)
        mean = vr.mean(-1, keepdims=True)
        var = vr.var(-1, keepdims=True)
        vn = ((vr - mean) / jnp.sqrt(var + EPS)).reshape(B, C, H, W)
        return vn * gamma[None, :, None, None] + beta[None, :, None, None]

    h = _silu(gn(x, params["g1"], params["be1"]))
    h = jnp.einsum("bchw,cd->bdhw", h, params["w1"]) + params["c1b"][None, :, None, None]
    tp = _silu(temb) @ params["wt"] + params["tb"]
    h = h + tp[:, :, None, None]
    h = _silu(gn(h, params["g2"], params["be2"]))
    h = jnp.einsum("bchw,cd->bdhw", h, params["w2"]) + params["c2b"][None, :, None, None]
    return x + h


if __name__ == "__main__":
    B, C, H, W, Tc = 2, 64, 16, 16, 64   # HW = 256 (lane-dense)

    key = jax.random.PRNGKey(0)
    ks = jax.random.split(key, 13)
    x = jax.random.normal(ks[0], (B, C, H, W), jnp.float32)
    temb = jax.random.normal(ks[1], (B, Tc), jnp.float32)

    params = {
        # GroupNorm affine params
        "g1": 1.0 + 0.1 * jax.random.normal(ks[2], (C,), jnp.float32),
        "be1": 0.1 * jax.random.normal(ks[3], (C,), jnp.float32),
        "g2": 1.0 + 0.1 * jax.random.normal(ks[4], (C,), jnp.float32),
        "be2": 0.1 * jax.random.normal(ks[5], (C,), jnp.float32),
        # conv1 / conv2: 1x1 conv weights stored as (C_in, C_out) matmul weights
        "w1": 0.1 * jax.random.normal(ks[6], (C, C), jnp.float32),
        "c1b": 0.05 * jax.random.normal(ks[7], (C,), jnp.float32),
        "w2": 0.1 * jax.random.normal(ks[8], (C, C), jnp.float32),
        "c2b": 0.05 * jax.random.normal(ks[9], (C,), jnp.float32),
        # temb_proj Linear: (Tc, C_out)
        "wt": 0.1 * jax.random.normal(ks[10], (Tc, C), jnp.float32),
        "tb": 0.05 * jax.random.normal(ks[11], (C,), jnp.float32),
    }

    ref = resnet_block_ref(x, temb, params)

    # (1) f32 matmul path, f32 in/out.
    out32 = jax.block_until_ready(
        resnet_block_pallas(x, temb, params, matmul_dtype=jnp.float32))
    assert out32.shape == (B, C, H, W) and out32.dtype == jnp.float32
    err32 = float(jnp.max(jnp.abs(out32 - ref)))
    assert jnp.allclose(out32, ref, rtol=2e-2, atol=2e-2), err32

    # (2) bf16 fast path: bf16 conv matmuls + bf16 output, f32 GN stats in-kernel.
    outbf = jax.block_until_ready(
        resnet_block_pallas(x, temb, params,
                            matmul_dtype=jnp.bfloat16, out_dtype=jnp.bfloat16))
    assert outbf.dtype == jnp.bfloat16
    errbf = float(jnp.max(jnp.abs(outbf.astype(jnp.float32) - ref)))
    assert jnp.allclose(outbf.astype(jnp.float32), ref, rtol=5e-2, atol=5e-2), errbf

    # (3) non-multiple-of-128 spatial size (lane padding path) + multi-batch per step.
    x2 = jax.random.normal(ks[12], (B, C, 8, 8), jnp.float32)
    ref2 = resnet_block_ref(x2, temb, params)
    out2 = jax.block_until_ready(
        resnet_block_pallas(x2, temb, params, matmul_dtype=jnp.float32, bt=2))
    err2 = float(jnp.max(jnp.abs(out2 - ref2)))
    assert jnp.allclose(out2, ref2, rtol=2e-2, atol=2e-2), err2

    print("KERNEL_OK")
</pallas_src>

<mosaic_0001>
module attributes {stable_mosaic.version = 11 : i64} {
  func.func @kernel(%arg0: i32, %arg1: memref<1x64x256xf32, #tpu.memory_space<vmem>>, %arg2: memref<1x64x1xf32, #tpu.memory_space<vmem>>, %arg3: memref<64x32xf32, #tpu.memory_space<vmem>>, %arg4: memref<32x64xf32, #tpu.memory_space<vmem>>, %arg5: memref<64x1xf32, #tpu.memory_space<vmem>>, %arg6: memref<64x1xf32, #tpu.memory_space<vmem>>, %arg7: memref<64x64xf32, #tpu.memory_space<vmem>>, %arg8: memref<64x1xf32, #tpu.memory_space<vmem>>, %arg9: memref<64x1xf32, #tpu.memory_space<vmem>>, %arg10: memref<64x64xf32, #tpu.memory_space<vmem>>, %arg11: memref<64x1xf32, #tpu.memory_space<vmem>>, %arg12: memref<1x64x256xf32, #tpu.memory_space<vmem>>) attributes {dimension_semantics = [#tpu.dimension_semantics<parallel>], iteration_bounds = array<i64: 2>, scalar_prefetch = 0 : i64, scratch_operands = 0 : i64, tpu.core_type = #tpu.core_type<tc>, window_params = [{transform_indices = @transform_0, window_bounds = array<i64: 1, 64, 256>}, {transform_indices = @transform_1, window_bounds = array<i64: 1, 64, 1>}, {pipeline_mode = #tpu.pipeline_mode<synchronous>, transform_indices = @transform_2, window_bounds = array<i64: 64, 32>}, {pipeline_mode = #tpu.pipeline_mode<synchronous>, transform_indices = @transform_3, window_bounds = array<i64: 32, 64>}, {pipeline_mode = #tpu.pipeline_mode<synchronous>, transform_indices = @transform_4, window_bounds = array<i64: 64, 1>}, {pipeline_mode = #tpu.pipeline_mode<synchronous>, transform_indices = @transform_5, window_bounds = array<i64: 64, 1>}, {pipeline_mode = #tpu.pipeline_mode<synchronous>, transform_indices = @transform_6, window_bounds = array<i64: 64, 64>}, {pipeline_mode = #tpu.pipeline_mode<synchronous>, transform_indices = @transform_7, window_bounds = array<i64: 64, 1>}, {pipeline_mode = #tpu.pipeline_mode<synchronous>, transform_indices = @transform_8, window_bounds = array<i64: 64, 1>}, {pipeline_mode = #tpu.pipeline_mode<synchronous>, transform_indices = @transform_9, window_bounds = array<i64: 64, 64>}, {pipeline_mode = #tpu.pipeline_mode<synchronous>, transform_indices = @transform_10, window_bounds = array<i64: 64, 1>}, {transform_indices = @transform_11, window_bounds = array<i64: 1, 64, 256>}]} {
    %c0 = arith.constant 0 : index
    %c0_0 = arith.constant 0 : index
    %0 = vector.load %arg3[%c0, %c0_0] : memref<64x32xf32, #tpu.memory_space<vmem>>, vector<64x32xf32>
    %c0_1 = arith.constant 0 : index
    %c0_2 = arith.constant 0 : index
    %1 = vector.load %arg4[%c0_1, %c0_2] : memref<32x64xf32, #tpu.memory_space<vmem>>, vector<32x64xf32>
    %c0_3 = arith.constant 0 : index
    %c0_4 = arith.constant 0 : index
    %2 = vector.load %arg5[%c0_3, %c0_4] : memref<64x1xf32, #tpu.memory_space<vmem>>, vector<64x1xf32>
    %c0_5 = arith.constant 0 : index
    %c0_6 = arith.constant 0 : index
    %3 = vector.load %arg6[%c0_5, %c0_6] : memref<64x1xf32, #tpu.memory_space<vmem>>, vector<64x1xf32>
    %c0_7 = arith.constant 0 : index
    %c0_8 = arith.constant 0 : index
    %4 = vector.load %arg8[%c0_7, %c0_8] : memref<64x1xf32, #tpu.memory_space<vmem>>, vector<64x1xf32>
    %c0_9 = arith.constant 0 : index
    %c0_10 = arith.constant 0 : index
    %5 = vector.load %arg9[%c0_9, %c0_10] : memref<64x1xf32, #tpu.memory_space<vmem>>, vector<64x1xf32>
    %c0_11 = arith.constant 0 : index
    %c0_12 = arith.constant 0 : index
    %6 = vector.load %arg7[%c0_11, %c0_12] : memref<64x64xf32, #tpu.memory_space<vmem>>, vector<64x64xf32>
    %c0_13 = arith.constant 0 : index
    %c0_14 = arith.constant 0 : index
    %7 = vector.load %arg10[%c0_13, %c0_14] : memref<64x64xf32, #tpu.memory_space<vmem>>, vector<64x64xf32>
    %c0_15 = arith.constant 0 : index
    %c0_16 = arith.constant 0 : index
    %8 = vector.load %arg11[%c0_15, %c0_16] : memref<64x1xf32, #tpu.memory_space<vmem>>, vector<64x1xf32>
    %c0_17 = arith.constant 0 : index
    %c0_18 = arith.constant 0 : index
    %c0_19 = arith.constant 0 : index
    %9 = vector.load %arg1[%c0_17, %c0_18, %c0_19] : memref<1x64x256xf32, #tpu.memory_space<vmem>>, vector<1x64x256xf32>
    %10 = vector.shape_cast %9 : vector<1x64x256xf32> to vector<64x256xf32>
    %11 = arith.mulf %10, %10 : vector<64x256xf32>
    %12 = tpu.concatenate %10, %11 in 1 : vector<64x256xf32>, vector<64x256xf32> -> vector<64x512xf32>
    %cst = arith.constant dense<0.000000e+00> : vector<32x512xf32>
    %13 = tpu.matmul %1, %12, %cst {dimension_numbers = #tpu.dot_dimension_numbers<[1], [0], [0], [1], [0, 0, 1, 1], [], []>} : vector<32x64xf32>, vector<64x512xf32>, vector<32x512xf32> -> vector<32x512xf32>
    %14 = vector.extract_strided_slice %13 {offsets = [0, 0], sizes = [32, 256], strides = [1, 1]} : vector<32x512xf32> to vector<32x256xf32>
    %cst_20 = arith.constant dense<0.000000e+00> : vector<32xf32>
    %15 = vector.multi_reduction <add>, %14, %cst_20 [1] : vector<32x256xf32> to vector<32xf32>
    %16 = vector.shape_cast %15 : vector<32xf32> to vector<32x1xf32>
    %cst_21 = arith.constant 0.001953125 : f32
    %17 = vector.broadcast %cst_21 : f32 to vector<32x1xf32>
    %18 = arith.mulf %16, %17 : vector<32x1xf32>
    %19 = vector.extract_strided_slice %13 {offsets = [0, 256], sizes = [32, 256], strides = [1, 1]} : vector<32x512xf32> to vector<32x256xf32>
    %cst_22 = arith.constant dense<0.000000e+00> : vector<32xf32>
    %20 = vector.multi_reduction <add>, %19, %cst_22 [1] : vector<32x256xf32> to vector<32xf32>
    %21 = vector.shape_cast %20 : vector<32xf32> to vector<32x1xf32>
    %cst_23 = arith.constant 0.001953125 : f32
    %22 = vector.broadcast %cst_23 : f32 to vector<32x1xf32>
    %23 = arith.mulf %21, %22 : vector<32x1xf32>
    %24 = arith.mulf %18, %18 : vector<32x1xf32>
    %25 = arith.subf %23, %24 : vector<32x1xf32>
    %cst_24 = arith.constant 0.000000e+00 : f32
    %26 = vector.broadcast %cst_24 : f32 to vector<32x1xf32>
    %27 = arith.maximumf %25, %26 : vector<32x1xf32>
    %cst_25 = arith.constant 9.99999997E-7 : f32
    %28 = vector.broadcast %cst_25 : f32 to vector<32x1xf32>
    %29 = arith.addf %27, %28 : vector<32x1xf32>
    %30 = math.rsqrt %29 : vector<32x1xf32>
    %cst_26 = arith.constant dense<0.000000e+00> : vector<64x1xf32>
    %31 = tpu.matmul %0, %18, %cst_26 {dimension_numbers = #tpu.dot_dimension_numbers<[1], [0], [0], [1], [0, 0, 1, 1], [], []>} : vector<64x32xf32>, vector<32x1xf32>, vector<64x1xf32> -> vector<64x1xf32>
    %cst_27 = arith.constant dense<0.000000e+00> : vector<64x1xf32>
    %32 = tpu.matmul %0, %30, %cst_27 {dimension_numbers = #tpu.dot_dimension_numbers<[1], [0], [0], [1], [0, 0, 1, 1], [], []>} : vector<64x32xf32>, vector<32x1xf32>, vector<64x1xf32> -> vector<64x1xf32>
    %33 = arith.mulf %32, %2 : vector<64x1xf32>
    %34 = arith.mulf %31, %33 : vector<64x1xf32>
    %35 = arith.subf %3, %34 : vector<64x1xf32>
    %36 = vector.broadcast %33 : vector<64x1xf32> to vector<64x256xf32>
    %37 = arith.mulf %10, %36 : vector<64x256xf32>
    %38 = vector.broadcast %35 : vector<64x1xf32> to vector<64x256xf32>
    %39 = arith.addf %37, %38 : vector<64x256xf32>
    %40 = arith.negf %39 : vector<64x256xf32>
    %41 = math.exp %40 : vector<64x256xf32>
    %cst_28 = arith.constant 1.000000e+00 : f32
    %42 = vector.broadcast %cst_28 : f32 to vector<64x256xf32>
    %43 = arith.addf %42, %41 : vector<64x256xf32>
    %44 = arith.divf %42, %43 : vector<64x256xf32>
    %45 = arith.mulf %39, %44 : vector<64x256xf32>
    %cst_29 = arith.constant dense<0.000000e+00> : vector<64x256xf32>
    %46 = tpu.matmul %6, %45, %cst_29 {dimension_numbers = #tpu.dot_dimension_numbers<[1], [0], [0], [1], [0, 0, 1, 1], [], []>} : vector<64x64xf32>, vector<64x256xf32>, vector<64x256xf32> -> vector<64x256xf32>
    %c0_30 = arith.constant 0 : index
    %c0_31 = arith.constant 0 : index
    %c0_32 = arith.constant 0 : index
    %47 = vector.load %arg2[%c0_30, %c0_31, %c0_32] : memref<1x64x1xf32, #tpu.memory_space<vmem>>, vector<1x64x1xf32>
    %48 = vector.shape_cast %47 : vector<1x64x1xf32> to vector<64x1xf32>
    %49 = vector.broadcast %48 : vector<64x1xf32> to vector<64x256xf32>
    %50 = arith.addf %46, %49 : vector<64x256xf32>
    %51 = arith.mulf %50, %50 : vector<64x256xf32>
    %52 = tpu.concatenate %50, %51 in 1 : vector<64x256xf32>, vector<64x256xf32> -> vector<64x512xf32>
    %cst_33 = arith.constant dense<0.000000e+00> : vector<32x512xf32>
    %53 = tpu.matmul %1, %52, %cst_33 {dimension_numbers = #tpu.dot_dimension_numbers<[1], [0], [0], [1], [0, 0, 1, 1], [], []>} : vector<32x64xf32>, vector<64x512xf32>, vector<32x512xf32> -> vector<32x512xf32>
    %54 = vector.extract_strided_slice %53 {offsets = [0, 0], sizes = [32, 256], strides = [1, 1]} : vector<32x512xf32> to vector<32x256xf32>
    %cst_34 = arith.constant dense<0.000000e+00> : vector<32xf32>
    %55 = vector.multi_reduction <add>, %54, %cst_34 [1] : vector<32x256xf32> to vector<32xf32>
    %56 = vector.shape_cast %55 : vector<32xf32> to vector<32x1xf32>
    %cst_35 = arith.constant 0.001953125 : f32
    %57 = vector.broadcast %cst_35 : f32 to vector<32x1xf32>
    %58 = arith.mulf %56, %57 : vector<32x1xf32>
    %59 = vector.extract_strided_slice %53 {offsets = [0, 256], sizes = [32, 256], strides = [1, 1]} : vector<32x512xf32> to vector<32x256xf32>
    %cst_36 = arith.constant dense<0.000000e+00> : vector<32xf32>
    %60 = vector.multi_reduction <add>, %59, %cst_36 [1] : vector<32x256xf32> to vector<32xf32>
    %61 = vector.shape_cast %60 : vector<32xf32> to vector<32x1xf32>
    %cst_37 = arith.constant 0.001953125 : f32
    %62 = vector.broadcast %cst_37 : f32 to vector<32x1xf32>
    %63 = arith.mulf %61, %62 : vector<32x1xf32>
    %64 = arith.mulf %58, %58 : vector<32x1xf32>
    %65 = arith.subf %63, %64 : vector<32x1xf32>
    %cst_38 = arith.constant 0.000000e+00 : f32
    %66 = vector.broadcast %cst_38 : f32 to vector<32x1xf32>
    %67 = arith.maximumf %65, %66 : vector<32x1xf32>
    %cst_39 = arith.constant 9.99999997E-7 : f32
    %68 = vector.broadcast %cst_39 : f32 to vector<32x1xf32>
    %69 = arith.addf %67, %68 : vector<32x1xf32>
    %70 = math.rsqrt %69 : vector<32x1xf32>
    %cst_40 = arith.constant dense<0.000000e+00> : vector<64x1xf32>
    %71 = tpu.matmul %0, %58, %cst_40 {dimension_numbers = #tpu.dot_dimension_numbers<[1], [0], [0], [1], [0, 0, 1, 1], [], []>} : vector<64x32xf32>, vector<32x1xf32>, vector<64x1xf32> -> vector<64x1xf32>
    %cst_41 = arith.constant dense<0.000000e+00> : vector<64x1xf32>
    %72 = tpu.matmul %0, %70, %cst_41 {dimension_numbers = #tpu.dot_dimension_numbers<[1], [0], [0], [1], [0, 0, 1, 1], [], []>} : vector<64x32xf32>, vector<32x1xf32>, vector<64x1xf32> -> vector<64x1xf32>
    %73 = arith.mulf %72, %4 : vector<64x1xf32>
    %74 = arith.mulf %71, %73 : vector<64x1xf32>
    %75 = arith.subf %5, %74 : vector<64x1xf32>
    %76 = vector.broadcast %73 : vector<64x1xf32> to vector<64x256xf32>
    %77 = arith.mulf %50, %76 : vector<64x256xf32>
    %78 = vector.broadcast %75 : vector<64x1xf32> to vector<64x256xf32>
    %79 = arith.addf %77, %78 : vector<64x256xf32>
    %80 = arith.negf %79 : vector<64x256xf32>
    %81 = math.exp %80 : vector<64x256xf32>
    %cst_42 = arith.constant 1.000000e+00 : f32
    %82 = vector.broadcast %cst_42 : f32 to vector<64x256xf32>
    %83 = arith.addf %82, %81 : vector<64x256xf32>
    %84 = arith.divf %82, %83 : vector<64x256xf32>
    %85 = arith.mulf %79, %84 : vector<64x256xf32>
    %cst_43 = arith.constant dense<0.000000e+00> : vector<64x256xf32>
    %86 = tpu.matmul %7, %85, %cst_43 {dimension_numbers = #tpu.dot_dimension_numbers<[1], [0], [0], [1], [0, 0, 1, 1], [], []>} : vector<64x64xf32>, vector<64x256xf32>, vector<64x256xf32> -> vector<64x256xf32>
    %87 = vector.broadcast %8 : vector<64x1xf32> to vector<64x256xf32>
    %88 = arith.addf %86, %87 : vector<64x256xf32>
    %89 = arith.addf %10, %88 : vector<64x256xf32>
    %c0_44 = arith.constant 0 : index
    %c0_45 = arith.constant 0 : index
    %c0_46 = arith.constant 0 : index
    %90 = vector.load %arg12[%c0_44, %c0_45, %c0_46] : memref<1x64x256xf32, #tpu.memory_space<vmem>>, vector<1x64x256xf32>
    %91 = vector.shape_cast %90 : vector<1x64x256xf32> to vector<64x256xf32>
    %92 = vector.shape_cast %89 : vector<64x256xf32> to vector<1x64x256xf32>
    tpu.vector_store %arg12[%c0_44, %c0_45, %c0_46], %92 {strides = array<i32>} : memref<1x64x256xf32, #tpu.memory_space<vmem>>, vector<1x64x256xf32>,
    return
  }
  func.func @transform_0(%arg0: i32) -> (i32, i32, i32) {
    %c0_i32 = arith.constant 0 : i32
    %c0_i32_0 = arith.constant 0 : i32
    %c0_i32_1 = arith.constant 0 : i32
    return %arg0, %c0_i32, %c0_i32_0 : i32, i32, i32
  }
  func.func @transform_1(%arg0: i32) -> (i32, i32, i32) {
    %c0_i32 = arith.constant 0 : i32
    %c0_i32_0 = arith.constant 0 : i32
    %c0_i32_1 = arith.constant 0 : i32
    return %arg0, %c0_i32, %c0_i32_0 : i32, i32, i32
  }
  func.func @transform_2(%arg0: i32) -> (i32, i32) {
    %c0_i32 = arith.constant 0 : i32
    %c0_i32_0 = arith.constant 0 : i32
    %c0_i32_1 = arith.constant 0 : i32
    return %c0_i32, %c0_i32_0 : i32, i32
  }
  func.func @transform_3(%arg0: i32) -> (i32, i32) {
    %c0_i32 = arith.constant 0 : i32
    %c0_i32_0 = arith.constant 0 : i32
    %c0_i32_1 = arith.constant 0 : i32
    return %c0_i32, %c0_i32_0 : i32, i32
  }
  func.func @transform_4(%arg0: i32) -> (i32, i32) {
    %c0_i32 = arith.constant 0 : i32
    %c0_i32_0 = arith.constant 0 : i32
    %c0_i32_1 = arith.constant 0 : i32
    return %c0_i32, %c0_i32_0 : i32, i32
  }
  func.func @transform_5(%arg0: i32) -> (i32, i32) {
    %c0_i32 = arith.constant 0 : i32
    %c0_i32_0 = arith.constant 0 : i32
    %c0_i32_1 = arith.constant 0 : i32
    return %c0_i32, %c0_i32_0 : i32, i32
  }
  func.func @transform_6(%arg0: i32) -> (i32, i32) {
    %c0_i32 = arith.constant 0 : i32
    %c0_i32_0 = arith.constant 0 : i32
    %c0_i32_1 = arith.constant 0 : i32
    return %c0_i32, %c0_i32_0 : i32, i32
  }
  func.func @transform_7(%arg0: i32) -> (i32, i32) {
    %c0_i32 = arith.constant 0 : i32
    %c0_i32_0 = arith.constant 0 : i32
    %c0_i32_1 = arith.constant 0 : i32
    return %c0_i32, %c0_i32_0 : i32, i32
  }
  func.func @transform_8(%arg0: i32) -> (i32, i32) {
    %c0_i32 = arith.constant 0 : i32
    %c0_i32_0 = arith.constant 0 : i32
    %c0_i32_1 = arith.constant 0 : i32
    return %c0_i32, %c0_i32_0 : i32, i32
  }
  func.func @transform_9(%arg0: i32) -> (i32, i32) {
    %c0_i32 = arith.constant 0 : i32
    %c0_i32_0 = arith.constant 0 : i32
    %c0_i32_1 = arith.constant 0 : i32
    return %c0_i32, %c0_i32_0 : i32, i32
  }
  func.func @transform_10(%arg0: i32) -> (i32, i32) {
    %c0_i32 = arith.constant 0 : i32
    %c0_i32_0 = arith.constant 0 : i32
    %c0_i32_1 = arith.constant 0 : i32
    return %c0_i32, %c0_i32_0 : i32, i32
  }
  func.func @transform_11(%arg0: i32) -> (i32, i32, i32) {
    %c0_i32 = arith.constant 0 : i32
    %c0_i32_0 = arith.constant 0 : i32
    %c0_i32_1 = arith.constant 0 : i32
    return %arg0, %c0_i32, %c0_i32_0 : i32, i32, i32
  }
}

module attributes {stable_mosaic.version = 11 : i64} {
  func.func @kernel(%arg0: i32, %arg1: memref<1x64x256xf32, #tpu.memory_space<vmem>>, %arg2: memref<1x64x1xf32, #tpu.memory_space<vmem>>, %arg3: memref<64x32xf32, #tpu.memory_space<vmem>>, %arg4: memref<32x64xf32, #tpu.memory_space<vmem>>, %arg5: memref<64x1xf32, #tpu.memory_space<vmem>>, %arg6: memref<64x1xf32, #tpu.memory_space<vmem>>, %arg7: memref<64x64xf32, #tpu.memory_space<vmem>>, %arg8: memref<64x1xf32, #tpu.memory_space<vmem>>, %arg9: memref<64x1xf32, #tpu.memory_space<vmem>>, %arg10: memref<64x64xf32, #tpu.memory_space<vmem>>, %arg11: memref<64x1xf32, #tpu.memory_space<vmem>>, %arg12: memref<1x64x256xf32, #tpu.memory_space<vmem>>) attributes {dimension_semantics = [#tpu.dimension_semantics<parallel>], iteration_bounds = array<i64: 2>, scalar_prefetch = 0 : i64, scratch_operands = 0 : i64, tpu.core_type = #tpu.core_type<tc>, window_params = [{transform_indices = @transform_0, window_bounds = array<i64: 1, 64, 256>}, {transform_indices = @transform_1, window_bounds = array<i64: 1, 64, 1>}, {pipeline_mode = #tpu.pipeline_mode<synchronous>, transform_indices = @transform_2, window_bounds = array<i64: 64, 32>}, {pipeline_mode = #tpu.pipeline_mode<synchronous>, transform_indices = @transform_3, window_bounds = array<i64: 32, 64>}, {pipeline_mode = #tpu.pipeline_mode<synchronous>, transform_indices = @transform_4, window_bounds = array<i64: 64, 1>}, {pipeline_mode = #tpu.pipeline_mode<synchronous>, transform_indices = @transform_5, window_bounds = array<i64: 64, 1>}, {pipeline_mode = #tpu.pipeline_mode<synchronous>, transform_indices = @transform_6, window_bounds = array<i64: 64, 64>}, {pipeline_mode = #tpu.pipeline_mode<synchronous>, transform_indices = @transform_7, window_bounds = array<i64: 64, 1>}, {pipeline_mode = #tpu.pipeline_mode<synchronous>, transform_indices = @transform_8, window_bounds = array<i64: 64, 1>}, {pipeline_mode = #tpu.pipeline_mode<synchronous>, transform_indices = @transform_9, window_bounds = array<i64: 64, 64>}, {pipeline_mode = #tpu.pipeline_mode<synchronous>, transform_indices = @transform_10, window_bounds = array<i64: 64, 1>}, {transform_indices = @transform_11, window_bounds = array<i64: 1, 64, 256>}]} {
    %c0 = arith.constant 0 : index
    %c0_0 = arith.constant 0 : index
    %0 = vector.load %arg3[%c0, %c0_0] : memref<64x32xf32, #tpu.memory_space<vmem>>, vector<64x32xf32>
    %c0_1 = arith.constant 0 : index
    %c0_2 = arith.constant 0 : index
    %1 = vector.load %arg4[%c0_1, %c0_2] : memref<32x64xf32, #tpu.memory_space<vmem>>, vector<32x64xf32>
    %c0_3 = arith.constant 0 : index
    %c0_4 = arith.constant 0 : index
    %2 = vector.load %arg5[%c0_3, %c0_4] : memref<64x1xf32, #tpu.memory_space<vmem>>, vector<64x1xf32>
    %c0_5 = arith.constant 0 : index
    %c0_6 = arith.constant 0 : index
    %3 = vector.load %arg6[%c0_5, %c0_6] : memref<64x1xf32, #tpu.memory_space<vmem>>, vector<64x1xf32>
    %c0_7 = arith.constant 0 : index
    %c0_8 = arith.constant 0 : index
    %4 = vector.load %arg8[%c0_7, %c0_8] : memref<64x1xf32, #tpu.memory_space<vmem>>, vector<64x1xf32>
    %c0_9 = arith.constant 0 : index
    %c0_10 = arith.constant 0 : index
    %5 = vector.load %arg9[%c0_9, %c0_10] : memref<64x1xf32, #tpu.memory_space<vmem>>, vector<64x1xf32>
    %c0_11 = arith.constant 0 : index
    %c0_12 = arith.constant 0 : index
    %6 = vector.load %arg7[%c0_11, %c0_12] : memref<64x64xf32, #tpu.memory_space<vmem>>, vector<64x64xf32>
    %c0_13 = arith.constant 0 : index
    %c0_14 = arith.constant 0 : index
    %7 = vector.load %arg10[%c0_13, %c0_14] : memref<64x64xf32, #tpu.memory_space<vmem>>, vector<64x64xf32>
    %c0_15 = arith.constant 0 : index
    %c0_16 = arith.constant 0 : index
    %8 = vector.load %arg11[%c0_15, %c0_16] : memref<64x1xf32, #tpu.memory_space<vmem>>, vector<64x1xf32>
    %c0_17 = arith.constant 0 : index
    %c0_18 = arith.constant 0 : index
    %c0_19 = arith.constant 0 : index
    %9 = vector.load %arg1[%c0_17, %c0_18, %c0_19] : memref<1x64x256xf32, #tpu.memory_space<vmem>>, vector<1x64x256xf32>
    %10 = vector.shape_cast %9 : vector<1x64x256xf32> to vector<64x256xf32>
    %11 = arith.mulf %10, %10 : vector<64x256xf32>
    %12 = tpu.concatenate %10, %11 in 1 : vector<64x256xf32>, vector<64x256xf32> -> vector<64x512xf32>
    %cst = arith.constant dense<0.000000e+00> : vector<32x512xf32>
    %13 = tpu.matmul %1, %12, %cst {dimension_numbers = #tpu.dot_dimension_numbers<[1], [0], [0], [1], [0, 0, 1, 1], [], []>} : vector<32x64xf32>, vector<64x512xf32>, vector<32x512xf32> -> vector<32x512xf32>
    %14 = vector.extract_strided_slice %13 {offsets = [0, 0], sizes = [32, 256], strides = [1, 1]} : vector<32x512xf32> to vector<32x256xf32>
    %cst_20 = arith.constant dense<0.000000e+00> : vector<32xf32>
    %15 = vector.multi_reduction <add>, %14, %cst_20 [1] : vector<32x256xf32> to vector<32xf32>
    %16 = vector.shape_cast %15 : vector<32xf32> to vector<32x1xf32>
    %cst_21 = arith.constant 0.001953125 : f32
    %17 = vector.broadcast %cst_21 : f32 to vector<32x1xf32>
    %18 = arith.mulf %16, %17 : vector<32x1xf32>
    %19 = vector.extract_strided_slice %13 {offsets = [0, 256], sizes = [32, 256], strides = [1, 1]} : vector<32x512xf32> to vector<32x256xf32>
    %cst_22 = arith.constant dense<0.000000e+00> : vector<32xf32>
    %20 = vector.multi_reduction <add>, %19, %cst_22 [1] : vector<32x256xf32> to vector<32xf32>
    %21 = vector.shape_cast %20 : vector<32xf32> to vector<32x1xf32>
    %cst_23 = arith.constant 0.001953125 : f32
    %22 = vector.broadcast %cst_23 : f32 to vector<32x1xf32>
    %23 = arith.mulf %21, %22 : vector<32x1xf32>
    %24 = arith.mulf %18, %18 : vector<32x1xf32>
    %25 = arith.subf %23, %24 : vector<32x1xf32>
    %cst_24 = arith.constant 0.000000e+00 : f32
    %26 = vector.broadcast %cst_24 : f32 to vector<32x1xf32>
    %27 = arith.maximumf %25, %26 : vector<32x1xf32>
    %cst_25 = arith.constant 9.99999997E-7 : f32
    %28 = vector.broadcast %cst_25 : f32 to vector<32x1xf32>
    %29 = arith.addf %27, %28 : vector<32x1xf32>
    %30 = math.rsqrt %29 : vector<32x1xf32>
    %cst_26 = arith.constant dense<0.000000e+00> : vector<64x1xf32>
    %31 = tpu.matmul %0, %18, %cst_26 {dimension_numbers = #tpu.dot_dimension_numbers<[1], [0], [0], [1], [0, 0, 1, 1], [], []>} : vector<64x32xf32>, vector<32x1xf32>, vector<64x1xf32> -> vector<64x1xf32>
    %cst_27 = arith.constant dense<0.000000e+00> : vector<64x1xf32>
    %32 = tpu.matmul %0, %30, %cst_27 {dimension_numbers = #tpu.dot_dimension_numbers<[1], [0], [0], [1], [0, 0, 1, 1], [], []>} : vector<64x32xf32>, vector<32x1xf32>, vector<64x1xf32> -> vector<64x1xf32>
    %33 = arith.mulf %32, %2 : vector<64x1xf32>
    %34 = arith.mulf %31, %33 : vector<64x1xf32>
    %35 = arith.subf %3, %34 : vector<64x1xf32>
    %36 = vector.broadcast %33 : vector<64x1xf32> to vector<64x256xf32>
    %37 = arith.mulf %10, %36 : vector<64x256xf32>
    %38 = vector.broadcast %35 : vector<64x1xf32> to vector<64x256xf32>
    %39 = arith.addf %37, %38 : vector<64x256xf32>
    %40 = arith.negf %39 : vector<64x256xf32>
    %41 = math.exp %40 : vector<64x256xf32>
    %cst_28 = arith.constant 1.000000e+00 : f32
    %42 = vector.broadcast %cst_28 : f32 to vector<64x256xf32>
    %43 = arith.addf %42, %41 : vector<64x256xf32>
    %44 = arith.divf %42, %43 : vector<64x256xf32>
    %45 = arith.mulf %39, %44 : vector<64x256xf32>
    %cst_29 = arith.constant dense<0.000000e+00> : vector<64x256xf32>
    %46 = tpu.matmul %6, %45, %cst_29 {dimension_numbers = #tpu.dot_dimension_numbers<[1], [0], [0], [1], [0, 0, 1, 1], [], []>} : vector<64x64xf32>, vector<64x256xf32>, vector<64x256xf32> -> vector<64x256xf32>
    %c0_30 = arith.constant 0 : index
    %c0_31 = arith.constant 0 : index
    %c0_32 = arith.constant 0 : index
    %47 = vector.load %arg2[%c0_30, %c0_31, %c0_32] : memref<1x64x1xf32, #tpu.memory_space<vmem>>, vector<1x64x1xf32>
    %48 = vector.shape_cast %47 : vector<1x64x1xf32> to vector<64x1xf32>
    %49 = vector.broadcast %48 : vector<64x1xf32> to vector<64x256xf32>
    %50 = arith.addf %46, %49 : vector<64x256xf32>
    %51 = arith.mulf %50, %50 : vector<64x256xf32>
    %52 = tpu.concatenate %50, %51 in 1 : vector<64x256xf32>, vector<64x256xf32> -> vector<64x512xf32>
    %cst_33 = arith.constant dense<0.000000e+00> : vector<32x512xf32>
    %53 = tpu.matmul %1, %52, %cst_33 {dimension_numbers = #tpu.dot_dimension_numbers<[1], [0], [0], [1], [0, 0, 1, 1], [], []>} : vector<32x64xf32>, vector<64x512xf32>, vector<32x512xf32> -> vector<32x512xf32>
    %54 = vector.extract_strided_slice %53 {offsets = [0, 0], sizes = [32, 256], strides = [1, 1]} : vector<32x512xf32> to vector<32x256xf32>
    %cst_34 = arith.constant dense<0.000000e+00> : vector<32xf32>
    %55 = vector.multi_reduction <add>, %54, %cst_34 [1] : vector<32x256xf32> to vector<32xf32>
    %56 = vector.shape_cast %55 : vector<32xf32> to vector<32x1xf32>
    %cst_35 = arith.constant 0.001953125 : f32
    %57 = vector.broadcast %cst_35 : f32 to vector<32x1xf32>
    %58 = arith.mulf %56, %57 : vector<32x1xf32>
    %59 = vector.extract_strided_slice %53 {offsets = [0, 256], sizes = [32, 256], strides = [1, 1]} : vector<32x512xf32> to vector<32x256xf32>
    %cst_36 = arith.constant dense<0.000000e+00> : vector<32xf32>
    %60 = vector.multi_reduction <add>, %59, %cst_36 [1] : vector<32x256xf32> to vector<32xf32>
    %61 = vector.shape_cast %60 : vector<32xf32> to vector<32x1xf32>
    %cst_37 = arith.constant 0.001953125 : f32
    %62 = vector.broadcast %cst_37 : f32 to vector<32x1xf32>
    %63 = arith.mulf %61, %62 : vector<32x1xf32>
    %64 = arith.mulf %58, %58 : vector<32x1xf32>
    %65 = arith.subf %63, %64 : vector<32x1xf32>
    %cst_38 = arith.constant 0.000000e+00 : f32
    %66 = vector.broadcast %cst_38 : f32 to vector<32x1xf32>
    %67 = arith.maximumf %65, %66 : vector<32x1xf32>
    %cst_39 = arith.constant 9.99999997E-7 : f32
    %68 = vector.broadcast %cst_39 : f32 to vector<32x1xf32>
    %69 = arith.addf %67, %68 : vector<32x1xf32>
    %70 = math.rsqrt %69 : vector<32x1xf32>
    %cst_40 = arith.constant dense<0.000000e+00> : vector<64x1xf32>
    %71 = tpu.matmul %0, %58, %cst_40 {dimension_numbers = #tpu.dot_dimension_numbers<[1], [0], [0], [1], [0, 0, 1, 1], [], []>} : vector<64x32xf32>, vector<32x1xf32>, vector<64x1xf32> -> vector<64x1xf32>
    %cst_41 = arith.constant dense<0.000000e+00> : vector<64x1xf32>
    %72 = tpu.matmul %0, %70, %cst_41 {dimension_numbers = #tpu.dot_dimension_numbers<[1], [0], [0], [1], [0, 0, 1, 1], [], []>} : vector<64x32xf32>, vector<32x1xf32>, vector<64x1xf32> -> vector<64x1xf32>
    %73 = arith.mulf %72, %4 : vector<64x1xf32>
    %74 = arith.mulf %71, %73 : vector<64x1xf32>
    %75 = arith.subf %5, %74 : vector<64x1xf32>
    %76 = vector.broadcast %73 : vector<64x1xf32> to vector<64x256xf32>
    %77 = arith.mulf %50, %76 : vector<64x256xf32>
    %78 = vector.broadcast %75 : vector<64x1xf32> to vector<64x256xf32>
    %79 = arith.addf %77, %78 : vector<64x256xf32>
    %80 = arith.negf %79 : vector<64x256xf32>
    %81 = math.exp %80 : vector<64x256xf32>
    %cst_42 = arith.constant 1.000000e+00 : f32
    %82 = vector.broadcast %cst_42 : f32 to vector<64x256xf32>
    %83 = arith.addf %82, %81 : vector<64x256xf32>
    %84 = arith.divf %82, %83 : vector<64x256xf32>
    %85 = arith.mulf %79, %84 : vector<64x256xf32>
    %cst_43 = arith.constant dense<0.000000e+00> : vector<64x256xf32>
    %86 = tpu.matmul %7, %85, %cst_43 {dimension_numbers = #tpu.dot_dimension_numbers<[1], [0], [0], [1], [0, 0, 1, 1], [], []>} : vector<64x64xf32>, vector<64x256xf32>, vector<64x256xf32> -> vector<64x256xf32>
    %87 = vector.broadcast %8 : vector<64x1xf32> to vector<64x256xf32>
    %88 = arith.addf %86, %87 : vector<64x256xf32>
    %89 = arith.addf %10, %88 : vector<64x256xf32>
    %c0_44 = arith.constant 0 : index
    %c0_45 = arith.constant 0 : index
    %c0_46 = arith.constant 0 : index
    %90 = vector.load %arg12[%c0_44, %c0_45, %c0_46] : memref<1x64x256xf32, #tpu.memory_space<vmem>>, vector<1x64x256xf32>
    %91 = vector.shape_cast %90 : vector<1x64x256xf32> to vector<64x256xf32>
    %92 = vector.shape_cast %89 : vector<64x256xf32> to vector<1x64x256xf32>
    tpu.vector_store %arg12[%c0_44, %c0_45, %c0_46], %92 {strides = array<i32>} : memref<1x64x256xf32, #tpu.memory_space<vmem>>, vector<1x64x256xf32>,
    return
  }
  func.func @transform_0(%arg0: i32) -> (i32, i32, i32) {
    %c0_i32 = arith.constant 0 : i32
    %c0_i32_0 = arith.constant 0 : i32
    %c0_i32_1 = arith.constant 0 : i32
    return %arg0, %c0_i32, %c0_i32_0 : i32, i32, i32
  }
  func.func @transform_1(%arg0: i32) -> (i32, i32, i32) {
    %c0_i32 = arith.constant 0 : i32
    %c0_i32_0 = arith.constant 0 : i32
    %c0_i32_1 = arith.constant 0 : i32
    return %arg0, %c0_i32, %c0_i32_0 : i32, i32, i32
  }
  func.func @transform_2(%arg0: i32) -> (i32, i32) {
    %c0_i32 = arith.constant 0 : i32
    %c0_i32_0 = arith.constant 0 : i32
    %c0_i32_1 = arith.constant 0 : i32
    return %c0_i32, %c0_i32_0 : i32, i32
  }
  func.func @transform_3(%arg0: i32) -> (i32, i32) {
    %c0_i32 = arith.constant 0 : i32
    %c0_i32_0 = arith.constant 0 : i32
    %c0_i32_1 = arith.constant 0 : i32
    return %c0_i32, %c0_i32_0 : i32, i32
  }
  func.func @transform_4(%arg0: i32) -> (i32, i32) {
    %c0_i32 = arith.constant 0 : i32
    %c0_i32_0 = arith.constant 0 : i32
    %c0_i32_1 = arith.constant 0 : i32
    return %c0_i32, %c0_i32_0 : i32, i32
  }
  func.func @transform_5(%arg0: i32) -> (i32, i32) {
    %c0_i32 = arith.constant 0 : i32
    %c0_i32_0 = arith.constant 0 : i32
    %c0_i32_1 = arith.constant 0 : i32
    return %c0_i32, %c0_i32_0 : i32, i32
  }
  func.func @transform_6(%arg0: i32) -> (i32, i32) {
    %c0_i32 = arith.constant 0 : i32
    %c0_i32_0 = arith.constant 0 : i32
    %c0_i32_1 = arith.constant 0 : i32
    return %c0_i32, %c0_i32_0 : i32, i32
  }
  func.func @transform_7(%arg0: i32) -> (i32, i32) {
    %c0_i32 = arith.constant 0 : i32
    %c0_i32_0 = arith.constant 0 : i32
    %c0_i32_1 = arith.constant 0 : i32
    return %c0_i32, %c0_i32_0 : i32, i32
  }
  func.func @transform_8(%arg0: i32) -> (i32, i32) {
    %c0_i32 = arith.constant 0 : i32
    %c0_i32_0 = arith.constant 0 : i32
    %c0_i32_1 = arith.constant 0 : i32
    return %c0_i32, %c0_i32_0 : i32, i32
  }
  func.func @transform_9(%arg0: i32) -> (i32, i32) {
    %c0_i32 = arith.constant 0 : i32
    %c0_i32_0 = arith.constant 0 : i32
    %c0_i32_1 = arith.constant 0 : i32
    return %c0_i32, %c0_i32_0 : i32, i32
  }
  func.func @transform_10(%arg0: i32) -> (i32, i32) {
    %c0_i32 = arith.constant 0 : i32
    %c0_i32_0 = arith.constant 0 : i32
    %c0_i32_1 = arith.constant 0 : i32
    return %c0_i32, %c0_i32_0 : i32, i32
  }
  func.func @transform_11(%arg0: i32) -> (i32, i32, i32) {
    %c0_i32 = arith.constant 0 : i32
    %c0_i32_0 = arith.constant 0 : i32
    %c0_i32_1 = arith.constant 0 : i32
    return %arg0, %c0_i32, %c0_i32_0 : i32, i32, i32
  }
}

</mosaic_0001>

<llo_original>
// kernel: tpu_custom_call.1
$region0: #{tpu_custom_call.1}
  #allocation0 [shape = 'u32[]', space=smem, size = 0x4, offset = 0x4, fixed_abs, tag = 'smem constant byte address 0x4 - core index']
  #allocation1 [shape = 'u32[144,128]{1,0:T(1,128)}', space=vmem, size = 0x12000, scoped, tag = 'internal scratch']
  %s0 = inlined_call_operand.vmem [shape: f32[2,64,256], index: 0, kind: input, shape index: {}]
  %s1 = inlined_call_operand.vmem [shape: f32[2,64,1], index: 1, kind: input, shape index: {}]
  %s2 = inlined_call_operand.vmem [shape: f32[64,32], index: 2, kind: input, shape index: {}]
  %s3 = inlined_call_operand.vmem [shape: f32[32,64], index: 3, kind: input, shape index: {}]
  %s4 = inlined_call_operand.vmem [shape: f32[64,1], index: 4, kind: input, shape index: {}]
  %s5 = inlined_call_operand.vmem [shape: f32[64,1], index: 5, kind: input, shape index: {}]
  %s6 = inlined_call_operand.vmem [shape: f32[64,64], index: 6, kind: input, shape index: {}]
  %s7 = inlined_call_operand.vmem [shape: f32[64,1], index: 7, kind: input, shape index: {}]
  %s8 = inlined_call_operand.vmem [shape: f32[64,1], index: 8, kind: input, shape index: {}]
  %s9 = inlined_call_operand.vmem [shape: f32[64,64], index: 9, kind: input, shape index: {}]
  %s10 = inlined_call_operand.vmem [shape: f32[64,1], index: 10, kind: input, shape index: {}]
  %s11 = inlined_call_operand.hbm [shape: f32[2,64,256], index: 11, kind: output, shape index: {}]
  %s12 = sld [smem:[#allocation0]]
  $region77: #{tpu_custom_call.1} parent=0
    _
  %s14 = ssub.s32 1, %s12
  %s15 = scalar_select 0, %s14, %s12
  $region1: #{tpu_custom_call.1} parent=0
    #allocation2 [shape = 'u8[131072]{0}', space=vmem, size = 0x20000, scoped, tag = 'output window, operand 0']
    #allocation3 [shape = 's32[2]{0}', space=sflag, size = 0x8, scoped, tag = 'scoped memory for tpu_custom_call.1']
    %16 = vsyncpa [#allocation3], 0
    %s17 = scalar_lea.sflag [#allocation3], 1
    %18 = vsyncpa %s17, 0
    loop: start=0, step=1, limit=4
    $region2: #{tpu_custom_call.1} parent=1 // loop_pre_header
      _
    $region3: #{tpu_custom_call.1} parent=1 // loop_header
      %s20 = sphi 0, %s24
      %p21 = scmp.ge.s32.totalorder %s20, 4
      %s30 = sphi 0, %s32
      %s33 = sphi 0, %s30
      %s34 = sphi 0, %s33
      %s50 = sphi 0, %s34
      %s56 = sphi 0, %s58
      %s59 = sphi 0, %s56
      %s60 = sphi 0, %s59
      %s76 = sphi 0, %s60
      %s80 = sphi 0, %s80
      %s82 = sphi 0, %s80
      %s83 = sphi 0, %s82
      %s97 = sphi 0, %s83
      %s101 = sphi 0, %s101
      %s103 = sphi 0, %s101
      %s104 = sphi 0, %s103
      %s118 = sphi 0, %s104
      %s122 = sphi 0, %s122
      %s124 = sphi 0, %s122
      %s125 = sphi 0, %s124
      %s139 = sphi 0, %s125
      %s143 = sphi 0, %s143
      %s145 = sphi 0, %s143
      %s146 = sphi 0, %s145
      %s160 = sphi 0, %s146
      %s164 = sphi 0, %s164
      %s166 = sphi 0, %s164
      %s167 = sphi 0, %s166
      %s181 = sphi 0, %s167
      %s185 = sphi 0, %s185
      %s187 = sphi 0, %s185
      %s188 = sphi 0, %s187
      %s202 = sphi 0, %s188
      %s206 = sphi 0, %s206
      %s208 = sphi 0, %s206
      %s209 = sphi 0, %s208
      %s223 = sphi 0, %s209
      %s227 = sphi 0, %s227
      %s229 = sphi 0, %s227
      %s230 = sphi 0, %s229
      %s244 = sphi 0, %s230
      %s248 = sphi 0, %s248
      %s250 = sphi 0, %s248
      %s251 = sphi 0, %s250
      %s265 = sphi 0, %s251
      %s271 = sphi 0, %s273
      %s274 = sphi 0, %s271
      %s275 = sphi 0, %s274
      %s291 = sphi 0, %s275
    $region4: #{tpu_custom_call.1} parent=1 // loop_header_branch
      %23 = sbr.rel (%p21) target = $region8
    $region5: #{tpu_custom_call.1} parent=1 // loop_body
      %s25 = ssub.s32 %s20, 1
      %s26 = ssub.s32 %s20, 2
      %s27 = sadd.s32 %s20, 1
      %s28 = ssub.s32 %s20, %s27
      %p29 = scmp.eq.s32.totalorder %s28, 0
      %s31 = sadd.s32 %s30, 1
      %s32 = scalar_select %p29, %s30, %s31
      %p35 = pneg %p29
      %p36 = scmp.eq.s32.totalorder %s20, 1
      %p37 = por %p35, %p36
      %p38 = scmp.ne.s32.totalorder %s30, %s33
      %p39 = scmp.eq.s32.totalorder %s20, 0
      %p40 = por %p38, %p39
      %p41 = scmp.ne.s32.totalorder %s30, %s33
      %p42 = scmp.eq.s32.totalorder %s25, 1
      %p43 = por %p41, %p42
      %p44 = scmp.ne.s32.totalorder %s33, %s34
      %p45 = scmp.eq.s32.totalorder %s25, 0
      %p46 = por %p44, %p45
      %p47 = scmp.ne.s32.totalorder %s33, %s34
      %p48 = scmp.eq.s32.totalorder %s26, 1
      %p49 = por %p47, %p48
      %p51 = scmp.ne.s32.totalorder %s34, %s50
      %p52 = scmp.eq.s32.totalorder %s26, 0
      %p53 = por %p51, %p52
      %s54 = ssub.s32 %s20, %s27
      %p55 = scmp.eq.s32.totalorder %s54, 0
      %s57 = sadd.s32 %s56, 1
      %s58 = scalar_select %p55, %s56, %s57
      %p61 = pneg %p55
      %p62 = scmp.eq.s32.totalorder %s20, 1
      %p63 = por %p61, %p62
      %p64 = scmp.ne.s32.totalorder %s56, %s59
      %p65 = scmp.eq.s32.totalorder %s20, 0
      %p66 = por %p64, %p65
      %p67 = scmp.ne.s32.totalorder %s56, %s59
      %p68 = scmp.eq.s32.totalorder %s25, 1
      %p69 = por %p67, %p68
      %p70 = scmp.ne.s32.totalorder %s59, %s60
      %p71 = scmp.eq.s32.totalorder %s25, 0
      %p72 = por %p70, %p71
      %p73 = scmp.ne.s32.totalorder %s59, %s60
      %p74 = scmp.eq.s32.totalorder %s26, 1
      %p75 = por %p73, %p74
      %p77 = scmp.ne.s32.totalorder %s60, %s76
      %p78 = scmp.eq.s32.totalorder %s26, 0
      %p79 = por %p77, %p78
      %s81 = sadd.s32 %s80, 1
      %p84 = scmp.eq.s32.totalorder %s20, 1
      %p85 = scmp.ne.s32.totalorder %s80, %s82
      %p86 = scmp.eq.s32.totalorder %s20, 0
      %p87 = por %p85, %p86
      %p88 = scmp.ne.s32.totalorder %s80, %s82
      %p89 = scmp.eq.s32.totalorder %s25, 1
      %p90 = por %p88, %p89
      %p91 = scmp.ne.s32.totalorder %s82, %s83
      %p92 = scmp.eq.s32.totalorder %s25, 0
      %p93 = por %p91, %p92
      %p94 = scmp.ne.s32.totalorder %s82, %s83
      %p95 = scmp.eq.s32.totalorder %s26, 1
      %p96 = por %p94, %p95
      %p98 = scmp.ne.s32.totalorder %s83, %s97
      %p99 = scmp.eq.s32.totalorder %s26, 0
      %p100 = por %p98, %p99
      %s102 = sadd.s32 %s101, 1
      %p105 = scmp.eq.s32.totalorder %s20, 1
      %p106 = scmp.ne.s32.totalorder %s101, %s103
      %p107 = scmp.eq.s32.totalorder %s20, 0
      %p108 = por %p106, %p107
      %p109 = scmp.ne.s32.totalorder %s101, %s103
      %p110 = scmp.eq.s32.totalorder %s25, 1
      %p111 = por %p109, %p110
      %p112 = scmp.ne.s32.totalorder %s103, %s104
      %p113 = scmp.eq.s32.totalorder %s25, 0
      %p114 = por %p112, %p113
      %p115 = scmp.ne.s32.totalorder %s103, %s104
      %p116 = scmp.eq.s32.totalorder %s26, 1
      %p117 = por %p115, %p116
      %p119 = scmp.ne.s32.totalorder %s104, %s118
      %p120 = scmp.eq.s32.totalorder %s26, 0
      %p121 = por %p119, %p120
      %s123 = sadd.s32 %s122, 1
      %p126 = scmp.eq.s32.totalorder %s20, 1
      %p127 = scmp.ne.s32.totalorder %s122, %s124
      %p128 = scmp.eq.s32.totalorder %s20, 0
      %p129 = por %p127, %p128
      %p130 = scmp.ne.s32.totalorder %s122, %s124
      %p131 = scmp.eq.s32.totalorder %s25, 1
      %p132 = por %p130, %p131
      %p133 = scmp.ne.s32.totalorder %s124, %s125
      %p134 = scmp.eq.s32.totalorder %s25, 0
      %p135 = por %p133, %p134
      %p136 = scmp.ne.s32.totalorder %s124, %s125
      %p137 = scmp.eq.s32.totalorder %s26, 1
      %p138 = por %p136, %p137
      %p140 = scmp.ne.s32.totalorder %s125, %s139
      %p141 = scmp.eq.s32.totalorder %s26, 0
      %p142 = por %p140, %p141
      %s144 = sadd.s32 %s143, 1
      %p147 = scmp.eq.s32.totalorder %s20, 1
      %p148 = scmp.ne.s32.totalorder %s143, %s145
      %p149 = scmp.eq.s32.totalorder %s20, 0
      %p150 = por %p148, %p149
      %p151 = scmp.ne.s32.totalorder %s143, %s145
      %p152 = scmp.eq.s32.totalorder %s25, 1
      %p153 = por %p151, %p152
      %p154 = scmp.ne.s32.totalorder %s145, %s146
      %p155 = scmp.eq.s32.totalorder %s25, 0
      %p156 = por %p154, %p155
      %p157 = scmp.ne.s32.totalorder %s145, %s146
      %p158 = scmp.eq.s32.totalorder %s26, 1
      %p159 = por %p157, %p158
      %p161 = scmp.ne.s32.totalorder %s146, %s160
      %p162 = scmp.eq.s32.totalorder %s26, 0
      %p163 = por %p161, %p162
      %s165 = sadd.s32 %s164, 1
      %p168 = scmp.eq.s32.totalorder %s20, 1
      %p169 = scmp.ne.s32.totalorder %s164, %s166
      %p170 = scmp.eq.s32.totalorder %s20, 0
      %p171 = por %p169, %p170
      %p172 = scmp.ne.s32.totalorder %s164, %s166
      %p173 = scmp.eq.s32.totalorder %s25, 1
      %p174 = por %p172, %p173
      %p175 = scmp.ne.s32.totalorder %s166, %s167
      %p176 = scmp.eq.s32.totalorder %s25, 0
      %p177 = por %p175, %p176
      %p178 = scmp.ne.s32.totalorder %s166, %s167
      %p179 = scmp.eq.s32.totalorder %s26, 1
      %p180 = por %p178, %p179
      %p182 = scmp.ne.s32.totalorder %s167, %s181
      %p183 = scmp.eq.s32.totalorder %s26, 0
      %p184 = por %p182, %p183
      %s186 = sadd.s32 %s185, 1
      %p189 = scmp.eq.s32.totalorder %s20, 1
      %p190 = scmp.ne.s32.totalorder %s185, %s187
      %p191 = scmp.eq.s32.totalorder %s20, 0
      %p192 = por %p190, %p191
      %p193 = scmp.ne.s32.totalorder %s185, %s187
      %p194 = scmp.eq.s32.totalorder %s25, 1
      %p195 = por %p193, %p194
      %p196 = scmp.ne.s32.totalorder %s187, %s188
      %p197 = scmp.eq.s32.totalorder %s25, 0
      %p198 = por %p196, %p197
      %p199 = scmp.ne.s32.totalorder %s187, %s188
      %p200 = scmp.eq.s32.totalorder %s26, 1
      %p201 = por %p199, %p200
      %p203 = scmp.ne.s32.totalorder %s188, %s202
      %p204 = scmp.eq.s32.totalorder %s26, 0
      %p205 = por %p203, %p204
      %s207 = sadd.s32 %s206, 1
      %p210 = scmp.eq.s32.totalorder %s20, 1
      %p211 = scmp.ne.s32.totalorder %s206, %s208
      %p212 = scmp.eq.s32.totalorder %s20, 0
      %p213 = por %p211, %p212
      %p214 = scmp.ne.s32.totalorder %s206, %s208
      %p215 = scmp.eq.s32.totalorder %s25, 1
      %p216 = por %p214, %p215
      %p217 = scmp.ne.s32.totalorder %s208, %s209
      %p218 = scmp.eq.s32.totalorder %s25, 0
      %p219 = por %p217, %p218
      %p220 = scmp.ne.s32.totalorder %s208, %s209
      %p221 = scmp.eq.s32.totalorder %s26, 1
      %p222 = por %p220, %p221
      %p224 = scmp.ne.s32.totalorder %s209, %s223
      %p225 = scmp.eq.s32.totalorder %s26, 0
      %p226 = por %p224, %p225
      %s228 = sadd.s32 %s227, 1
      %p231 = scmp.eq.s32.totalorder %s20, 1
      %p232 = scmp.ne.s32.totalorder %s227, %s229
      %p233 = scmp.eq.s32.totalorder %s20, 0
      %p234 = por %p232, %p233
      %p235 = scmp.ne.s32.totalorder %s227, %s229
      %p236 = scmp.eq.s32.totalorder %s25, 1
      %p237 = por %p235, %p236
      %p238 = scmp.ne.s32.totalorder %s229, %s230
      %p239 = scmp.eq.s32.totalorder %s25, 0
      %p240 = por %p238, %p239
      %p241 = scmp.ne.s32.totalorder %s229, %s230
      %p242 = scmp.eq.s32.totalorder %s26, 1
      %p243 = por %p241, %p242
      %p245 = scmp.ne.s32.totalorder %s230, %s244
      %p246 = scmp.eq.s32.totalorder %s26, 0
      %p247 = por %p245, %p246
      %s249 = sadd.s32 %s248, 1
      %p252 = scmp.eq.s32.totalorder %s20, 1
      %p253 = scmp.ne.s32.totalorder %s248, %s250
      %p254 = scmp.eq.s32.totalorder %s20, 0
      %p255 = por %p253, %p254
      %p256 = scmp.ne.s32.totalorder %s248, %s250
      %p257 = scmp.eq.s32.totalorder %s25, 1
      %p258 = por %p256, %p257
      %p259 = scmp.ne.s32.totalorder %s250, %s251
      %p260 = scmp.eq.s32.totalorder %s25, 0
      %p261 = por %p259, %p260
      %p262 = scmp.ne.s32.totalorder %s250, %s251
      %p263 = scmp.eq.s32.totalorder %s26, 1
      %p264 = por %p262, %p263
      %p266 = scmp.ne.s32.totalorder %s251, %s265
      %p267 = scmp.eq.s32.totalorder %s26, 0
      %p268 = por %p266, %p267
      %s269 = ssub.s32 %s20, %s27
      %p270 = scmp.eq.s32.totalorder %s269, 0
      %s272 = sadd.s32 %s271, 1
      %s273 = scalar_select %p270, %s271, %s272
      %p276 = pneg %p270
      %p277 = scmp.eq.s32.totalorder %s20, 1
      %p278 = por %p276, %p277
      %p279 = scmp.ne.s32.totalorder %s271, %s274
      %p280 = scmp.eq.s32.totalorder %s20, 0
      %p281 = por %p279, %p280
      %p282 = scmp.ne.s32.totalorder %s271, %s274
      %p283 = scmp.eq.s32.totalorder %s25, 1
      %p284 = por %p282, %p283
      %p285 = scmp.ne.s32.totalorder %s274, %s275
      %p286 = scmp.eq.s32.totalorder %s25, 0
      %p287 = por %p285, %p286
      %p288 = scmp.ne.s32.totalorder %s274, %s275
      %p289 = scmp.eq.s32.totalorder %s26, 1
      %p290 = por %p288, %p289
      %p292 = scmp.ne.s32.totalorder %s275, %s291
      %p293 = scmp.eq.s32.totalorder %s26, 0
      %p294 = por %p292, %p293
      %p295 = scmp.le.s32.totalorder 1, %s20
      %p296 = scmp.lt.s32.totalorder %s20, 3
      %p297 = pnand %p295, %p296
      %p298 = pneg %p297
      // Predicated region
      $region9: #{tpu_custom_call.1} parent=5 // pred_check
        _
      $region10: #{tpu_custom_call.1} parent=5 // pred_check_branch
        %300 = sbr.rel (%p297) target = $region12
      $region11: #{tpu_custom_call.1} parent=5 // pred_region
        %s301 = ssub.s32 %s20, 1
        // Predicated region
        $region13: #{tpu_custom_call.1} parent=11 // pred_check
          %p302 = pneg %p93
        $region14: #{tpu_custom_call.1} parent=11 // pred_check_branch
          %304 = sbr.rel (%p302) target = $region16
        $region15: #{tpu_custom_call.1} parent=11 // pred_region
          _
        $region16: #{tpu_custom_call.1} parent=11 // pred_fallthru
          _
        // Predicated region
        $region17: #{tpu_custom_call.1} parent=11 // pred_check
          %p305 = pneg %p114
        $region18: #{tpu_custom_call.1} parent=11 // pred_check_branch
          %307 = sbr.rel (%p305) target = $region20
        $region19: #{tpu_custom_call.1} parent=11 // pred_region
          _
        $region20: #{tpu_custom_call.1} parent=11 // pred_fallthru
          _
        // Predicated region
        $region21: #{tpu_custom_call.1} parent=11 // pred_check
          %p308 = pneg %p135
        $region22: #{tpu_custom_call.1} parent=11 // pred_check_branch
          %310 = sbr.rel (%p308) target = $region24
        $region23: #{tpu_custom_call.1} parent=11 // pred_region
          _
        $region24: #{tpu_custom_call.1} parent=11 // pred_fallthru
          _
        // Predicated region
        $region25: #{tpu_custom_call.1} parent=11 // pred_check
          %p311 = pneg %p156
        $region26: #{tpu_custom_call.1} parent=11 // pred_check_branch
          %313 = sbr.rel (%p311) target = $region28
        $region27: #{tpu_custom_call.1} parent=11 // pred_region
          _
        $region28: #{tpu_custom_call.1} parent=11 // pred_fallthru
          _
        // Predicated region
        $region29: #{tpu_custom_call.1} parent=11 // pred_check
          %p314 = pneg %p177
        $region30: #{tpu_custom_call.1} parent=11 // pred_check_branch
          %316 = sbr.rel (%p314) target = $region32
        $region31: #{tpu_custom_call.1} parent=11 // pred_region
          _
        $region32: #{tpu_custom_call.1} parent=11 // pred_fallthru
          _
        // Predicated region
        $region33: #{tpu_custom_call.1} parent=11 // pred_check
          %p317 = pneg %p198
        $region34: #{tpu_custom_call.1} parent=11 // pred_check_branch
          %319 = sbr.rel (%p317) target = $region36
        $region35: #{tpu_custom_call.1} parent=11 // pred_region
          _
        $region36: #{tpu_custom_call.1} parent=11 // pred_fallthru
          _
        // Predicated region
        $region37: #{tpu_custom_call.1} parent=11 // pred_check
          %p320 = pneg %p219
        $region38: #{tpu_custom_call.1} parent=11 // pred_check_branch
          %322 = sbr.rel (%p320) target = $region40
        $region39: #{tpu_custom_call.1} parent=11 // pred_region
          _
        $region40: #{tpu_custom_call.1} parent=11 // pred_fallthru
          _
        // Predicated region
        $region41: #{tpu_custom_call.1} parent=11 // pred_check
          %p323 = pneg %p240
        $region42: #{tpu_custom_call.1} parent=11 // pred_check_branch
          %325 = sbr.rel (%p323) target = $region44
        $region43: #{tpu_custom_call.1} parent=11 // pred_region
          _
        $region44: #{tpu_custom_call.1} parent=11 // pred_fallthru
          _
        // Predicated region
        $region45: #{tpu_custom_call.1} parent=11 // pred_check
          %p326 = pneg %p261
        $region46: #{tpu_custom_call.1} parent=11 // pred_check_branch
          %328 = sbr.rel (%p326) target = $region48
        $region47: #{tpu_custom_call.1} parent=11 // pred_region
          _
        $region48: #{tpu_custom_call.1} parent=11 // pred_fallthru
          _
      $region12: #{tpu_custom_call.1} parent=5 // pred_fallthru
        _
      %p329 = scmp.lt.s32.totalorder %s20, 2
      // Predicated region
      $region49: #{tpu_custom_call.1} parent=5 // pred_check
        %p330 = pneg %p329
      $region50: #{tpu_custom_call.1} parent=5 // pred_check_branch
        %332 = sbr.rel (%p330) target = $region52
      $region51: #{tpu_custom_call.1} parent=5 // pred_region
        // Predicated region
        $region53: #{tpu_custom_call.1} parent=51 // pred_check
          %p333 = pneg %p40
        $region54: #{tpu_custom_call.1} parent=51 // pred_check_branch
          %335 = sbr.rel (%p333) target = $region56
        $region55: #{tpu_custom_call.1} parent=51 // pred_region
          %p336 = scmp.lt.s32.totalorder %s20, 1
          %s337 = scalar_select %p336, %s20, 1
          %s338 = smul.addr %s337, 16
          %s339 = smul.addr %s338, 8
          %s340 = scalar_lea.vmem %s0, %s339
        $region56: #{tpu_custom_call.1} parent=51 // pred_fallthru
          _
        // Predicated region
        $region57: #{tpu_custom_call.1} parent=51 // pred_check
          %p341 = pneg %p66
        $region58: #{tpu_custom_call.1} parent=51 // pred_check_branch
          %343 = sbr.rel (%p341) target = $region60
        $region59: #{tpu_custom_call.1} parent=51 // pred_region
          %p344 = scmp.lt.s32.totalorder %s20, 1
          %s345 = scalar_select %p344, %s20, 1
          %s346 = smul.addr %s345, 8
          %s347 = smul.addr %s346, 8
          %s348 = scalar_lea.vmem %s1, %s347
        $region60: #{tpu_custom_call.1} parent=51 // pred_fallthru
          _
      $region52: #{tpu_custom_call.1} parent=5 // pred_fallthru
        _
      %p349 = scmp.le.s32.totalorder 1, %s20
      %p350 = scmp.lt.s32.totalorder %s20, 3
      %p351 = pnand %p349, %p350
      %p352 = pneg %p351
      // Predicated region
      $region61: #{tpu_custom_call.1} parent=5 // pred_check
        _
      $region62: #{tpu_custom_call.1} parent=5 // pred_check_branch
        %354 = sbr.rel (%p351) target = $region64
      $region63: #{tpu_custom_call.1} parent=5 // pred_region
        %s355 = ssub.s32 %s20, 1
        %p356 = scmp.lt.s32.totalorder %s25, 1
        %s357 = scalar_select %p356, %s25, 1
        %s358 = smul.addr %s357, 16
        %s359 = smul.addr %s358, 8
        %s360 = scalar_lea.vmem %s0, %s359
        %p361 = pneg %p46
        %p362 = pneg %p43
        %p363 = scmp.lt.s32.totalorder %s25, 1
        %s364 = scalar_select %p363, %s25, 1
        %s365 = smul.addr %s364, 8
        %s366 = smul.addr %s365, 8
        %s367 = scalar_lea.vmem %s1, %s366
        %p368 = pneg %p72
        %p369 = pneg %p69
        %p370 = pneg %p93
        %p371 = pneg %p90
        %p372 = pneg %p114
        %p373 = pneg %p111
        %p374 = pneg %p135
        %p375 = pneg %p132
        %p376 = pneg %p156
        %p377 = pneg %p153
        %p378 = pneg %p177
        %p379 = pneg %p174
        %p380 = pneg %p198
        %p381 = pneg %p195
        %p382 = pneg %p219
        %p383 = pneg %p216
        %p384 = pneg %p240
        %p385 = pneg %p237
        %p386 = pneg %p261
        %p387 = pneg %p258
        %p388 = pneg %p287
        %p389 = pneg %p284
        %s390 = sand.u32 %s274, 1
        %s391 = scalar_lea.sflag [#allocation3], %s390
        %s392 = sand.u32 %s274, 1
        %s393 = smul.addr %s392, 128
        %s394 = scalar_lea.vmem [#allocation2], %s393
        %p395 = scmp.lt.s32.totalorder %s25, 1
        %s396 = scalar_select %p395, %s25, 1
        %s397 = smul.addr %s396, 16
        %s398 = smul.addr %s397, 8
        %s399 = scalar_lea.vmem %s0, %s398
        %p400 = scmp.lt.s32.totalorder %s25, 1
        %s401 = scalar_select %p400, %s25, 1
        %s402 = smul.addr %s401, 8
        %s403 = smul.addr %s402, 8
        %s404 = scalar_lea.vmem %s1, %s403
        %v405 = vld [vmem:[%s2] sm:$0xff]
        %v406 = vld [vmem:[%s2 + $0x8] sm:$0xff]
        %v407 = vld [vmem:[%s2 + $0x10] sm:$0xff]
        %v408 = vld [vmem:[%s2 + $0x18] sm:$0xff]
        %v409 = vld [vmem:[%s2 + $0x20] sm:$0xff]
        %v410 = vld [vmem:[%s2 + $0x28] sm:$0xff]
        %v411 = vld [vmem:[%s2 + $0x30] sm:$0xff]
        %v412 = vld [vmem:[%s2 + $0x38] sm:$0xff]
        %v413 = vld [vmem:[%s3] sm:$0xff]
        %v414 = vld [vmem:[%s3 + $0x8] sm:$0xff]
        %v415 = vld [vmem:[%s3 + $0x10] sm:$0xff]
        %v416 = vld [vmem:[%s3 + $0x18] sm:$0xff]
        %v417 = vld [vmem:[%s4] sm:$0xff]
        %v418 = vld [vmem:[%s4 + $0x8] sm:$0xff]
        %v419 = vld [vmem:[%s4 + $0x10] sm:$0xff]
        %v420 = vld [vmem:[%s4 + $0x18] sm:$0xff]
        %v421 = vld [vmem:[%s4 + $0x20] sm:$0xff]
        %v422 = vld [vmem:[%s4 + $0x28] sm:$0xff]
        %v423 = vld [vmem:[%s4 + $0x30] sm:$0xff]
        %v424 = vld [vmem:[%s4 + $0x38] sm:$0xff]
        %v425 = vld [vmem:[%s5] sm:$0xff]
        %v426 = vld [vmem:[%s5 + $0x8] sm:$0xff]
        %v427 = vld [vmem:[%s5 + $0x10] sm:$0xff]
        %v428 = vld [vmem:[%s5 + $0x18] sm:$0xff]
        %v429 = vld [vmem:[%s5 + $0x20] sm:$0xff]
        %v430 = vld [vmem:[%s5 + $0x28] sm:$0xff]
        %v431 = vld [vmem:[%s5 + $0x30] sm:$0xff]
        %v432 = vld [vmem:[%s5 + $0x38] sm:$0xff]
        %v433 = vld [vmem:[%s7] sm:$0xff]
        %v434 = vld [vmem:[%s7 + $0x8] sm:$0xff]
        %v435 = vld [vmem:[%s7 + $0x10] sm:$0xff]
        %v436 = vld [vmem:[%s7 + $0x18] sm:$0xff]
        %v437 = vld [vmem:[%s7 + $0x20] sm:$0xff]
        %v438 = vld [vmem:[%s7 + $0x28] sm:$0xff]
        %v439 = vld [vmem:[%s7 + $0x30] sm:$0xff]
        %v440 = vld [vmem:[%s7 + $0x38] sm:$0xff]
        %v441 = vld [vmem:[%s8] sm:$0xff]
        %v442 = vld [vmem:[%s8 + $0x8] sm:$0xff]
        %v443 = vld [vmem:[%s8 + $0x10] sm:$0xff]
        %v444 = vld [vmem:[%s8 + $0x18] sm:$0xff]
        %v445 = vld [vmem:[%s8 + $0x20] sm:$0xff]
        %v446 = vld [vmem:[%s8 + $0x28] sm:$0xff]
        %v447 = vld [vmem:[%s8 + $0x30] sm:$0xff]
        %v448 = vld [vmem:[%s8 + $0x38] sm:$0xff]
        %v449 = vld [vmem:[%s6] sm:$0xff]
        %v450 = vld [vmem:[%s6 + $0x8] sm:$0xff]
        %v451 = vld [vmem:[%s6 + $0x10] sm:$0xff]
        %v452 = vld [vmem:[%s6 + $0x18] sm:$0xff]
        %v453 = vld [vmem:[%s6 + $0x20] sm:$0xff]
        %v454 = vld [vmem:[%s6 + $0x28] sm:$0xff]
        %v455 = vld [vmem:[%s6 + $0x30] sm:$0xff]
        %v456 = vld [vmem:[%s6 + $0x38] sm:$0xff]
        %v457 = vld [vmem:[%s9] sm:$0xff]
        %v458 = vld [vmem:[%s9 + $0x8] sm:$0xff]
        %v459 = vld [vmem:[%s9 + $0x10] sm:$0xff]
        %v460 = vld [vmem:[%s9 + $0x18] sm:$0xff]
        %v461 = vld [vmem:[%s9 + $0x20] sm:$0xff]
        %v462 = vld [vmem:[%s9 + $0x28] sm:$0xff]
        %v463 = vld [vmem:[%s9 + $0x30] sm:$0xff]
        %v464 = vld [vmem:[%s9 + $0x38] sm:$0xff]
        %v465 = vld [vmem:[%s10] sm:$0xff]
        %v466 = vld [vmem:[%s10 + $0x8] sm:$0xff]
        %v467 = vld [vmem:[%s10 + $0x10] sm:$0xff]
        %v468 = vld [vmem:[%s10 + $0x18] sm:$0xff]
        %v469 = vld [vmem:[%s10 + $0x20] sm:$0xff]
        %v470 = vld [vmem:[%s10 + $0x28] sm:$0xff]
        %v471 = vld [vmem:[%s10 + $0x30] sm:$0xff]
        %v472 = vld [vmem:[%s10 + $0x38] sm:$0xff]
        %v473 = vld [vmem:[%s399] sm:$0xff]
        %v474 = vld [vmem:[%s399 + $0x8] sm:$0xff]
        %v475 = vld [vmem:[%s399 + $0x10] sm:$0xff]
        %v476 = vld [vmem:[%s399 + $0x18] sm:$0xff]
        %v477 = vld [vmem:[%s399 + $0x20] sm:$0xff]
        %v478 = vld [vmem:[%s399 + $0x28] sm:$0xff]
        %v479 = vld [vmem:[%s399 + $0x30] sm:$0xff]
        %v480 = vld [vmem:[%s399 + $0x38] sm:$0xff]
        %v481 = vld [vmem:[%s399 + $0x40] sm:$0xff]
        %v482 = vld [vmem:[%s399 + $0x48] sm:$0xff]
        %v483 = vld [vmem:[%s399 + $0x50] sm:$0xff]
        %v484 = vld [vmem:[%s399 + $0x58] sm:$0xff]
        %v485 = vld [vmem:[%s399 + $0x60] sm:$0xff]
        %v486 = vld [vmem:[%s399 + $0x68] sm:$0xff]
        %v487 = vld [vmem:[%s399 + $0x70] sm:$0xff]
        %v488 = vld [vmem:[%s399 + $0x78] sm:$0xff]
        %v489 = vmul.f32 %v473, %v473
        %v490 = vmul.f32 %v474, %v474
        %v491 = vmul.f32 %v475, %v475
        %v492 = vmul.f32 %v476, %v476
        %v493 = vmul.f32 %v477, %v477
        %v494 = vmul.f32 %v478, %v478
        %v495 = vmul.f32 %v479, %v479
        %v496 = vmul.f32 %v480, %v480
        %v497 = vmul.f32 %v481, %v481
        %v498 = vmul.f32 %v482, %v482
        %v499 = vmul.f32 %v483, %v483
        %v500 = vmul.f32 %v484, %v484
        %v501 = vmul.f32 %v485, %v485
        %v502 = vmul.f32 %v486, %v486
        %v503 = vmul.f32 %v487, %v487
        %v504 = vmul.f32 %v488, %v488
        %vm505 = vcmask 523264
        %v507 = vsel %vm505, %v413, 0
        %v510 = vsel %vm505, %v414, 0
        %v513 = vsel %vm505, %v415, 0
        %v516 = vsel %vm505, %v416, 0
        %518 = vmatprep.subr.mxu0 %v474
        %519 = vmatpush1.msra.mxu0 %v473
        %520 = vmatprep.subr.mxu0 %v476
        %521 = vmatpush1.msra.mxu0 %v475
        %522 = vmatprep.subr.mxu0 %v478
        %523 = vmatpush1.msra.mxu0 %v477
        %524 = vmatprep.subr.mxu0 %v480
        %525 = vmatpush1.msra.mxu0 %v479
        %526 = vmatprep.subr.mxu0 %v482
        %527 = vmatpush1.msra.mxu0 %v481
        %528 = vmatprep.subr.mxu0 %v484
        %529 = vmatpush1.msra.mxu0 %v483
        %530 = vmatprep.subr.mxu0 %v486
        %531 = vmatpush1.msra.mxu0 %v485
        %532 = vmatprep.subr.mxu0 %v488
        %533 = vmatpush1.msra.mxu0 %v487
        %534 = vmatprep.subr.mxu0 0.0
        %535 = vmatpush1.msra.mxu0 0.0
        %536 = vmatprep.subr.mxu0 0.0
        %537 = vmatpush1.msra.mxu0 0.0
        %538 = vmatprep.subr.mxu0 0.0
        %539 = vmatpush1.msra.mxu0 0.0
        %540 = vmatprep.subr.mxu0 0.0
        %541 = vmatpush1.msra.mxu0 0.0
        %542 = vmatprep.subr.mxu0 0.0
        %543 = vmatpush1.msra.mxu0 0.0
        %544 = vmatprep.subr.mxu0 0.0
        %545 = vmatpush1.msra.mxu0 0.0
        %546 = vmatprep.subr.mxu0 0.0
        %547 = vmatpush1.msra.mxu0 0.0
        %548 = vmatprep.subr.mxu0 0.0
        %549 = vmatpush1.msra.mxu0 0.0
        %550 = vmatprep.subr.mxu0 0.0
        %551 = vmatpush1.msra.mxu0 0.0
        %552 = vmatprep.subr.mxu0 0.0
        %553 = vmatpush1.msra.mxu0 0.0
        %554 = vmatprep.subr.mxu0 0.0
        %555 = vmatpush1.msra.mxu0 0.0
        %556 = vmatprep.subr.mxu0 0.0
        %557 = vmatpush1.msra.mxu0 0.0
        %558 = vmatprep.subr.mxu0 0.0
        %559 = vmatpush1.msra.mxu0 0.0
        %560 = vmatprep.subr.mxu0 0.0
        %561 = vmatpush1.msra.mxu0 0.0
        %562 = vmatprep.subr.mxu0 0.0
        %563 = vmatpush1.msra.mxu0 0.0
        %564 = vmatprep.subr.mxu0 0.0
        %565 = vmatpush1.msra.mxu0 0.0
        %566 = vmatprep.subr.mxu0 0.0
        %567 = vmatpush1.msra.mxu0 0.0
        %568 = vmatprep.subr.mxu0 0.0
        %569 = vmatpush1.msra.mxu0 0.0
        %570 = vmatprep.subr.mxu0 0.0
        %571 = vmatpush1.msra.mxu0 0.0
        %572 = vmatprep.subr.mxu0 0.0
        %573 = vmatpush1.msra.mxu0 0.0
        %574 = vmatprep.subr.mxu0 0.0
        %575 = vmatpush1.msra.mxu0 0.0
        %576 = vmatprep.subr.mxu0 0.0
        %577 = vmatpush1.msra.mxu0 0.0
        %578 = vmatprep.subr.mxu0 0.0
        %579 = vmatpush1.msra.mxu0 0.0
        %580 = vmatprep.subr.mxu0 0.0
        %581 = vmatpush1.msra.mxu0 0.0
        %582 = vmatprep.mubr.f32.mxu0 0.0
        %583 = vmatmul.mubr.f32.gmra.mrb[0].mxu0 %v507
        %v584 = vpop.f32.mrb[0].mxu0
        %v585 = vadd.f32 0.0, %v584
        %v586 = vpop.f32.mrb[0].mxu0
        %v587 = vadd.f32 0.0, %v586
        %588 = vmatprep.mubr.f32.mxu0 0.0
        %589 = vmatmul.mubr.f32.gmra.mrb[0].mxu0 %v510
        %v590 = vpop.f32.mrb[0].mxu0
        %v591 = vadd.f32 0.0, %v590
        %v592 = vpop.f32.mrb[0].mxu0
        %v593 = vadd.f32 0.0, %v592
        %594 = vmatprep.mubr.f32.mxu0 0.0
        %595 = vmatmul.mubr.f32.gmra.mrb[0].mxu0 %v513
        %v596 = vpop.f32.mrb[0].mxu0
        %v597 = vadd.f32 0.0, %v596
        %v598 = vpop.f32.mrb[0].mxu0
        %v599 = vadd.f32 0.0, %v598
        %600 = vmatprep.mubr.f32.mxu0 0.0
        %601 = vmatmul.mubr.f32.gmra.mrb[0].mxu0 %v516
        %v602 = vpop.f32.mrb[0].mxu0
        %v603 = vadd.f32 0.0, %v602
        %v604 = vpop.f32.mrb[0].mxu0
        %v605 = vadd.f32 0.0, %v604
        %606 = vdwg.mxu0
        %607 = vmatprep.subr.mxu0 %v490
        %608 = vmatpush1.msra.mxu0 %v489
        %609 = vmatprep.subr.mxu0 %v492
        %610 = vmatpush1.msra.mxu0 %v491
        %611 = vmatprep.subr.mxu0 %v494
        %612 = vmatpush1.msra.mxu0 %v493
        %613 = vmatprep.subr.mxu0 %v496
        %614 = vmatpush1.msra.mxu0 %v495
        %615 = vmatprep.subr.mxu0 %v498
        %616 = vmatpush1.msra.mxu0 %v497
        %617 = vmatprep.subr.mxu0 %v500
        %618 = vmatpush1.msra.mxu0 %v499
        %619 = vmatprep.subr.mxu0 %v502
        %620 = vmatpush1.msra.mxu0 %v501
        %621 = vmatprep.subr.mxu0 %v504
        %622 = vmatpush1.msra.mxu0 %v503
        %623 = vmatprep.subr.mxu0 0.0
        %624 = vmatpush1.msra.mxu0 0.0
        %625 = vmatprep.subr.mxu0 0.0
        %626 = vmatpush1.msra.mxu0 0.0
        %627 = vmatprep.subr.mxu0 0.0
        %628 = vmatpush1.msra.mxu0 0.0
        %629 = vmatprep.subr.mxu0 0.0
        %630 = vmatpush1.msra.mxu0 0.0
        %631 = vmatprep.subr.mxu0 0.0
        %632 = vmatpush1.msra.mxu0 0.0
        %633 = vmatprep.subr.mxu0 0.0
        %634 = vmatpush1.msra.mxu0 0.0
        %635 = vmatprep.subr.mxu0 0.0
        %636 = vmatpush1.msra.mxu0 0.0
        %637 = vmatprep.subr.mxu0 0.0
        %638 = vmatpush1.msra.mxu0 0.0
        %639 = vmatprep.subr.mxu0 0.0
        %640 = vmatpush1.msra.mxu0 0.0
        %641 = vmatprep.subr.mxu0 0.0
        %642 = vmatpush1.msra.mxu0 0.0
        %643 = vmatprep.subr.mxu0 0.0
        %644 = vmatpush1.msra.mxu0 0.0
        %645 = vmatprep.subr.mxu0 0.0
        %646 = vmatpush1.msra.mxu0 0.0
        %647 = vmatprep.subr.mxu0 0.0
        %648 = vmatpush1.msra.mxu0 0.0
        %649 = vmatprep.subr.mxu0 0.0
        %650 = vmatpush1.msra.mxu0 0.0
        %651 = vmatprep.subr.mxu0 0.0
        %652 = vmatpush1.msra.mxu0 0.0
        %653 = vmatprep.subr.mxu0 0.0
        %654 = vmatpush1.msra.mxu0 0.0
        %655 = vmatprep.subr.mxu0 0.0
        %656 = vmatpush1.msra.mxu0 0.0
        %657 = vmatprep.subr.mxu0 0.0
        %658 = vmatpush1.msra.mxu0 0.0
        %659 = vmatprep.subr.mxu0 0.0
        %660 = vmatpush1.msra.mxu0 0.0
        %661 = vmatprep.subr.mxu0 0.0
        %662 = vmatpush1.msra.mxu0 0.0
        %663 = vmatprep.subr.mxu0 0.0
        %664 = vmatpush1.msra.mxu0 0.0
        %665 = vmatprep.subr.mxu0 0.0
        %666 = vmatpush1.msra.mxu0 0.0
        %667 = vmatprep.subr.mxu0 0.0
        %668 = vmatpush1.msra.mxu0 0.0
        %669 = vmatprep.subr.mxu0 0.0
        %670 = vmatpush1.msra.mxu0 0.0
        %671 = vmatprep.mubr.f32.mxu0 0.0
        %672 = vmatmul.mubr.f32.gmra.mrb[0].mxu0 %v507
        %v673 = vpop.f32.mrb[0].mxu0
        %v674 = vadd.f32 0.0, %v673
        %v675 = vpop.f32.mrb[0].mxu0
        %v676 = vadd.f32 0.0, %v675
        %677 = vmatprep.mubr.f32.mxu0 0.0
        %678 = vmatmul.mubr.f32.gmra.mrb[0].mxu0 %v510
        %v679 = vpop.f32.mrb[0].mxu0
        %v680 = vadd.f32 0.0, %v679
        %v681 = vpop.f32.mrb[0].mxu0
        %v682 = vadd.f32 0.0, %v681
        %683 = vmatprep.mubr.f32.mxu0 0.0
        %684 = vmatmul.mubr.f32.gmra.mrb[0].mxu0 %v513
        %v685 = vpop.f32.mrb[0].mxu0
        %v686 = vadd.f32 0.0, %v685
        %v687 = vpop.f32.mrb[0].mxu0
        %v688 = vadd.f32 0.0, %v687
        %689 = vmatprep.mubr.f32.mxu0 0.0
        %690 = vmatmul.mubr.f32.gmra.mrb[0].mxu0 %v516
        %v691 = vpop.f32.mrb[0].mxu0
        %v692 = vadd.f32 0.0, %v691
        %v693 = vpop.f32.mrb[0].mxu0
        %v694 = vadd.f32 0.0, %v693
        %695 = vdwg.mxu0
        %v696 = vadd.f32 %v585, %v587
        %697 = vadd.xlane.f32.xlu0 %v696
        %v698 = vpop.xlane.xlu0 %697
        %v699 = vadd.f32 %v591, %v593
        %700 = vadd.xlane.f32.xlu0 %v699
        %v701 = vpop.xlane.xlu0 %700
        %v702 = vadd.f32 %v597, %v599
        %703 = vadd.xlane.f32.xlu0 %v702
        %v704 = vpop.xlane.xlu0 %703
        %v705 = vadd.f32 %v603, %v605
        %706 = vadd.xlane.f32.xlu0 %v705
        %v707 = vpop.xlane.xlu0 %706
        %v708 = vmul.f32 %v698, 0.001953125
        %v709 = vmul.f32 %v701, 0.001953125
        %v710 = vmul.f32 %v704, 0.001953125
        %v711 = vmul.f32 %v707, 0.001953125
        %v712 = vadd.f32 %v674, %v676
        %713 = vadd.xlane.f32.xlu0 %v712
        %v714 = vpop.xlane.xlu0 %713
        %v715 = vadd.f32 %v680, %v682
        %716 = vadd.xlane.f32.xlu0 %v715
        %v717 = vpop.xlane.xlu0 %716
        %v718 = vadd.f32 %v686, %v688
        %719 = vadd.xlane.f32.xlu0 %v718
        %v720 = vpop.xlane.xlu0 %719
        %v721 = vadd.f32 %v692, %v694
        %722 = vadd.xlane.f32.xlu0 %v721
        %v723 = vpop.xlane.xlu0 %722
        %v724 = vmul.f32 %v714, 0.001953125
        %v725 = vmul.f32 %v717, 0.001953125
        %v726 = vmul.f32 %v720, 0.001953125
        %v727 = vmul.f32 %v723, 0.001953125
        %v728 = vmul.f32 %v708, %v708
        %v729 = vmul.f32 %v709, %v709
        %v730 = vmul.f32 %v710, %v710
        %v731 = vmul.f32 %v711, %v711
        %v732 = vsub.f32 %v724, %v728
        %v733 = vsub.f32 %v725, %v729
        %v734 = vsub.f32 %v726, %v730
        %v735 = vsub.f32 %v727, %v731
        %v736 = vmax.f32 %v732, 0.0
        %v737 = vmax.f32 %v733, 0.0
        %v738 = vmax.f32 %v734, 0.0
        %v739 = vmax.f32 %v735, 0.0
        %v740 = vadd.f32 %v736, 1e-06
        %v741 = vadd.f32 %v737, 1e-06
        %v742 = vadd.f32 %v738, 1e-06
        %v743 = vadd.f32 %v739, 1e-06
        %v744 = vrsqrt.pop %v740
        %v745 = vrsqrt.pop %v741
        %v746 = vrsqrt.pop %v742
        %v747 = vrsqrt.pop %v743
        %vm748 = vcmask 261120
        %v750 = vsel %vm748, %v405, 0
        %v753 = vsel %vm748, %v406, 0
        %v756 = vsel %vm748, %v407, 0
        %v759 = vsel %vm748, %v408, 0
        %v762 = vsel %vm748, %v409, 0
        %v765 = vsel %vm748, %v410, 0
        %v768 = vsel %vm748, %v411, 0
        %v771 = vsel %vm748, %v412, 0
        %773 = vmatprep.subr.mxu0 0.0
        %774 = vmatpush1.msra.mxu0 %v708
        %775 = vmatprep.subr.mxu0 0.0
        %776 = vmatpush1.msra.mxu0 %v709
        %777 = vmatprep.subr.mxu0 0.0
        %778 = vmatpush1.msra.mxu0 %v710
        %779 = vmatprep.subr.mxu0 0.0
        %780 = vmatpush1.msra.mxu0 %v711
        %781 = vmatprep.subr.mxu0 0.0
        %782 = vmatpush1.msra.mxu0 0.0
        %783 = vmatprep.subr.mxu0 0.0
        %784 = vmatpush1.msra.mxu0 0.0
        %785 = vmatprep.subr.mxu0 0.0
        %786 = vmatpush1.msra.mxu0 0.0
        %787 = vmatprep.subr.mxu0 0.0
        %788 = vmatpush1.msra.mxu0 0.0
        %789 = vmatprep.subr.mxu0 0.0
        %790 = vmatpush1.msra.mxu0 0.0
        %791 = vmatprep.subr.mxu0 0.0
        %792 = vmatpush1.msra.mxu0 0.0
        %793 = vmatprep.subr.mxu0 0.0
        %794 = vmatpush1.msra.mxu0 0.0
        %795 = vmatprep.subr.mxu0 0.0
        %796 = vmatpush1.msra.mxu0 0.0
        %797 = vmatprep.subr.mxu0 0.0
        %798 = vmatpush1.msra.mxu0 0.0
        %799 = vmatprep.subr.mxu0 0.0
        %800 = vmatpush1.msra.mxu0 0.0
        %801 = vmatprep.subr.mxu0 0.0
        %802 = vmatpush1.msra.mxu0 0.0
        %803 = vmatprep.subr.mxu0 0.0
        %804 = vmatpush1.msra.mxu0 0.0
        %805 = vmatprep.subr.mxu0 0.0
        %806 = vmatpush1.msra.mxu0 0.0
        %807 = vmatprep.subr.mxu0 0.0
        %808 = vmatpush1.msra.mxu0 0.0
        %809 = vmatprep.subr.mxu0 0.0
        %810 = vmatpush1.msra.mxu0 0.0
        %811 = vmatprep.subr.mxu0 0.0
        %812 = vmatpush1.msra.mxu0 0.0
        %813 = vmatprep.subr.mxu0 0.0
        %814 = vmatpush1.msra.mxu0 0.0
        %815 = vmatprep.subr.mxu0 0.0
        %816 = vmatpush1.msra.mxu0 0.0
        %817 = vmatprep.subr.mxu0 0.0
        %818 = vmatpush1.msra.mxu0 0.0
        %819 = vmatprep.subr.mxu0 0.0
        %820 = vmatpush1.msra.mxu0 0.0
        %821 = vmatprep.subr.mxu0 0.0
        %822 = vmatpush1.msra.mxu0 0.0
        %823 = vmatprep.subr.mxu0 0.0
        %824 = vmatpush1.msra.mxu0 0.0
        %825 = vmatprep.subr.mxu0 0.0
        %826 = vmatpush1.msra.mxu0 0.0
        %827 = vmatprep.subr.mxu0 0.0
        %828 = vmatpush1.msra.mxu0 0.0
        %829 = vmatprep.subr.mxu0 0.0
        %830 = vmatpush1.msra.mxu0 0.0
        %831 = vmatprep.subr.mxu0 0.0
        %832 = vmatpush1.msra.mxu0 0.0
        %833 = vmatprep.subr.mxu0 0.0
        %834 = vmatpush1.msra.mxu0 0.0
        %835 = vmatprep.subr.mxu0 0.0
        %836 = vmatpush1.msra.mxu0 0.0
        %837 = vmatprep.mubr.f32.mxu0 0.0
        %838 = vmatmul.mubr.f32.gmra.mrb[0].mxu0 %v750
        %v839 = vpop.f32.mrb[0].mxu0
        %v840 = vadd.f32 0.0, %v839
        %v841 = vpop.f32.mrb[0].mxu0
        %842 = vmatprep.mubr.f32.mxu0 0.0
        %843 = vmatmul.mubr.f32.gmra.mrb[0].mxu0 %v753
        %v844 = vpop.f32.mrb[0].mxu0
        %v845 = vadd.f32 0.0, %v844
        %v846 = vpop.f32.mrb[0].mxu0
        %847 = vmatprep.mubr.f32.mxu0 0.0
        %848 = vmatmul.mubr.f32.gmra.mrb[0].mxu0 %v756
        %v849 = vpop.f32.mrb[0].mxu0
        %v850 = vadd.f32 0.0, %v849
        %v851 = vpop.f32.mrb[0].mxu0
        %852 = vmatprep.mubr.f32.mxu0 0.0
        %853 = vmatmul.mubr.f32.gmra.mrb[0].mxu0 %v759
        %v854 = vpop.f32.mrb[0].mxu0
        %v855 = vadd.f32 0.0, %v854
        %v856 = vpop.f32.mrb[0].mxu0
        %857 = vmatprep.mubr.f32.mxu0 0.0
        %858 = vmatmul.mubr.f32.gmra.mrb[0].mxu0 %v762
        %v859 = vpop.f32.mrb[0].mxu0
        %v860 = vadd.f32 0.0, %v859
        %v861 = vpop.f32.mrb[0].mxu0
        %862 = vmatprep.mubr.f32.mxu0 0.0
        %863 = vmatmul.mubr.f32.gmra.mrb[0].mxu0 %v765
        %v864 = vpop.f32.mrb[0].mxu0
        %v865 = vadd.f32 0.0, %v864
        %v866 = vpop.f32.mrb[0].mxu0
        %867 = vmatprep.mubr.f32.mxu0 0.0
        %868 = vmatmul.mubr.f32.gmra.mrb[0].mxu0 %v768
        %v869 = vpop.f32.mrb[0].mxu0
        %v870 = vadd.f32 0.0, %v869
        %v871 = vpop.f32.mrb[0].mxu0
        %872 = vmatprep.mubr.f32.mxu0 0.0
        %873 = vmatmul.mubr.f32.gmra.mrb[0].mxu0 %v771
        %v874 = vpop.f32.mrb[0].mxu0
        %v875 = vadd.f32 0.0, %v874
        %v876 = vpop.f32.mrb[0].mxu0
        %877 = vdwg.mxu0
        %878 = vmatprep.subr.mxu0 0.0
        %879 = vmatpush1.msra.mxu0 %v744
        %880 = vmatprep.subr.mxu0 0.0
        %881 = vmatpush1.msra.mxu0 %v745
        %882 = vmatprep.subr.mxu0 0.0
        %883 = vmatpush1.msra.mxu0 %v746
        %884 = vmatprep.subr.mxu0 0.0
        %885 = vmatpush1.msra.mxu0 %v747
        %886 = vmatprep.subr.mxu0 0.0
        %887 = vmatpush1.msra.mxu0 0.0
        %888 = vmatprep.subr.mxu0 0.0
        %889 = vmatpush1.msra.mxu0 0.0
        %890 = vmatprep.subr.mxu0 0.0
        %891 = vmatpush1.msra.mxu0 0.0
        %892 = vmatprep.subr.mxu0 0.0
        %893 = vmatpush1.msra.mxu0 0.0
        %894 = vmatprep.subr.mxu0 0.0
        %895 = vmatpush1.msra.mxu0 0.0
        %896 = vmatprep.subr.mxu0 0.0
        %897 = vmatpush1.msra.mxu0 0.0
        %898 = vmatprep.subr.mxu0 0.0
        %899 = vmatpush1.msra.mxu0 0.0
        %900 = vmatprep.subr.mxu0 0.0
        %901 = vmatpush1.msra.mxu0 0.0
        %902 = vmatprep.subr.mxu0 0.0
        %903 = vmatpush1.msra.mxu0 0.0
        %904 = vmatprep.subr.mxu0 0.0
        %905 = vmatpush1.msra.mxu0 0.0
        %906 = vmatprep.subr.mxu0 0.0
        %907 = vmatpush1.msra.mxu0 0.0
        %908 = vmatprep.subr.mxu0 0.0
        %909 = vmatpush1.msra.mxu0 0.0
        %910 = vmatprep.subr.mxu0 0.0
        %911 = vmatpush1.msra.mxu0 0.0
        %912 = vmatprep.subr.mxu0 0.0
        %913 = vmatpush1.msra.mxu0 0.0
        %914 = vmatprep.subr.mxu0 0.0
        %915 = vmatpush1.msra.mxu0 0.0
        %916 = vmatprep.subr.mxu0 0.0
        %917 = vmatpush1.msra.mxu0 0.0
        %918 = vmatprep.subr.mxu0 0.0
        %919 = vmatpush1.msra.mxu0 0.0
        %920 = vmatprep.subr.mxu0 0.0
        %921 = vmatpush1.msra.mxu0 0.0
        %922 = vmatprep.subr.mxu0 0.0
        %923 = vmatpush1.msra.mxu0 0.0
        %924 = vmatprep.subr.mxu0 0.0
        %925 = vmatpush1.msra.mxu0 0.0
        %926 = vmatprep.subr.mxu0 0.0
        %927 = vmatpush1.msra.mxu0 0.0
        %928 = vmatprep.subr.mxu0 0.0
        %929 = vmatpush1.msra.mxu0 0.0
        %930 = vmatprep.subr.mxu0 0.0
        %931 = vmatpush1.msra.mxu0 0.0
        %932 = vmatprep.subr.mxu0 0.0
        %933 = vmatpush1.msra.mxu0 0.0
        %934 = vmatprep.subr.mxu0 0.0
        %935 = vmatpush1.msra.mxu0 0.0
        %936 = vmatprep.subr.mxu0 0.0
        %937 = vmatpush1.msra.mxu0 0.0
        %938 = vmatprep.subr.mxu0 0.0
        %939 = vmatpush1.msra.mxu0 0.0
        %940 = vmatprep.subr.mxu0 0.0
        %941 = vmatpush1.msra.mxu0 0.0
        %942 = vmatprep.mubr.f32.mxu0 0.0
        %943 = vmatmul.mubr.f32.gmra.mrb[0].mxu0 %v750
        %v944 = vpop.f32.mrb[0].mxu0
        %v945 = vadd.f32 0.0, %v944
        %v946 = vpop.f32.mrb[0].mxu0
        %947 = vmatprep.mubr.f32.mxu0 0.0
        %948 = vmatmul.mubr.f32.gmra.mrb[0].mxu0 %v753
        %v949 = vpop.f32.mrb[0].mxu0
        %v950 = vadd.f32 0.0, %v949
        %v951 = vpop.f32.mrb[0].mxu0
        %952 = vmatprep.mubr.f32.mxu0 0.0
        %953 = vmatmul.mubr.f32.gmra.mrb[0].mxu0 %v756
        %v954 = vpop.f32.mrb[0].mxu0
        %v955 = vadd.f32 0.0, %v954
        %v956 = vpop.f32.mrb[0].mxu0
        %957 = vmatprep.mubr.f32.mxu0 0.0
        %958 = vmatmul.mubr.f32.gmra.mrb[0].mxu0 %v759
        %v959 = vpop.f32.mrb[0].mxu0
        %v960 = vadd.f32 0.0, %v959
        %v961 = vpop.f32.mrb[0].mxu0
        %962 = vmatprep.mubr.f32.mxu0 0.0
        %963 = vmatmul.mubr.f32.gmra.mrb[0].mxu0 %v762
        %v964 = vpop.f32.mrb[0].mxu0
        %v965 = vadd.f32 0.0, %v964
        %v966 = vpop.f32.mrb[0].mxu0
        %967 = vmatprep.mubr.f32.mxu0 0.0
        %968 = vmatmul.mubr.f32.gmra.mrb[0].mxu0 %v765
        %v969 = vpop.f32.mrb[0].mxu0
        %v970 = vadd.f32 0.0, %v969
        %v971 = vpop.f32.mrb[0].mxu0
        %972 = vmatprep.mubr.f32.mxu0 0.0
        %973 = vmatmul.mubr.f32.gmra.mrb[0].mxu0 %v768
        %v974 = vpop.f32.mrb[0].mxu0
        %v975 = vadd.f32 0.0, %v974
        %v976 = vpop.f32.mrb[0].mxu0
        %977 = vmatprep.mubr.f32.mxu0 0.0
        %978 = vmatmul.mubr.f32.gmra.mrb[0].mxu0 %v771
        %v979 = vpop.f32.mrb[0].mxu0
        %v980 = vadd.f32 0.0, %v979
        %v981 = vpop.f32.mrb[0].mxu0
        %982 = vdwg.mxu0
        %v983 = vmul.f32 %v945, %v417
        %v984 = vmul.f32 %v950, %v418
        %v985 = vmul.f32 %v955, %v419
        %v986 = vmul.f32 %v960, %v420
        %v987 = vmul.f32 %v965, %v421
        %v988 = vmul.f32 %v970, %v422
        %v989 = vmul.f32 %v975, %v423
        %v990 = vmul.f32 %v980, %v424
        %v991 = vmul.f32 %v840, %v983
        %v992 = vmul.f32 %v845, %v984
        %v993 = vmul.f32 %v850, %v985
        %v994 = vmul.f32 %v855, %v986
        %v995 = vmul.f32 %v860, %v987
        %v996 = vmul.f32 %v865, %v988
        %v997 = vmul.f32 %v870, %v989
        %v998 = vmul.f32 %v875, %v990
        %v999 = vsub.f32 %v425, %v991
        %v1000 = vsub.f32 %v426, %v992
        %v1001 = vsub.f32 %v427, %v993
        %v1002 = vsub.f32 %v428, %v994
        %v1003 = vsub.f32 %v429, %v995
        %v1004 = vsub.f32 %v430, %v996
        %v1005 = vsub.f32 %v431, %v997
        %v1006 = vsub.f32 %v432, %v998
        %1008 = vset.pattern.permute.xlu0 0
        %1009 = vperm.xlu0 %1008, %v983
        %v1010 = vpop.permute.xlu0 %1009
        %1013 = vset.pattern.permute.xlu0 0
        %1014 = vperm.xlu0 %1013, %v984
        %v1015 = vpop.permute.xlu0 %1014
        %1018 = vset.pattern.permute.xlu0 0
        %1019 = vperm.xlu0 %1018, %v985
        %v1020 = vpop.permute.xlu0 %1019
        %1023 = vset.pattern.permute.xlu0 0
        %1024 = vperm.xlu0 %1023, %v986
        %v1025 = vpop.permute.xlu0 %1024
        %1028 = vset.pattern.permute.xlu0 0
        %1029 = vperm.xlu0 %1028, %v987
        %v1030 = vpop.permute.xlu0 %1029
        %1033 = vset.pattern.permute.xlu0 0
        %1034 = vperm.xlu0 %1033, %v988
        %v1035 = vpop.permute.xlu0 %1034
        %1038 = vset.pattern.permute.xlu0 0
        %1039 = vperm.xlu0 %1038, %v989
        %v1040 = vpop.permute.xlu0 %1039
        %1043 = vset.pattern.permute.xlu0 0
        %1044 = vperm.xlu0 %1043, %v990
        %v1045 = vpop.permute.xlu0 %1044
        %v1047 = vmul.f32 %v473, %v1010
        %v1048 = vmul.f32 %v474, %v1010
        %v1049 = vmul.f32 %v475, %v1015
        %v1050 = vmul.f32 %v476, %v1015
        %v1051 = vmul.f32 %v477, %v1020
        %v1052 = vmul.f32 %v478, %v1020
        %v1053 = vmul.f32 %v479, %v1025
        %v1054 = vmul.f32 %v480, %v1025
        %v1055 = vmul.f32 %v481, %v1030
        %v1056 = vmul.f32 %v482, %v1030
        %v1057 = vmul.f32 %v483, %v1035
        %v1058 = vmul.f32 %v484, %v1035
        %v1059 = vmul.f32 %v485, %v1040
        %v1060 = vmul.f32 %v486, %v1040
        %v1061 = vmul.f32 %v487, %v1045
        %v1062 = vmul.f32 %v488, %v1045
        %1064 = vset.pattern.permute.xlu0 0
        %1065 = vperm.xlu0 %1064, %v999
        %v1066 = vpop.permute.xlu0 %1065
        %1069 = vset.pattern.permute.xlu0 0
        %1070 = vperm.xlu0 %1069, %v1000
        %v1071 = vpop.permute.xlu0 %1070
        %1074 = vset.pattern.permute.xlu0 0
        %1075 = vperm.xlu0 %1074, %v1001
        %v1076 = vpop.permute.xlu0 %1075
        %1079 = vset.pattern.permute.xlu0 0
        %1080 = vperm.xlu0 %1079, %v1002
        %v1081 = vpop.permute.xlu0 %1080
        %1084 = vset.pattern.permute.xlu0 0
        %1085 = vperm.xlu0 %1084, %v1003
        %v1086 = vpop.permute.xlu0 %1085
        %1089 = vset.pattern.permute.xlu0 0
        %1090 = vperm.xlu0 %1089, %v1004
        %v1091 = vpop.permute.xlu0 %1090
        %1094 = vset.pattern.permute.xlu0 0
        %1095 = vperm.xlu0 %1094, %v1005
        %v1096 = vpop.permute.xlu0 %1095
        %1099 = vset.pattern.permute.xlu0 0
        %1100 = vperm.xlu0 %1099, %v1006
        %v1101 = vpop.permute.xlu0 %1100
        %v1103 = vadd.f32 %v1047, %v1066
        %v1104 = vadd.f32 %v1048, %v1066
        %v1105 = vadd.f32 %v1049, %v1071
        %v1106 = vadd.f32 %v1050, %v1071
        %v1107 = vadd.f32 %v1051, %v1076
        %v1108 = vadd.f32 %v1052, %v1076
        %v1109 = vadd.f32 %v1053, %v1081
        %v1110 = vadd.f32 %v1054, %v1081
        %v1111 = vadd.f32 %v1055, %v1086
        %v1112 = vadd.f32 %v1056, %v1086
        %v1113 = vadd.f32 %v1057, %v1091
        %v1114 = vadd.f32 %v1058, %v1091
        %v1115 = vadd.f32 %v1059, %v1096
        %v1116 = vadd.f32 %v1060, %v1096
        %v1117 = vadd.f32 %v1061, %v1101
        %v1118 = vadd.f32 %v1062, %v1101
        %v1119 = vxor.u32 %v1103, 2147483648
        %v1120 = vxor.u32 %v1104, 2147483648
        %v1121 = vxor.u32 %v1105, 2147483648
        %v1122 = vxor.u32 %v1106, 2147483648
        %v1123 = vxor.u32 %v1107, 2147483648
        %v1124 = vxor.u32 %v1108, 2147483648
        %v1125 = vxor.u32 %v1109, 2147483648
        %v1126 = vxor.u32 %v1110, 2147483648
        %v1127 = vxor.u32 %v1111, 2147483648
        %v1128 = vxor.u32 %v1112, 2147483648
        %v1129 = vxor.u32 %v1113, 2147483648
        %v1130 = vxor.u32 %v1114, 2147483648
        %v1131 = vxor.u32 %v1115, 2147483648
        %v1132 = vxor.u32 %v1116, 2147483648
        %v1133 = vxor.u32 %v1117, 2147483648
        %v1134 = vxor.u32 %v1118, 2147483648
        %v1135 = vmul.f32 %v1119, 1.442695
        %v1136 = vpow.pop %v1135
        %v1137 = vmul.f32 %v1120, 1.442695
        %v1138 = vpow.pop %v1137
        %v1139 = vmul.f32 %v1121, 1.442695
        %v1140 = vpow.pop %v1139
        %v1141 = vmul.f32 %v1122, 1.442695
        %v1142 = vpow.pop %v1141
        %v1143 = vmul.f32 %v1123, 1.442695
        %v1144 = vpow.pop %v1143
        %v1145 = vmul.f32 %v1124, 1.442695
        %v1146 = vpow.pop %v1145
        %v1147 = vmul.f32 %v1125, 1.442695
        %v1148 = vpow.pop %v1147
        %v1149 = vmul.f32 %v1126, 1.442695
        %v1150 = vpow.pop %v1149
        %v1151 = vmul.f32 %v1127, 1.442695
        %v1152 = vpow.pop %v1151
        %v1153 = vmul.f32 %v1128, 1.442695
        %v1154 = vpow.pop %v1153
        %v1155 = vmul.f32 %v1129, 1.442695
        %v1156 = vpow.pop %v1155
        %v1157 = vmul.f32 %v1130, 1.442695
        %v1158 = vpow.pop %v1157
        %v1159 = vmul.f32 %v1131, 1.442695
        %v1160 = vpow.pop %v1159
        %v1161 = vmul.f32 %v1132, 1.442695
        %v1162 = vpow.pop %v1161
        %v1163 = vmul.f32 %v1133, 1.442695
        %v1164 = vpow.pop %v1163
        %v1165 = vmul.f32 %v1134, 1.442695
        %v1166 = vpow.pop %v1165
        %v1167 = vadd.f32 %v1136, 1.0
        %v1168 = vadd.f32 %v1138, 1.0
        %v1169 = vadd.f32 %v1140, 1.0
        %v1170 = vadd.f32 %v1142, 1.0
        %v1171 = vadd.f32 %v1144, 1.0
        %v1172 = vadd.f32 %v1146, 1.0
        %v1173 = vadd.f32 %v1148, 1.0
        %v1174 = vadd.f32 %v1150, 1.0
        %v1175 = vadd.f32 %v1152, 1.0
        %v1176 = vadd.f32 %v1154, 1.0
        %v1177 = vadd.f32 %v1156, 1.0
        %v1178 = vadd.f32 %v1158, 1.0
        %v1179 = vadd.f32 %v1160, 1.0
        %v1180 = vadd.f32 %v1162, 1.0
        %v1181 = vadd.f32 %v1164, 1.0
        %v1182 = vadd.f32 %v1166, 1.0
        %v1183 = vrcp.pop %v1167
        %v1184 = vmul.f32 1.0, %v1183
        %v1185 = vrcp.pop %v1168
        %v1186 = vmul.f32 1.0, %v1185
        %v1187 = vrcp.pop %v1169
        %v1188 = vmul.f32 1.0, %v1187
        %v1189 = vrcp.pop %v1170
        %v1190 = vmul.f32 1.0, %v1189
        %v1191 = vrcp.pop %v1171
        %v1192 = vmul.f32 1.0, %v1191
        %v1193 = vrcp.pop %v1172
        %v1194 = vmul.f32 1.0, %v1193
        %v1195 = vrcp.pop %v1173
        %v1196 = vmul.f32 1.0, %v1195
        %v1197 = vrcp.pop %v1174
        %v1198 = vmul.f32 1.0, %v1197
        %v1199 = vrcp.pop %v1175
        %v1200 = vmul.f32 1.0, %v1199
        %v1201 = vrcp.pop %v1176
        %v1202 = vmul.f32 1.0, %v1201
        %v1203 = vrcp.pop %v1177
        %v1204 = vmul.f32 1.0, %v1203
        %v1205 = vrcp.pop %v1178
        %v1206 = vmul.f32 1.0, %v1205
        %v1207 = vrcp.pop %v1179
        %v1208 = vmul.f32 1.0, %v1207
        %v1209 = vrcp.pop %v1180
        %v1210 = vmul.f32 1.0, %v1209
        %v1211 = vrcp.pop %v1181
        %v1212 = vmul.f32 1.0, %v1211
        %v1213 = vrcp.pop %v1182
        %v1214 = vmul.f32 1.0, %v1213
        %v1215 = vmul.f32 %v1103, %v1184
        %v1216 = vmul.f32 %v1104, %v1186
        %v1217 = vmul.f32 %v1105, %v1188
        %v1218 = vmul.f32 %v1106, %v1190
        %v1219 = vmul.f32 %v1107, %v1192
        %v1220 = vmul.f32 %v1108, %v1194
        %v1221 = vmul.f32 %v1109, %v1196
        %v1222 = vmul.f32 %v1110, %v1198
        %v1223 = vmul.f32 %v1111, %v1200
        %v1224 = vmul.f32 %v1112, %v1202
        %v1225 = vmul.f32 %v1113, %v1204
        %v1226 = vmul.f32 %v1114, %v1206
        %v1227 = vmul.f32 %v1115, %v1208
        %v1228 = vmul.f32 %v1116, %v1210
        %v1229 = vmul.f32 %v1117, %v1212
        %v1230 = vmul.f32 %v1118, %v1214
        %v1231 = vld [vmem:[%s404] sm:$0xff]
        %v1232 = vld [vmem:[%s404 + $0x8] sm:$0xff]
        %v1233 = vld [vmem:[%s404 + $0x10] sm:$0xff]
        %v1234 = vld [vmem:[%s404 + $0x18] sm:$0xff]
        %v1235 = vld [vmem:[%s404 + $0x20] sm:$0xff]
        %v1236 = vld [vmem:[%s404 + $0x28] sm:$0xff]
        %v1237 = vld [vmem:[%s404 + $0x30] sm:$0xff]
        %v1238 = vld [vmem:[%s404 + $0x38] sm:$0xff]
        %1240 = vset.pattern.permute.xlu0 0
        %1241 = vperm.xlu0 %1240, %v1231
        %v1242 = vpop.permute.xlu0 %1241
        %1245 = vset.pattern.permute.xlu0 0
        %1246 = vperm.xlu0 %1245, %v1232
        %v1247 = vpop.permute.xlu0 %1246
        %1250 = vset.pattern.permute.xlu0 0
        %1251 = vperm.xlu0 %1250, %v1233
        %v1252 = vpop.permute.xlu0 %1251
        %1255 = vset.pattern.permute.xlu0 0
        %1256 = vperm.xlu0 %1255, %v1234
        %v1257 = vpop.permute.xlu0 %1256
        %1260 = vset.pattern.permute.xlu0 0
        %1261 = vperm.xlu0 %1260, %v1235
        %v1262 = vpop.permute.xlu0 %1261
        %1265 = vset.pattern.permute.xlu0 0
        %1266 = vperm.xlu0 %1265, %v1236
        %v1267 = vpop.permute.xlu0 %1266
        %1270 = vset.pattern.permute.xlu0 0
        %1271 = vperm.xlu0 %1270, %v1237
        %v1272 = vpop.permute.xlu0 %1271
        %1275 = vset.pattern.permute.xlu0 0
        %1276 = vperm.xlu0 %1275, %v1238
        %v1277 = vpop.permute.xlu0 %1276
        %v1280 = vsel %vm505, %v449, 0
        %v1283 = vsel %vm505, %v450, 0
        %v1286 = vsel %vm505, %v451, 0
        %v1289 = vsel %vm505, %v452, 0
        %v1292 = vsel %vm505, %v453, 0
        %v1295 = vsel %vm505, %v454, 0
        %v1298 = vsel %vm505, %v455, 0
        %v1301 = vsel %vm505, %v456, 0
        %1303 = vmatprep.subr.mxu0 %v1216
        %1304 = vmatpush1.msra.mxu0 %v1215
        %1305 = vmatprep.subr.mxu0 %v1218
        %1306 = vmatpush1.msra.mxu0 %v1217
        %1307 = vmatprep.subr.mxu0 %v1220
        %1308 = vmatpush1.msra.mxu0 %v1219
        %1309 = vmatprep.subr.mxu0 %v1222
        %1310 = vmatpush1.msra.mxu0 %v1221
        %1311 = vmatprep.subr.mxu0 %v1224
        %1312 = vmatpush1.msra.mxu0 %v1223
        %1313 = vmatprep.subr.mxu0 %v1226
        %1314 = vmatpush1.msra.mxu0 %v1225
        %1315 = vmatprep.subr.mxu0 %v1228
        %1316 = vmatpush1.msra.mxu0 %v1227
        %1317 = vmatprep.subr.mxu0 %v1230
        %1318 = vmatpush1.msra.mxu0 %v1229
        %1319 = vmatprep.subr.mxu0 0.0
        %1320 = vmatpush1.msra.mxu0 0.0
        %1321 = vmatprep.subr.mxu0 0.0
        %1322 = vmatpush1.msra.mxu0 0.0
        %1323 = vmatprep.subr.mxu0 0.0
        %1324 = vmatpush1.msra.mxu0 0.0
        %1325 = vmatprep.subr.mxu0 0.0
        %1326 = vmatpush1.msra.mxu0 0.0
        %1327 = vmatprep.subr.mxu0 0.0
        %1328 = vmatpush1.msra.mxu0 0.0
        %1329 = vmatprep.subr.mxu0 0.0
        %1330 = vmatpush1.msra.mxu0 0.0
        %1331 = vmatprep.subr.mxu0 0.0
        %1332 = vmatpush1.msra.mxu0 0.0
        %1333 = vmatprep.subr.mxu0 0.0
        %1334 = vmatpush1.msra.mxu0 0.0
        %1335 = vmatprep.subr.mxu0 0.0
        %1336 = vmatpush1.msra.mxu0 0.0
        %1337 = vmatprep.subr.mxu0 0.0
        %1338 = vmatpush1.msra.mxu0 0.0
        %1339 = vmatprep.subr.mxu0 0.0
        %1340 = vmatpush1.msra.mxu0 0.0
        %1341 = vmatprep.subr.mxu0 0.0
        %1342 = vmatpush1.msra.mxu0 0.0
        %1343 = vmatprep.subr.mxu0 0.0
        %1344 = vmatpush1.msra.mxu0 0.0
        %1345 = vmatprep.subr.mxu0 0.0
        %1346 = vmatpush1.msra.mxu0 0.0
        %1347 = vmatprep.subr.mxu0 0.0
        %1348 = vmatpush1.msra.mxu0 0.0
        %1349 = vmatprep.subr.mxu0 0.0
        %1350 = vmatpush1.msra.mxu0 0.0
        %1351 = vmatprep.subr.mxu0 0.0
        %1352 = vmatpush1.msra.mxu0 0.0
        %1353 = vmatprep.subr.mxu0 0.0
        %1354 = vmatpush1.msra.mxu0 0.0
        %1355 = vmatprep.subr.mxu0 0.0
        %1356 = vmatpush1.msra.mxu0 0.0
        %1357 = vmatprep.subr.mxu0 0.0
        %1358 = vmatpush1.msra.mxu0 0.0
        %1359 = vmatprep.subr.mxu0 0.0
        %1360 = vmatpush1.msra.mxu0 0.0
        %1361 = vmatprep.subr.mxu0 0.0
        %1362 = vmatpush1.msra.mxu0 0.0
        %1363 = vmatprep.subr.mxu0 0.0
        %1364 = vmatpush1.msra.mxu0 0.0
        %1365 = vmatprep.subr.mxu0 0.0
        %1366 = vmatpush1.msra.mxu0 0.0
        %1367 = vmatprep.mubr.f32.mxu0 0.0
        %1368 = vmatmul.mubr.f32.gmra.mrb[0].mxu0 %v1280
        %v1369 = vpop.f32.mrb[0].mxu0
        %v1370 = vadd.f32 %v1242, %v1369
        %v1371 = vpop.f32.mrb[0].mxu0
        %v1372 = vadd.f32 %v1242, %v1371
        %1373 = vmatprep.mubr.f32.mxu0 0.0
        %1374 = vmatmul.mubr.f32.gmra.mrb[0].mxu0 %v1283
        %v1375 = vpop.f32.mrb[0].mxu0
        %v1376 = vadd.f32 %v1247, %v1375
        %v1377 = vpop.f32.mrb[0].mxu0
        %v1378 = vadd.f32 %v1247, %v1377
        %1379 = vmatprep.mubr.f32.mxu0 0.0
        %1380 = vmatmul.mubr.f32.gmra.mrb[0].mxu0 %v1286
        %v1381 = vpop.f32.mrb[0].mxu0
        %v1382 = vadd.f32 %v1252, %v1381
        %v1383 = vpop.f32.mrb[0].mxu0
        %v1384 = vadd.f32 %v1252, %v1383
        %1385 = vmatprep.mubr.f32.mxu0 0.0
        %1386 = vmatmul.mubr.f32.gmra.mrb[0].mxu0 %v1289
        %v1387 = vpop.f32.mrb[0].mxu0
        %v1388 = vadd.f32 %v1257, %v1387
        %v1389 = vpop.f32.mrb[0].mxu0
        %v1390 = vadd.f32 %v1257, %v1389
        %1391 = vmatprep.mubr.f32.mxu0 0.0
        %1392 = vmatmul.mubr.f32.gmra.mrb[0].mxu0 %v1292
        %v1393 = vpop.f32.mrb[0].mxu0
        %v1394 = vadd.f32 %v1262, %v1393
        %v1395 = vpop.f32.mrb[0].mxu0
        %v1396 = vadd.f32 %v1262, %v1395
        %1397 = vmatprep.mubr.f32.mxu0 0.0
        %1398 = vmatmul.mubr.f32.gmra.mrb[0].mxu0 %v1295
        %v1399 = vpop.f32.mrb[0].mxu0
        %v1400 = vadd.f32 %v1267, %v1399
        %v1401 = vpop.f32.mrb[0].mxu0
        %v1402 = vadd.f32 %v1267, %v1401
        %1403 = vmatprep.mubr.f32.mxu0 0.0
        %1404 = vmatmul.mubr.f32.gmra.mrb[0].mxu0 %v1298
        %v1405 = vpop.f32.mrb[0].mxu0
        %v1406 = vadd.f32 %v1272, %v1405
        %v1407 = vpop.f32.mrb[0].mxu0
        %v1408 = vadd.f32 %v1272, %v1407
        %1409 = vmatprep.mubr.f32.mxu0 0.0
        %1410 = vmatmul.mubr.f32.gmra.mrb[0].mxu0 %v1301
        %v1411 = vpop.f32.mrb[0].mxu0
        %v1412 = vadd.f32 %v1277, %v1411
        %v1413 = vpop.f32.mrb[0].mxu0
        %v1414 = vadd.f32 %v1277, %v1413
        %1415 = vdwg.mxu0
        %v1416 = vmul.f32 %v1370, %v1370
        %v1417 = vmul.f32 %v1372, %v1372
        %v1418 = vmul.f32 %v1376, %v1376
        %v1419 = vmul.f32 %v1378, %v1378
        %v1420 = vmul.f32 %v1382, %v1382
        %v1421 = vmul.f32 %v1384, %v1384
        %v1422 = vmul.f32 %v1388, %v1388
        %v1423 = vmul.f32 %v1390, %v1390
        %v1424 = vmul.f32 %v1394, %v1394
        %v1425 = vmul.f32 %v1396, %v1396
        %v1426 = vmul.f32 %v1400, %v1400
        %v1427 = vmul.f32 %v1402, %v1402
        %v1428 = vmul.f32 %v1406, %v1406
        %v1429 = vmul.f32 %v1408, %v1408
        %v1430 = vmul.f32 %v1412, %v1412
        %v1431 = vmul.f32 %v1414, %v1414
        %1432 = vmatprep.subr.mxu0 %v1372
        %1433 = vmatpush1.msra.mxu0 %v1370
        %1434 = vmatprep.subr.mxu0 %v1378
        %1435 = vmatpush1.msra.mxu0 %v1376
        %1436 = vmatprep.subr.mxu0 %v1384
        %1437 = vmatpush1.msra.mxu0 %v1382
        %1438 = vmatprep.subr.mxu0 %v1390
        %1439 = vmatpush1.msra.mxu0 %v1388
        %1440 = vmatprep.subr.mxu0 %v1396
        %1441 = vmatpush1.msra.mxu0 %v1394
        %1442 = vmatprep.subr.mxu0 %v1402
        %1443 = vmatpush1.msra.mxu0 %v1400
        %1444 = vmatprep.subr.mxu0 %v1408
        %1445 = vmatpush1.msra.mxu0 %v1406
        %1446 = vmatprep.subr.mxu0 %v1414
        %1447 = vmatpush1.msra.mxu0 %v1412
        %1448 = vmatprep.subr.mxu0 0.0
        %1449 = vmatpush1.msra.mxu0 0.0
        %1450 = vmatprep.subr.mxu0 0.0
        %1451 = vmatpush1.msra.mxu0 0.0
        %1452 = vmatprep.subr.mxu0 0.0
        %1453 = vmatpush1.msra.mxu0 0.0
        %1454 = vmatprep.subr.mxu0 0.0
        %1455 = vmatpush1.msra.mxu0 0.0
        %1456 = vmatprep.subr.mxu0 0.0
        %1457 = vmatpush1.msra.mxu0 0.0
        %1458 = vmatprep.subr.mxu0 0.0
        %1459 = vmatpush1.msra.mxu0 0.0
        %1460 = vmatprep.subr.mxu0 0.0
        %1461 = vmatpush1.msra.mxu0 0.0
        %1462 = vmatprep.subr.mxu0 0.0
        %1463 = vmatpush1.msra.mxu0 0.0
        %1464 = vmatprep.subr.mxu0 0.0
        %1465 = vmatpush1.msra.mxu0 0.0
        %1466 = vmatprep.subr.mxu0 0.0
        %1467 = vmatpush1.msra.mxu0 0.0
        %1468 = vmatprep.subr.mxu0 0.0
        %1469 = vmatpush1.msra.mxu0 0.0
        %1470 = vmatprep.subr.mxu0 0.0
        %1471 = vmatpush1.msra.mxu0 0.0
        %1472 = vmatprep.subr.mxu0 0.0
        %1473 = vmatpush1.msra.mxu0 0.0
        %1474 = vmatprep.subr.mxu0 0.0
        %1475 = vmatpush1.msra.mxu0 0.0
        %1476 = vmatprep.subr.mxu0 0.0
        %1477 = vmatpush1.msra.mxu0 0.0
        %1478 = vmatprep.subr.mxu0 0.0
        %1479 = vmatpush1.msra.mxu0 0.0
        %1480 = vmatprep.subr.mxu0 0.0
        %1481 = vmatpush1.msra.mxu0 0.0
        %1482 = vmatprep.subr.mxu0 0.0
        %1483 = vmatpush1.msra.mxu0 0.0
        %1484 = vmatprep.subr.mxu0 0.0
        %1485 = vmatpush1.msra.mxu0 0.0
        %1486 = vmatprep.subr.mxu0 0.0
        %1487 = vmatpush1.msra.mxu0 0.0
        %1488 = vmatprep.subr.mxu0 0.0
        %1489 = vmatpush1.msra.mxu0 0.0
        %1490 = vmatprep.subr.mxu0 0.0
        %1491 = vmatpush1.msra.mxu0 0.0
        %1492 = vmatprep.subr.mxu0 0.0
        %1493 = vmatpush1.msra.mxu0 0.0
        %1494 = vmatprep.subr.mxu0 0.0
        %1495 = vmatpush1.msra.mxu0 0.0
        %1496 = vmatprep.mubr.f32.mxu0 0.0
        %1497 = vmatmul.mubr.f32.gmra.mrb[0].mxu0 %v507
        %v1498 = vpop.f32.mrb[0].mxu0
        %v1499 = vadd.f32 0.0, %v1498
        %v1500 = vpop.f32.mrb[0].mxu0
        %v1501 = vadd.f32 0.0, %v1500
        %1502 = vmatprep.mubr.f32.mxu0 0.0
        %1503 = vmatmul.mubr.f32.gmra.mrb[0].mxu0 %v510
        %v1504 = vpop.f32.mrb[0].mxu0
        %v1505 = vadd.f32 0.0, %v1504
        %v1506 = vpop.f32.mrb[0].mxu0
        %v1507 = vadd.f32 0.0, %v1506
        %1508 = vmatprep.mubr.f32.mxu0 0.0
        %1509 = vmatmul.mubr.f32.gmra.mrb[0].mxu0 %v513
        %v1510 = vpop.f32.mrb[0].mxu0
        %v1511 = vadd.f32 0.0, %v1510
        %v1512 = vpop.f32.mrb[0].mxu0
        %v1513 = vadd.f32 0.0, %v1512
        %1514 = vmatprep.mubr.f32.mxu0 0.0
        %1515 = vmatmul.mubr.f32.gmra.mrb[0].mxu0 %v516
        %v1516 = vpop.f32.mrb[0].mxu0
        %v1517 = vadd.f32 0.0, %v1516
        %v1518 = vpop.f32.mrb[0].mxu0
        %v1519 = vadd.f32 0.0, %v1518
        %1520 = vdwg.mxu0
        %1521 = vmatprep.subr.mxu0 %v1417
        %1522 = vmatpush1.msra.mxu0 %v1416
        %1523 = vmatprep.subr.mxu0 %v1419
        %1524 = vmatpush1.msra.mxu0 %v1418
        %1525 = vmatprep.subr.mxu0 %v1421
        %1526 = vmatpush1.msra.mxu0 %v1420
        %1527 = vmatprep.subr.mxu0 %v1423
        %1528 = vmatpush1.msra.mxu0 %v1422
        %1529 = vmatprep.subr.mxu0 %v1425
        %1530 = vmatpush1.msra.mxu0 %v1424
        %1531 = vmatprep.subr.mxu0 %v1427
        %1532 = vmatpush1.msra.mxu0 %v1426
        %1533 = vmatprep.subr.mxu0 %v1429
        %1534 = vmatpush1.msra.mxu0 %v1428
        %1535 = vmatprep.subr.mxu0 %v1431
        %1536 = vmatpush1.msra.mxu0 %v1430
        %1537 = vmatprep.subr.mxu0 0.0
        %1538 = vmatpush1.msra.mxu0 0.0
        %1539 = vmatprep.subr.mxu0 0.0
        %1540 = vmatpush1.msra.mxu0 0.0
        %1541 = vmatprep.subr.mxu0 0.0
        %1542 = vmatpush1.msra.mxu0 0.0
        %1543 = vmatprep.subr.mxu0 0.0
        %1544 = vmatpush1.msra.mxu0 0.0
        %1545 = vmatprep.subr.mxu0 0.0
        %1546 = vmatpush1.msra.mxu0 0.0
        %1547 = vmatprep.subr.mxu0 0.0
        %1548 = vmatpush1.msra.mxu0 0.0
        %1549 = vmatprep.subr.mxu0 0.0
        %1550 = vmatpush1.msra.mxu0 0.0
        %1551 = vmatprep.subr.mxu0 0.0
        %1552 = vmatpush1.msra.mxu0 0.0
        %1553 = vmatprep.subr.mxu0 0.0
        %1554 = vmatpush1.msra.mxu0 0.0
        %1555 = vmatprep.subr.mxu0 0.0
        %1556 = vmatpush1.msra.mxu0 0.0
        %1557 = vmatprep.subr.mxu0 0.0
        %1558 = vmatpush1.msra.mxu0 0.0
        %1559 = vmatprep.subr.mxu0 0.0
        %1560 = vmatpush1.msra.mxu0 0.0
        %1561 = vmatprep.subr.mxu0 0.0
        %1562 = vmatpush1.msra.mxu0 0.0
        %1563 = vmatprep.subr.mxu0 0.0
        %1564 = vmatpush1.msra.mxu0 0.0
        %1565 = vmatprep.subr.mxu0 0.0
        %1566 = vmatpush1.msra.mxu0 0.0
        %1567 = vmatprep.subr.mxu0 0.0
        %1568 = vmatpush1.msra.mxu0 0.0
        %1569 = vmatprep.subr.mxu0 0.0
        %1570 = vmatpush1.msra.mxu0 0.0
        %1571 = vmatprep.subr.mxu0 0.0
        %1572 = vmatpush1.msra.mxu0 0.0
        %1573 = vmatprep.subr.mxu0 0.0
        %1574 = vmatpush1.msra.mxu0 0.0
        %1575 = vmatprep.subr.mxu0 0.0
        %1576 = vmatpush1.msra.mxu0 0.0
        %1577 = vmatprep.subr.mxu0 0.0
        %1578 = vmatpush1.msra.mxu0 0.0
        %1579 = vmatprep.subr.mxu0 0.0
        %1580 = vmatpush1.msra.mxu0 0.0
        %1581 = vmatprep.subr.mxu0 0.0
        %1582 = vmatpush1.msra.mxu0 0.0
        %1583 = vmatprep.subr.mxu0 0.0
        %1584 = vmatpush1.msra.mxu0 0.0
        %1585 = vmatprep.mubr.f32.mxu0 0.0
        %1586 = vmatmul.mubr.f32.gmra.mrb[0].mxu0 %v507
        %v1587 = vpop.f32.mrb[0].mxu0
        %v1588 = vadd.f32 0.0, %v1587
        %v1589 = vpop.f32.mrb[0].mxu0
        %v1590 = vadd.f32 0.0, %v1589
        %1591 = vmatprep.mubr.f32.mxu0 0.0
        %1592 = vmatmul.mubr.f32.gmra.mrb[0].mxu0 %v510
        %v1593 = vpop.f32.mrb[0].mxu0
        %v1594 = vadd.f32 0.0, %v1593
        %v1595 = vpop.f32.mrb[0].mxu0
        %v1596 = vadd.f32 0.0, %v1595
        %1597 = vmatprep.mubr.f32.mxu0 0.0
        %1598 = vmatmul.mubr.f32.gmra.mrb[0].mxu0 %v513
        %v1599 = vpop.f32.mrb[0].mxu0
        %v1600 = vadd.f32 0.0, %v1599
        %v1601 = vpop.f32.mrb[0].mxu0
        %v1602 = vadd.f32 0.0, %v1601
        %1603 = vmatprep.mubr.f32.mxu0 0.0
        %1604 = vmatmul.mubr.f32.gmra.mrb[0].mxu0 %v516
        %v1605 = vpop.f32.mrb[0].mxu0
        %v1606 = vadd.f32 0.0, %v1605
        %v1607 = vpop.f32.mrb[0].mxu0
        %v1608 = vadd.f32 0.0, %v1607
        %1609 = vdwg.mxu0
        %v1610 = vadd.f32 %v1499, %v1501
        %1611 = vadd.xlane.f32.xlu0 %v1610
        %v1612 = vpop.xlane.xlu0 %1611
        %v1613 = vadd.f32 %v1505, %v1507
        %1614 = vadd.xlane.f32.xlu0 %v1613
        %v1615 = vpop.xlane.xlu0 %1614
        %v1616 = vadd.f32 %v1511, %v1513
        %1617 = vadd.xlane.f32.xlu0 %v1616
        %v1618 = vpop.xlane.xlu0 %1617
        %v1619 = vadd.f32 %v1517, %v1519
        %1620 = vadd.xlane.f32.xlu0 %v1619
        %v1621 = vpop.xlane.xlu0 %1620
        %v1622 = vmul.f32 %v1612, 0.001953125
        %v1623 = vmul.f32 %v1615, 0.001953125
        %v1624 = vmul.f32 %v1618, 0.001953125
        %v1625 = vmul.f32 %v1621, 0.001953125
        %v1626 = vadd.f32 %v1588, %v1590
        %1627 = vadd.xlane.f32.xlu0 %v1626
        %v1628 = vpop.xlane.xlu0 %1627
        %v1629 = vadd.f32 %v1594, %v1596
        %1630 = vadd.xlane.f32.xlu0 %v1629
        %v1631 = vpop.xlane.xlu0 %1630
        %v1632 = vadd.f32 %v1600, %v1602
        %1633 = vadd.xlane.f32.xlu0 %v1632
        %v1634 = vpop.xlane.xlu0 %1633
        %v1635 = vadd.f32 %v1606, %v1608
        %1636 = vadd.xlane.f32.xlu0 %v1635
        %v1637 = vpop.xlane.xlu0 %1636
        %v1638 = vmul.f32 %v1628, 0.001953125
        %v1639 = vmul.f32 %v1631, 0.001953125
        %v1640 = vmul.f32 %v1634, 0.001953125
        %v1641 = vmul.f32 %v1637, 0.001953125
        %v1642 = vmul.f32 %v1622, %v1622
        %v1643 = vmul.f32 %v1623, %v1623
        %v1644 = vmul.f32 %v1624, %v1624
        %v1645 = vmul.f32 %v1625, %v1625
        %v1646 = vsub.f32 %v1638, %v1642
        %v1647 = vsub.f32 %v1639, %v1643
        %v1648 = vsub.f32 %v1640, %v1644
        %v1649 = vsub.f32 %v1641, %v1645
        %v1650 = vmax.f32 %v1646, 0.0
        %v1651 = vmax.f32 %v1647, 0.0
        %v1652 = vmax.f32 %v1648, 0.0
        %v1653 = vmax.f32 %v1649, 0.0
        %v1654 = vadd.f32 %v1650, 1e-06
        %v1655 = vadd.f32 %v1651, 1e-06
        %v1656 = vadd.f32 %v1652, 1e-06
        %v1657 = vadd.f32 %v1653, 1e-06
        %v1658 = vrsqrt.pop %v1654
        %v1659 = vrsqrt.pop %v1655
        %v1660 = vrsqrt.pop %v1656
        %v1661 = vrsqrt.pop %v1657
        %1662 = vmatprep.subr.mxu0 0.0
        %1663 = vmatpush1.msra.mxu0 %v1622
        %1664 = vmatprep.subr.mxu0 0.0
        %1665 = vmatpush1.msra.mxu0 %v1623
        %1666 = vmatprep.subr.mxu0 0.0
        %1667 = vmatpush1.msra.mxu0 %v1624
        %1668 = vmatprep.subr.mxu0 0.0
        %1669 = vmatpush1.msra.mxu0 %v1625
        %1670 = vmatprep.subr.mxu0 0.0
        %1671 = vmatpush1.msra.mxu0 0.0
        %1672 = vmatprep.subr.mxu0 0.0
        %1673 = vmatpush1.msra.mxu0 0.0
        %1674 = vmatprep.subr.mxu0 0.0
        %1675 = vmatpush1.msra.mxu0 0.0
        %1676 = vmatprep.subr.mxu0 0.0
        %1677 = vmatpush1.msra.mxu0 0.0
        %1678 = vmatprep.subr.mxu0 0.0
        %1679 = vmatpush1.msra.mxu0 0.0
        %1680 = vmatprep.subr.mxu0 0.0
        %1681 = vmatpush1.msra.mxu0 0.0
        %1682 = vmatprep.subr.mxu0 0.0
        %1683 = vmatpush1.msra.mxu0 0.0
        %1684 = vmatprep.subr.mxu0 0.0
        %1685 = vmatpush1.msra.mxu0 0.0
        %1686 = vmatprep.subr.mxu0 0.0
        %1687 = vmatpush1.msra.mxu0 0.0
        %1688 = vmatprep.subr.mxu0 0.0
        %1689 = vmatpush1.msra.mxu0 0.0
        %1690 = vmatprep.subr.mxu0 0.0
        %1691 = vmatpush1.msra.mxu0 0.0
        %1692 = vmatprep.subr.mxu0 0.0
        %1693 = vmatpush1.msra.mxu0 0.0
        %1694 = vmatprep.subr.mxu0 0.0
        %1695 = vmatpush1.msra.mxu0 0.0
        %1696 = vmatprep.subr.mxu0 0.0
        %1697 = vmatpush1.msra.mxu0 0.0
        %1698 = vmatprep.subr.mxu0 0.0
        %1699 = vmatpush1.msra.mxu0 0.0
        %1700 = vmatprep.subr.mxu0 0.0
        %1701 = vmatpush1.msra.mxu0 0.0
        %1702 = vmatprep.subr.mxu0 0.0
        %1703 = vmatpush1.msra.mxu0 0.0
        %1704 = vmatprep.subr.mxu0 0.0
        %1705 = vmatpush1.msra.mxu0 0.0
        %1706 = vmatprep.subr.mxu0 0.0
        %1707 = vmatpush1.msra.mxu0 0.0
        %1708 = vmatprep.subr.mxu0 0.0
        %1709 = vmatpush1.msra.mxu0 0.0
        %1710 = vmatprep.subr.mxu0 0.0
        %1711 = vmatpush1.msra.mxu0 0.0
        %1712 = vmatprep.subr.mxu0 0.0
        %1713 = vmatpush1.msra.mxu0 0.0
        %1714 = vmatprep.subr.mxu0 0.0
        %1715 = vmatpush1.msra.mxu0 0.0
        %1716 = vmatprep.subr.mxu0 0.0
        %1717 = vmatpush1.msra.mxu0 0.0
        %1718 = vmatprep.subr.mxu0 0.0
        %1719 = vmatpush1.msra.mxu0 0.0
        %1720 = vmatprep.subr.mxu0 0.0
        %1721 = vmatpush1.msra.mxu0 0.0
        %1722 = vmatprep.subr.mxu0 0.0
        %1723 = vmatpush1.msra.mxu0 0.0
        %1724 = vmatprep.subr.mxu0 0.0
        %1725 = vmatpush1.msra.mxu0 0.0
        %1726 = vmatprep.mubr.f32.mxu0 0.0
        %1727 = vmatmul.mubr.f32.gmra.mrb[0].mxu0 %v750
        %v1728 = vpop.f32.mrb[0].mxu0
        %v1729 = vadd.f32 0.0, %v1728
        %v1730 = vpop.f32.mrb[0].mxu0
        %1731 = vmatprep.mubr.f32.mxu0 0.0
        %1732 = vmatmul.mubr.f32.gmra.mrb[0].mxu0 %v753
        %v1733 = vpop.f32.mrb[0].mxu0
        %v1734 = vadd.f32 0.0, %v1733
        %v1735 = vpop.f32.mrb[0].mxu0
        %1736 = vmatprep.mubr.f32.mxu0 0.0
        %1737 = vmatmul.mubr.f32.gmra.mrb[0].mxu0 %v756
        %v1738 = vpop.f32.mrb[0].mxu0
        %v1739 = vadd.f32 0.0, %v1738
        %v1740 = vpop.f32.mrb[0].mxu0
        %1741 = vmatprep.mubr.f32.mxu0 0.0
        %1742 = vmatmul.mubr.f32.gmra.mrb[0].mxu0 %v759
        %v1743 = vpop.f32.mrb[0].mxu0
        %v1744 = vadd.f32 0.0, %v1743
        %v1745 = vpop.f32.mrb[0].mxu0
        %1746 = vmatprep.mubr.f32.mxu0 0.0
        %1747 = vmatmul.mubr.f32.gmra.mrb[0].mxu0 %v762
        %v1748 = vpop.f32.mrb[0].mxu0
        %v1749 = vadd.f32 0.0, %v1748
        %v1750 = vpop.f32.mrb[0].mxu0
        %1751 = vmatprep.mubr.f32.mxu0 0.0
        %1752 = vmatmul.mubr.f32.gmra.mrb[0].mxu0 %v765
        %v1753 = vpop.f32.mrb[0].mxu0
        %v1754 = vadd.f32 0.0, %v1753
        %v1755 = vpop.f32.mrb[0].mxu0
        %1756 = vmatprep.mubr.f32.mxu0 0.0
        %1757 = vmatmul.mubr.f32.gmra.mrb[0].mxu0 %v768
        %v1758 = vpop.f32.mrb[0].mxu0
        %v1759 = vadd.f32 0.0, %v1758
        %v1760 = vpop.f32.mrb[0].mxu0
        %1761 = vmatprep.mubr.f32.mxu0 0.0
        %1762 = vmatmul.mubr.f32.gmra.mrb[0].mxu0 %v771
        %v1763 = vpop.f32.mrb[0].mxu0
        %v1764 = vadd.f32 0.0, %v1763
        %v1765 = vpop.f32.mrb[0].mxu0
        %1766 = vdwg.mxu0
        %1767 = vmatprep.subr.mxu0 0.0
        %1768 = vmatpush1.msra.mxu0 %v1658
        %1769 = vmatprep.subr.mxu0 0.0
        %1770 = vmatpush1.msra.mxu0 %v1659
        %1771 = vmatprep.subr.mxu0 0.0
        %1772 = vmatpush1.msra.mxu0 %v1660
        %1773 = vmatprep.subr.mxu0 0.0
        %1774 = vmatpush1.msra.mxu0 %v1661
        %1775 = vmatprep.subr.mxu0 0.0
        %1776 = vmatpush1.msra.mxu0 0.0
        %1777 = vmatprep.subr.mxu0 0.0
        %1778 = vmatpush1.msra.mxu0 0.0
        %1779 = vmatprep.subr.mxu0 0.0
        %1780 = vmatpush1.msra.mxu0 0.0
        %1781 = vmatprep.subr.mxu0 0.0
        %1782 = vmatpush1.msra.mxu0 0.0
        %1783 = vmatprep.subr.mxu0 0.0
        %1784 = vmatpush1.msra.mxu0 0.0
        %1785 = vmatprep.subr.mxu0 0.0
        %1786 = vmatpush1.msra.mxu0 0.0
        %1787 = vmatprep.subr.mxu0 0.0
        %1788 = vmatpush1.msra.mxu0 0.0
        %1789 = vmatprep.subr.mxu0 0.0
        %1790 = vmatpush1.msra.mxu0 0.0
        %1791 = vmatprep.subr.mxu0 0.0
        %1792 = vmatpush1.msra.mxu0 0.0
        %1793 = vmatprep.subr.mxu0 0.0
        %1794 = vmatpush1.msra.mxu0 0.0
        %1795 = vmatprep.subr.mxu0 0.0
        %1796 = vmatpush1.msra.mxu0 0.0
        %1797 = vmatprep.subr.mxu0 0.0
        %1798 = vmatpush1.msra.mxu0 0.0
        %1799 = vmatprep.subr.mxu0 0.0
        %1800 = vmatpush1.msra.mxu0 0.0
        %1801 = vmatprep.subr.mxu0 0.0
        %1802 = vmatpush1.msra.mxu0 0.0
        %1803 = vmatprep.subr.mxu0 0.0
        %1804 = vmatpush1.msra.mxu0 0.0
        %1805 = vmatprep.subr.mxu0 0.0
        %1806 = vmatpush1.msra.mxu0 0.0
        %1807 = vmatprep.subr.mxu0 0.0
        %1808 = vmatpush1.msra.mxu0 0.0
        %1809 = vmatprep.subr.mxu0 0.0
        %1810 = vmatpush1.msra.mxu0 0.0
        %1811 = vmatprep.subr.mxu0 0.0
        %1812 = vmatpush1.msra.mxu0 0.0
        %1813 = vmatprep.subr.mxu0 0.0
        %1814 = vmatpush1.msra.mxu0 0.0
        %1815 = vmatprep.subr.mxu0 0.0
        %1816 = vmatpush1.msra.mxu0 0.0
        %1817 = vmatprep.subr.mxu0 0.0
        %1818 = vmatpush1.msra.mxu0 0.0
        %1819 = vmatprep.subr.mxu0 0.0
        %1820 = vmatpush1.msra.mxu0 0.0
        %1821 = vmatprep.subr.mxu0 0.0
        %1822 = vmatpush1.msra.mxu0 0.0
        %1823 = vmatprep.subr.mxu0 0.0
        %1824 = vmatpush1.msra.mxu0 0.0
        %1825 = vmatprep.subr.mxu0 0.0
        %1826 = vmatpush1.msra.mxu0 0.0
        %1827 = vmatprep.subr.mxu0 0.0
        %1828 = vmatpush1.msra.mxu0 0.0
        %1829 = vmatprep.subr.mxu0 0.0
        %1830 = vmatpush1.msra.mxu0 0.0
        %1831 = vmatprep.mubr.f32.mxu0 0.0
        %1832 = vmatmul.mubr.f32.gmra.mrb[0].mxu0 %v750
        %v1833 = vpop.f32.mrb[0].mxu0
        %v1834 = vadd.f32 0.0, %v1833
        %v1835 = vpop.f32.mrb[0].mxu0
        %1836 = vmatprep.mubr.f32.mxu0 0.0
        %1837 = vmatmul.mubr.f32.gmra.mrb[0].mxu0 %v753
        %v1838 = vpop.f32.mrb[0].mxu0
        %v1839 = vadd.f32 0.0, %v1838
        %v1840 = vpop.f32.mrb[0].mxu0
        %1841 = vmatprep.mubr.f32.mxu0 0.0
        %1842 = vmatmul.mubr.f32.gmra.mrb[0].mxu0 %v756
        %v1843 = vpop.f32.mrb[0].mxu0
        %v1844 = vadd.f32 0.0, %v1843
        %v1845 = vpop.f32.mrb[0].mxu0
        %1846 = vmatprep.mubr.f32.mxu0 0.0
        %1847 = vmatmul.mubr.f32.gmra.mrb[0].mxu0 %v759
        %v1848 = vpop.f32.mrb[0].mxu0
        %v1849 = vadd.f32 0.0, %v1848
        %v1850 = vpop.f32.mrb[0].mxu0
        %1851 = vmatprep.mubr.f32.mxu0 0.0
        %1852 = vmatmul.mubr.f32.gmra.mrb[0].mxu0 %v762
        %v1853 = vpop.f32.mrb[0].mxu0
        %v1854 = vadd.f32 0.0, %v1853
        %v1855 = vpop.f32.mrb[0].mxu0
        %1856 = vmatprep.mubr.f32.mxu0 0.0
        %1857 = vmatmul.mubr.f32.gmra.mrb[0].mxu0 %v765
        %v1858 = vpop.f32.mrb[0].mxu0
        %v1859 = vadd.f32 0.0, %v1858
        %v1860 = vpop.f32.mrb[0].mxu0
        %1861 = vmatprep.mubr.f32.mxu0 0.0
        %1862 = vmatmul.mubr.f32.gmra.mrb[0].mxu0 %v768
        %v1863 = vpop.f32.mrb[0].mxu0
        %v1864 = vadd.f32 0.0, %v1863
        %v1865 = vpop.f32.mrb[0].mxu0
        %1866 = vmatprep.mubr.f32.mxu0 0.0
        %1867 = vmatmul.mubr.f32.gmra.mrb[0].mxu0 %v771
        %v1868 = vpop.f32.mrb[0].mxu0
        %v1869 = vadd.f32 0.0, %v1868
        %v1870 = vpop.f32.mrb[0].mxu0
        %1871 = vdwg.mxu0
        %v1872 = vmul.f32 %v1834, %v433
        %v1873 = vmul.f32 %v1839, %v434
        %v1874 = vmul.f32 %v1844, %v435
        %v1875 = vmul.f32 %v1849, %v436
        %v1876 = vmul.f32 %v1854, %v437
        %v1877 = vmul.f32 %v1859, %v438
        %v1878 = vmul.f32 %v1864, %v439
        %v1879 = vmul.f32 %v1869, %v440
        %v1880 = vmul.f32 %v1729, %v1872
        %v1881 = vmul.f32 %v1734, %v1873
        %v1882 = vmul.f32 %v1739, %v1874
        %v1883 = vmul.f32 %v1744, %v1875
        %v1884 = vmul.f32 %v1749, %v1876
        %v1885 = vmul.f32 %v1754, %v1877
        %v1886 = vmul.f32 %v1759, %v1878
        %v1887 = vmul.f32 %v1764, %v1879
        %v1888 = vsub.f32 %v441, %v1880
        %v1889 = vsub.f32 %v442, %v1881
        %v1890 = vsub.f32 %v443, %v1882
        %v1891 = vsub.f32 %v444, %v1883
        %v1892 = vsub.f32 %v445, %v1884
        %v1893 = vsub.f32 %v446, %v1885
        %v1894 = vsub.f32 %v447, %v1886
        %v1895 = vsub.f32 %v448, %v1887
        %1897 = vset.pattern.permute.xlu0 0
        %1898 = vperm.xlu0 %1897, %v1872
        %v1899 = vpop.permute.xlu0 %1898
        %1902 = vset.pattern.permute.xlu0 0
        %1903 = vperm.xlu0 %1902, %v1873
        %v1904 = vpop.permute.xlu0 %1903
        %1907 = vset.pattern.permute.xlu0 0
        %1908 = vperm.xlu0 %1907, %v1874
        %v1909 = vpop.permute.xlu0 %1908
        %1912 = vset.pattern.permute.xlu0 0
        %1913 = vperm.xlu0 %1912, %v1875
        %v1914 = vpop.permute.xlu0 %1913
        %1917 = vset.pattern.permute.xlu0 0
        %1918 = vperm.xlu0 %1917, %v1876
        %v1919 = vpop.permute.xlu0 %1918
        %1922 = vset.pattern.permute.xlu0 0
        %1923 = vperm.xlu0 %1922, %v1877
        %v1924 = vpop.permute.xlu0 %1923
        %1927 = vset.pattern.permute.xlu0 0
        %1928 = vperm.xlu0 %1927, %v1878
        %v1929 = vpop.permute.xlu0 %1928
        %1932 = vset.pattern.permute.xlu0 0
        %1933 = vperm.xlu0 %1932, %v1879
        %v1934 = vpop.permute.xlu0 %1933
        %v1936 = vmul.f32 %v1370, %v1899
        %v1937 = vmul.f32 %v1372, %v1899
        %v1938 = vmul.f32 %v1376, %v1904
        %v1939 = vmul.f32 %v1378, %v1904
        %v1940 = vmul.f32 %v1382, %v1909
        %v1941 = vmul.f32 %v1384, %v1909
        %v1942 = vmul.f32 %v1388, %v1914
        %v1943 = vmul.f32 %v1390, %v1914
        %v1944 = vmul.f32 %v1394, %v1919
        %v1945 = vmul.f32 %v1396, %v1919
        %v1946 = vmul.f32 %v1400, %v1924
        %v1947 = vmul.f32 %v1402, %v1924
        %v1948 = vmul.f32 %v1406, %v1929
        %v1949 = vmul.f32 %v1408, %v1929
        %v1950 = vmul.f32 %v1412, %v1934
        %v1951 = vmul.f32 %v1414, %v1934
        %1953 = vset.pattern.permute.xlu0 0
        %1954 = vperm.xlu0 %1953, %v1888
        %v1955 = vpop.permute.xlu0 %1954
        %1958 = vset.pattern.permute.xlu0 0
        %1959 = vperm.xlu0 %1958, %v1889
        %v1960 = vpop.permute.xlu0 %1959
        %1963 = vset.pattern.permute.xlu0 0
        %1964 = vperm.xlu0 %1963, %v1890
        %v1965 = vpop.permute.xlu0 %1964
        %1968 = vset.pattern.permute.xlu0 0
        %1969 = vperm.xlu0 %1968, %v1891
        %v1970 = vpop.permute.xlu0 %1969
        %1973 = vset.pattern.permute.xlu0 0
        %1974 = vperm.xlu0 %1973, %v1892
        %v1975 = vpop.permute.xlu0 %1974
        %1978 = vset.pattern.permute.xlu0 0
        %1979 = vperm.xlu0 %1978, %v1893
        %v1980 = vpop.permute.xlu0 %1979
        %1983 = vset.pattern.permute.xlu0 0
        %1984 = vperm.xlu0 %1983, %v1894
        %v1985 = vpop.permute.xlu0 %1984
        %1988 = vset.pattern.permute.xlu0 0
        %1989 = vperm.xlu0 %1988, %v1895
        %v1990 = vpop.permute.xlu0 %1989
        %v1992 = vadd.f32 %v1936, %v1955
        %v1993 = vadd.f32 %v1937, %v1955
        %v1994 = vadd.f32 %v1938, %v1960
        %v1995 = vadd.f32 %v1939, %v1960
        %v1996 = vadd.f32 %v1940, %v1965
        %v1997 = vadd.f32 %v1941, %v1965
        %v1998 = vadd.f32 %v1942, %v1970
        %v1999 = vadd.f32 %v1943, %v1970
        %v2000 = vadd.f32 %v1944, %v1975
        %v2001 = vadd.f32 %v1945, %v1975
        %v2002 = vadd.f32 %v1946, %v1980
        %v2003 = vadd.f32 %v1947, %v1980
        %v2004 = vadd.f32 %v1948, %v1985
        %v2005 = vadd.f32 %v1949, %v1985
        %v2006 = vadd.f32 %v1950, %v1990
        %v2007 = vadd.f32 %v1951, %v1990
        %v2008 = vxor.u32 %v1992, 2147483648
        %v2009 = vxor.u32 %v1993, 2147483648
        %v2010 = vxor.u32 %v1994, 2147483648
        %v2011 = vxor.u32 %v1995, 2147483648
        %v2012 = vxor.u32 %v1996, 2147483648
        %v2013 = vxor.u32 %v1997, 2147483648
        %v2014 = vxor.u32 %v1998, 2147483648
        %v2015 = vxor.u32 %v1999, 2147483648
        %v2016 = vxor.u32 %v2000, 2147483648
        %v2017 = vxor.u32 %v2001, 2147483648
        %v2018 = vxor.u32 %v2002, 2147483648
        %v2019 = vxor.u32 %v2003, 2147483648
        %v2020 = vxor.u32 %v2004, 2147483648
        %v2021 = vxor.u32 %v2005, 2147483648
        %v2022 = vxor.u32 %v2006, 2147483648
        %v2023 = vxor.u32 %v2007, 2147483648
        %v2024 = vmul.f32 %v2008, 1.442695
        %v2025 = vpow.pop %v2024
        %v2026 = vmul.f32 %v2009, 1.442695
        %v2027 = vpow.pop %v2026
        %v2028 = vmul.f32 %v2010, 1.442695
        %v2029 = vpow.pop %v2028
        %v2030 = vmul.f32 %v2011, 1.442695
        %v2031 = vpow.pop %v2030
        %v2032 = vmul.f32 %v2012, 1.442695
        %v2033 = vpow.pop %v2032
        %v2034 = vmul.f32 %v2013, 1.442695
        %v2035 = vpow.pop %v2034
        %v2036 = vmul.f32 %v2014, 1.442695
        %v2037 = vpow.pop %v2036
        %v2038 = vmul.f32 %v2015, 1.442695
        %v2039 = vpow.pop %v2038
        %v2040 = vmul.f32 %v2016, 1.442695
        %v2041 = vpow.pop %v2040
        %v2042 = vmul.f32 %v2017, 1.442695
        %v2043 = vpow.pop %v2042
        %v2044 = vmul.f32 %v2018, 1.442695
        %v2045 = vpow.pop %v2044
        %v2046 = vmul.f32 %v2019, 1.442695
        %v2047 = vpow.pop %v2046
        %v2048 = vmul.f32 %v2020, 1.442695
        %v2049 = vpow.pop %v2048
        %v2050 = vmul.f32 %v2021, 1.442695
        %v2051 = vpow.pop %v2050
        %v2052 = vmul.f32 %v2022, 1.442695
        %v2053 = vpow.pop %v2052
        %v2054 = vmul.f32 %v2023, 1.442695
        %v2055 = vpow.pop %v2054
        %v2056 = vadd.f32 %v2025, 1.0
        %v2057 = vadd.f32 %v2027, 1.0
        %v2058 = vadd.f32 %v2029, 1.0
        %v2059 = vadd.f32 %v2031, 1.0
        %v2060 = vadd.f32 %v2033, 1.0
        %v2061 = vadd.f32 %v2035, 1.0
        %v2062 = vadd.f32 %v2037, 1.0
        %v2063 = vadd.f32 %v2039, 1.0
        %v2064 = vadd.f32 %v2041, 1.0
        %v2065 = vadd.f32 %v2043, 1.0
        %v2066 = vadd.f32 %v2045, 1.0
        %v2067 = vadd.f32 %v2047, 1.0
        %v2068 = vadd.f32 %v2049, 1.0
        %v2069 = vadd.f32 %v2051, 1.0
        %v2070 = vadd.f32 %v2053, 1.0
        %v2071 = vadd.f32 %v2055, 1.0
        %v2072 = vrcp.pop %v2056
        %v2073 = vmul.f32 1.0, %v2072
        %v2074 = vrcp.pop %v2057
        %v2075 = vmul.f32 1.0, %v2074
        %v2076 = vrcp.pop %v2058
        %v2077 = vmul.f32 1.0, %v2076
        %v2078 = vrcp.pop %v2059
        %v2079 = vmul.f32 1.0, %v2078
        %v2080 = vrcp.pop %v2060
        %v2081 = vmul.f32 1.0, %v2080
        %v2082 = vrcp.pop %v2061
        %v2083 = vmul.f32 1.0, %v2082
        %v2084 = vrcp.pop %v2062
        %v2085 = vmul.f32 1.0, %v2084
        %v2086 = vrcp.pop %v2063
        %v2087 = vmul.f32 1.0, %v2086
        %v2088 = vrcp.pop %v2064
        %v2089 = vmul.f32 1.0, %v2088
        %v2090 = vrcp.pop %v2065
        %v2091 = vmul.f32 1.0, %v2090
        %v2092 = vrcp.pop %v2066
        %v2093 = vmul.f32 1.0, %v2092
        %v2094 = vrcp.pop %v2067
        %v2095 = vmul.f32 1.0, %v2094
        %v2096 = vrcp.pop %v2068
        %v2097 = vmul.f32 1.0, %v2096
        %v2098 = vrcp.pop %v2069
        %v2099 = vmul.f32 1.0, %v2098
        %v2100 = vrcp.pop %v2070
        %v2101 = vmul.f32 1.0, %v2100
        %v2102 = vrcp.pop %v2071
        %v2103 = vmul.f32 1.0, %v2102
        %v2104 = vmul.f32 %v1992, %v2073
        %v2105 = vmul.f32 %v1993, %v2075
        %v2106 = vmul.f32 %v1994, %v2077
        %v2107 = vmul.f32 %v1995, %v2079
        %v2108 = vmul.f32 %v1996, %v2081
        %v2109 = vmul.f32 %v1997, %v2083
        %v2110 = vmul.f32 %v1998, %v2085
        %v2111 = vmul.f32 %v1999, %v2087
        %v2112 = vmul.f32 %v2000, %v2089
        %v2113 = vmul.f32 %v2001, %v2091
        %v2114 = vmul.f32 %v2002, %v2093
        %v2115 = vmul.f32 %v2003, %v2095
        %v2116 = vmul.f32 %v2004, %v2097
        %v2117 = vmul.f32 %v2005, %v2099
        %v2118 = vmul.f32 %v2006, %v2101
        %v2119 = vmul.f32 %v2007, %v2103
        %2121 = vset.pattern.permute.xlu0 0
        %2122 = vperm.xlu0 %2121, %v465
        %v2123 = vpop.permute.xlu0 %2122
        %2126 = vset.pattern.permute.xlu0 0
        %2127 = vperm.xlu0 %2126, %v466
        %v2128 = vpop.permute.xlu0 %2127
        %2131 = vset.pattern.permute.xlu0 0
        %2132 = vperm.xlu0 %2131, %v467
        %v2133 = vpop.permute.xlu0 %2132
        %2136 = vset.pattern.permute.xlu0 0
        %2137 = vperm.xlu0 %2136, %v468
        %v2138 = vpop.permute.xlu0 %2137
        %2141 = vset.pattern.permute.xlu0 0
        %2142 = vperm.xlu0 %2141, %v469
        %v2143 = vpop.permute.xlu0 %2142
        %2146 = vset.pattern.permute.xlu0 0
        %2147 = vperm.xlu0 %2146, %v470
        %v2148 = vpop.permute.xlu0 %2147
        %2151 = vset.pattern.permute.xlu0 0
        %2152 = vperm.xlu0 %2151, %v471
        %v2153 = vpop.permute.xlu0 %2152
        %2156 = vset.pattern.permute.xlu0 0
        %2157 = vperm.xlu0 %2156, %v472
        %v2158 = vpop.permute.xlu0 %2157
        %v2161 = vsel %vm505, %v457, 0
        %v2164 = vsel %vm505, %v458, 0
        %v2167 = vsel %vm505, %v459, 0
        %v2170 = vsel %vm505, %v460, 0
        %v2173 = vsel %vm505, %v461, 0
        %v2176 = vsel %vm505, %v462, 0
        %v2179 = vsel %vm505, %v463, 0
        %v2182 = vsel %vm505, %v464, 0
        %2184 = vmatprep.subr.mxu0 %v2105
        %2185 = vmatpush1.msra.mxu0 %v2104
        %2186 = vmatprep.subr.mxu0 %v2107
        %2187 = vmatpush1.msra.mxu0 %v2106
        %2188 = vmatprep.subr.mxu0 %v2109
        %2189 = vmatpush1.msra.mxu0 %v2108
        %2190 = vmatprep.subr.mxu0 %v2111
        %2191 = vmatpush1.msra.mxu0 %v2110
        %2192 = vmatprep.subr.mxu0 %v2113
        %2193 = vmatpush1.msra.mxu0 %v2112
        %2194 = vmatprep.subr.mxu0 %v2115
        %2195 = vmatpush1.msra.mxu0 %v2114
        %2196 = vmatprep.subr.mxu0 %v2117
        %2197 = vmatpush1.msra.mxu0 %v2116
        %2198 = vmatprep.subr.mxu0 %v2119
        %2199 = vmatpush1.msra.mxu0 %v2118
        %2200 = vmatprep.subr.mxu0 0.0
        %2201 = vmatpush1.msra.mxu0 0.0
        %2202 = vmatprep.subr.mxu0 0.0
        %2203 = vmatpush1.msra.mxu0 0.0
        %2204 = vmatprep.subr.mxu0 0.0
        %2205 = vmatpush1.msra.mxu0 0.0
        %2206 = vmatprep.subr.mxu0 0.0
        %2207 = vmatpush1.msra.mxu0 0.0
        %2208 = vmatprep.subr.mxu0 0.0
        %2209 = vmatpush1.msra.mxu0 0.0
        %2210 = vmatprep.subr.mxu0 0.0
        %2211 = vmatpush1.msra.mxu0 0.0
        %2212 = vmatprep.subr.mxu0 0.0
        %2213 = vmatpush1.msra.mxu0 0.0
        %2214 = vmatprep.subr.mxu0 0.0
        %2215 = vmatpush1.msra.mxu0 0.0
        %2216 = vmatprep.subr.mxu0 0.0
        %2217 = vmatpush1.msra.mxu0 0.0
        %2218 = vmatprep.subr.mxu0 0.0
        %2219 = vmatpush1.msra.mxu0 0.0
        %2220 = vmatprep.subr.mxu0 0.0
        %2221 = vmatpush1.msra.mxu0 0.0
        %2222 = vmatprep.subr.mxu0 0.0
        %2223 = vmatpush1.msra.mxu0 0.0
        %2224 = vmatprep.subr.mxu0 0.0
        %2225 = vmatpush1.msra.mxu0 0.0
        %2226 = vmatprep.subr.mxu0 0.0
        %2227 = vmatpush1.msra.mxu0 0.0
        %2228 = vmatprep.subr.mxu0 0.0
        %2229 = vmatpush1.msra.mxu0 0.0
        %2230 = vmatprep.subr.mxu0 0.0
        %2231 = vmatpush1.msra.mxu0 0.0
        %2232 = vmatprep.subr.mxu0 0.0
        %2233 = vmatpush1.msra.mxu0 0.0
        %2234 = vmatprep.subr.mxu0 0.0
        %2235 = vmatpush1.msra.mxu0 0.0
        %2236 = vmatprep.subr.mxu0 0.0
        %2237 = vmatpush1.msra.mxu0 0.0
        %2238 = vmatprep.subr.mxu0 0.0
        %2239 = vmatpush1.msra.mxu0 0.0
        %2240 = vmatprep.subr.mxu0 0.0
        %2241 = vmatpush1.msra.mxu0 0.0
        %2242 = vmatprep.subr.mxu0 0.0
        %2243 = vmatpush1.msra.mxu0 0.0
        %2244 = vmatprep.subr.mxu0 0.0
        %2245 = vmatpush1.msra.mxu0 0.0
        %2246 = vmatprep.subr.mxu0 0.0
        %2247 = vmatpush1.msra.mxu0 0.0
        %2248 = vmatprep.mubr.f32.mxu0 0.0
        %2249 = vmatmul.mubr.f32.gmra.mrb[0].mxu0 %v2161
        %v2250 = vpop.f32.mrb[0].mxu0
        %v2251 = vadd.f32 %v2123, %v2250
        %v2252 = vpop.f32.mrb[0].mxu0
        %v2253 = vadd.f32 %v2123, %v2252
        %2254 = vmatprep.mubr.f32.mxu0 0.0
        %2255 = vmatmul.mubr.f32.gmra.mrb[0].mxu0 %v2164
        %v2256 = vpop.f32.mrb[0].mxu0
        %v2257 = vadd.f32 %v2128, %v2256
        %v2258 = vpop.f32.mrb[0].mxu0
        %v2259 = vadd.f32 %v2128, %v2258
        %2260 = vmatprep.mubr.f32.mxu0 0.0
        %2261 = vmatmul.mubr.f32.gmra.mrb[0].mxu0 %v2167
        %v2262 = vpop.f32.mrb[0].mxu0
        %v2263 = vadd.f32 %v2133, %v2262
        %v2264 = vpop.f32.mrb[0].mxu0
        %v2265 = vadd.f32 %v2133, %v2264
        %2266 = vmatprep.mubr.f32.mxu0 0.0
        %2267 = vmatmul.mubr.f32.gmra.mrb[0].mxu0 %v2170
        %v2268 = vpop.f32.mrb[0].mxu0
        %v2269 = vadd.f32 %v2138, %v2268
        %v2270 = vpop.f32.mrb[0].mxu0
        %v2271 = vadd.f32 %v2138, %v2270
        %2272 = vmatprep.mubr.f32.mxu0 0.0
        %2273 = vmatmul.mubr.f32.gmra.mrb[0].mxu0 %v2173
        %v2274 = vpop.f32.mrb[0].mxu0
        %v2275 = vadd.f32 %v2143, %v2274
        %v2276 = vpop.f32.mrb[0].mxu0
        %v2277 = vadd.f32 %v2143, %v2276
        %2278 = vmatprep.mubr.f32.mxu0 0.0
        %2279 = vmatmul.mubr.f32.gmra.mrb[0].mxu0 %v2176
        %v2280 = vpop.f32.mrb[0].mxu0
        %v2281 = vadd.f32 %v2148, %v2280
        %v2282 = vpop.f32.mrb[0].mxu0
        %v2283 = vadd.f32 %v2148, %v2282
        %2284 = vmatprep.mubr.f32.mxu0 0.0
        %2285 = vmatmul.mubr.f32.gmra.mrb[0].mxu0 %v2179
        %v2286 = vpop.f32.mrb[0].mxu0
        %v2287 = vadd.f32 %v2153, %v2286
        %v2288 = vpop.f32.mrb[0].mxu0
        %v2289 = vadd.f32 %v2153, %v2288
        %2290 = vmatprep.mubr.f32.mxu0 0.0
        %2291 = vmatmul.mubr.f32.gmra.mrb[0].mxu0 %v2182
        %v2292 = vpop.f32.mrb[0].mxu0
        %v2293 = vadd.f32 %v2158, %v2292
        %v2294 = vpop.f32.mrb[0].mxu0
        %v2295 = vadd.f32 %v2158, %v2294
        %2296 = vdwg.mxu0
        %v2297 = vadd.f32 %v473, %v2251
        %v2298 = vadd.f32 %v474, %v2253
        %v2299 = vadd.f32 %v475, %v2257
        %v2300 = vadd.f32 %v476, %v2259
        %v2301 = vadd.f32 %v477, %v2263
        %v2302 = vadd.f32 %v478, %v2265
        %v2303 = vadd.f32 %v479, %v2269
        %v2304 = vadd.f32 %v480, %v2271
        %v2305 = vadd.f32 %v481, %v2275
        %v2306 = vadd.f32 %v482, %v2277
        %v2307 = vadd.f32 %v483, %v2281
        %v2308 = vadd.f32 %v484, %v2283
        %v2309 = vadd.f32 %v485, %v2287
        %v2310 = vadd.f32 %v486, %v2289
        %v2311 = vadd.f32 %v487, %v2293
        %v2312 = vadd.f32 %v488, %v2295
        %2313 = vst [vmem:[%s394] sm:$0xff] %v2297
        %2314 = vst [vmem:[%s394 + $0x8] sm:$0xff] %v2298
        %2315 = vst [vmem:[%s394 + $0x10] sm:$0xff] %v2299
        %2316 = vst [vmem:[%s394 + $0x18] sm:$0xff] %v2300
        %2317 = vst [vmem:[%s394 + $0x20] sm:$0xff] %v2301
        %2318 = vst [vmem:[%s394 + $0x28] sm:$0xff] %v2302
        %2319 = vst [vmem:[%s394 + $0x30] sm:$0xff] %v2303
        %2320 = vst [vmem:[%s394 + $0x38] sm:$0xff] %v2304
        %2321 = vst [vmem:[%s394 + $0x40] sm:$0xff] %v2305
        %2322 = vst [vmem:[%s394 + $0x48] sm:$0xff] %v2306
        %2323 = vst [vmem:[%s394 + $0x50] sm:$0xff] %v2307
        %2324 = vst [vmem:[%s394 + $0x58] sm:$0xff] %v2308
        %2325 = vst [vmem:[%s394 + $0x60] sm:$0xff] %v2309
        %2326 = vst [vmem:[%s394 + $0x68] sm:$0xff] %v2310
        %2327 = vst [vmem:[%s394 + $0x70] sm:$0xff] %v2311
        %2328 = vst [vmem:[%s394 + $0x78] sm:$0xff] %v2312
        %s2329 = sand.u32 %s274, 1
        %s2330 = scalar_lea.sflag [#allocation3], %s2329
        %s2331 = sand.u32 %s274, 1
        %s2332 = smul.addr %s2331, 128
        %s2333 = scalar_lea.vmem [#allocation2], %s2332
        // Predicated region
        $region65: #{tpu_custom_call.1} parent=63 // pred_check
          %p2334 = pneg %p284
        $region66: #{tpu_custom_call.1} parent=63 // pred_check_branch
          %2336 = sbr.rel (%p2334) target = $region68
        $region67: #{tpu_custom_call.1} parent=63 // pred_region
          %s2338 = ssub.s32 2048, 2048
          %2339 = vsyncadd %s2330, %s2338
          %s2340 = smul.addr %s25, 16
          %s2341 = smul.addr %s2340, 128
          %s2342 = scalar_lea.hbm %s11, %s2341
          %s2343 = sshll.u32 %s2333, 4
          %s2344 = int_to_ptr.vmem [resolvable:$true] %s2343
          %2349 = dma.vmem_to_hbm [thread:$0]  %s2344, 2048, %s2342, %s2330, 256, 256, 16
        $region68: #{tpu_custom_call.1} parent=63 // pred_fallthru
          _
      $region64: #{tpu_custom_call.1} parent=5 // pred_fallthru
        _
      %p2350 = scmp.le.s32.totalorder 2, %s20
      // Predicated region
      $region69: #{tpu_custom_call.1} parent=5 // pred_check
        %p2351 = pneg %p2350
      $region70: #{tpu_custom_call.1} parent=5 // pred_check_branch
        %2353 = sbr.rel (%p2351) target = $region72
      $region71: #{tpu_custom_call.1} parent=5 // pred_region
        %s2354 = ssub.s32 %s20, 2
        // Predicated region
        $region73: #{tpu_custom_call.1} parent=71 // pred_check
          %p2355 = pneg %p290
        $region74: #{tpu_custom_call.1} parent=71 // pred_check_branch
          %2357 = sbr.rel (%p2355) target = $region76
        $region75: #{tpu_custom_call.1} parent=71 // pred_region
          %s2358 = sand.u32 %s275, 1
          %s2359 = scalar_lea.sflag [#allocation3], %s2358
          %s2360 = sand.u32 %s275, 1
          %s2361 = smul.addr %s2360, 128
          %s2362 = scalar_lea.vmem [#allocation2], %s2361
          %2363 = dma.done %s2359, 2048
        $region76: #{tpu_custom_call.1} parent=71 // pred_fallthru
          _
      $region72: #{tpu_custom_call.1} parent=5 // pred_fallthru
        _
    $region6: #{tpu_custom_call.1} parent=1 // loop_footer
      %s24 = sadd.s32 1, %s20
    $region7: #{tpu_custom_call.1} parent=1 // loop_footer_branch
      %19 = sbr.rel target = $region3
    $region8: #{tpu_custom_call.1} parent=1 // loop_exit
      _
    %2364 = vsyncpa [#allocation3], 1
    %s2365 = scalar_lea.sflag [#allocation3], 1
    %2366 = vsyncpa %s2365, 1

// kernel: tpu_custom_call.1
$region0: #{tpu_custom_call.1}
  #allocation0 [shape = 'u32[]', space=smem, size = 0x4, offset = 0x4, fixed_abs, tag = 'smem constant byte address 0x4 - core index']
  #allocation1 [shape = 'u32[144,128]{1,0:T(1,128)}', space=vmem, size = 0x12000, scoped, tag = 'internal scratch']
  %s0 = inlined_call_operand.vmem [shape: f32[2,64,256], index: 0, kind: input, shape index: {}]
  %s1 = inlined_call_operand.vmem [shape: f32[2,64,1], index: 1, kind: input, shape index: {}]
  %s2 = inlined_call_operand.vmem [shape: f32[64,32], index: 2, kind: input, shape index: {}]
  %s3 = inlined_call_operand.vmem [shape: f32[32,64], index: 3, kind: input, shape index: {}]
  %s4 = inlined_call_operand.vmem [shape: f32[64,1], index: 4, kind: input, shape index: {}]
  %s5 = inlined_call_operand.vmem [shape: f32[64,1], index: 5, kind: input, shape index: {}]
  %s6 = inlined_call_operand.vmem [shape: f32[64,64], index: 6, kind: input, shape index: {}]
  %s7 = inlined_call_operand.vmem [shape: f32[64,1], index: 7, kind: input, shape index: {}]
  %s8 = inlined_call_operand.vmem [shape: f32[64,1], index: 8, kind: input, shape index: {}]
  %s9 = inlined_call_operand.vmem [shape: f32[64,64], index: 9, kind: input, shape index: {}]
  %s10 = inlined_call_operand.vmem [shape: f32[64,1], index: 10, kind: input, shape index: {}]
  %s11 = inlined_call_operand.hbm [shape: f32[2,64,256], index: 11, kind: output, shape index: {}]
  %s12 = sld [smem:[#allocation0]]
  $region77: #{tpu_custom_call.1} parent=0
    _
  %s14 = ssub.s32 1, %s12
  %s15 = scalar_select 0, %s14, %s12
  $region1: #{tpu_custom_call.1} parent=0
    #allocation2 [shape = 'u8[131072]{0}', space=vmem, size = 0x20000, scoped, tag = 'output window, operand 0']
    #allocation3 [shape = 's32[2]{0}', space=sflag, size = 0x8, scoped, tag = 'scoped memory for tpu_custom_call.1']
    %16 = vsyncpa [#allocation3], 0
    %s17 = scalar_lea.sflag [#allocation3], 1
    %18 = vsyncpa %s17, 0
    loop: start=0, step=1, limit=4
    $region2: #{tpu_custom_call.1} parent=1 // loop_pre_header
      _
    $region3: #{tpu_custom_call.1} parent=1 // loop_header
      %s20 = sphi 0, %s24
      %p21 = scmp.ge.s32.totalorder %s20, 4
      %s30 = sphi 0, %s32
      %s33 = sphi 0, %s30
      %s34 = sphi 0, %s33
      %s50 = sphi 0, %s34
      %s56 = sphi 0, %s58
      %s59 = sphi 0, %s56
      %s60 = sphi 0, %s59
      %s76 = sphi 0, %s60
      %s80 = sphi 0, %s80
      %s82 = sphi 0, %s80
      %s83 = sphi 0, %s82
      %s97 = sphi 0, %s83
      %s101 = sphi 0, %s101
      %s103 = sphi 0, %s101
      %s104 = sphi 0, %s103
      %s118 = sphi 0, %s104
      %s122 = sphi 0, %s122
      %s124 = sphi 0, %s122
      %s125 = sphi 0, %s124
      %s139 = sphi 0, %s125
      %s143 = sphi 0, %s143
      %s145 = sphi 0, %s143
      %s146 = sphi 0, %s145
      %s160 = sphi 0, %s146
      %s164 = sphi 0, %s164
      %s166 = sphi 0, %s164
      %s167 = sphi 0, %s166
      %s181 = sphi 0, %s167
      %s185 = sphi 0, %s185
      %s187 = sphi 0, %s185
      %s188 = sphi 0, %s187
      %s202 = sphi 0, %s188
      %s206 = sphi 0, %s206
      %s208 = sphi 0, %s206
      %s209 = sphi 0, %s208
      %s223 = sphi 0, %s209
      %s227 = sphi 0, %s227
      %s229 = sphi 0, %s227
      %s230 = sphi 0, %s229
      %s244 = sphi 0, %s230
      %s248 = sphi 0, %s248
      %s250 = sphi 0, %s248
      %s251 = sphi 0, %s250
      %s265 = sphi 0, %s251
      %s271 = sphi 0, %s273
      %s274 = sphi 0, %s271
      %s275 = sphi 0, %s274
      %s291 = sphi 0, %s275
    $region4: #{tpu_custom_call.1} parent=1 // loop_header_branch
      %23 = sbr.rel (%p21) target = $region8
    $region5: #{tpu_custom_call.1} parent=1 // loop_body
      %s25 = ssub.s32 %s20, 1
      %s26 = ssub.s32 %s20, 2
      %s27 = sadd.s32 %s20, 1
      %s28 = ssub.s32 %s20, %s27
      %p29 = scmp.eq.s32.totalorder %s28, 0
      %s31 = sadd.s32 %s30, 1
      %s32 = scalar_select %p29, %s30, %s31
      %p35 = pneg %p29
      %p36 = scmp.eq.s32.totalorder %s20, 1
      %p37 = por %p35, %p36
      %p38 = scmp.ne.s32.totalorder %s30, %s33
      %p39 = scmp.eq.s32.totalorder %s20, 0
      %p40 = por %p38, %p39
      %p41 = scmp.ne.s32.totalorder %s30, %s33
      %p42 = scmp.eq.s32.totalorder %s25, 1
      %p43 = por %p41, %p42
      %p44 = scmp.ne.s32.totalorder %s33, %s34
      %p45 = scmp.eq.s32.totalorder %s25, 0
      %p46 = por %p44, %p45
      %p47 = scmp.ne.s32.totalorder %s33, %s34
      %p48 = scmp.eq.s32.totalorder %s26, 1
      %p49 = por %p47, %p48
      %p51 = scmp.ne.s32.totalorder %s34, %s50
      %p52 = scmp.eq.s32.totalorder %s26, 0
      %p53 = por %p51, %p52
      %s54 = ssub.s32 %s20, %s27
      %p55 = scmp.eq.s32.totalorder %s54, 0
      %s57 = sadd.s32 %s56, 1
      %s58 = scalar_select %p55, %s56, %s57
      %p61 = pneg %p55
      %p62 = scmp.eq.s32.totalorder %s20, 1
      %p63 = por %p61, %p62
      %p64 = scmp.ne.s32.totalorder %s56, %s59
      %p65 = scmp.eq.s32.totalorder %s20, 0
      %p66 = por %p64, %p65
      %p67 = scmp.ne.s32.totalorder %s56, %s59
      %p68 = scmp.eq.s32.totalorder %s25, 1
      %p69 = por %p67, %p68
      %p70 = scmp.ne.s32.totalorder %s59, %s60
      %p71 = scmp.eq.s32.totalorder %s25, 0
      %p72 = por %p70, %p71
      %p73 = scmp.ne.s32.totalorder %s59, %s60
      %p74 = scmp.eq.s32.totalorder %s26, 1
      %p75 = por %p73, %p74
      %p77 = scmp.ne.s32.totalorder %s60, %s76
      %p78 = scmp.eq.s32.totalorder %s26, 0
      %p79 = por %p77, %p78
      %s81 = sadd.s32 %s80, 1
      %p84 = scmp.eq.s32.totalorder %s20, 1
      %p85 = scmp.ne.s32.totalorder %s80, %s82
      %p86 = scmp.eq.s32.totalorder %s20, 0
      %p87 = por %p85, %p86
      %p88 = scmp.ne.s32.totalorder %s80, %s82
      %p89 = scmp.eq.s32.totalorder %s25, 1
      %p90 = por %p88, %p89
      %p91 = scmp.ne.s32.totalorder %s82, %s83
      %p92 = scmp.eq.s32.totalorder %s25, 0
      %p93 = por %p91, %p92
      %p94 = scmp.ne.s32.totalorder %s82, %s83
      %p95 = scmp.eq.s32.totalorder %s26, 1
      %p96 = por %p94, %p95
      %p98 = scmp.ne.s32.totalorder %s83, %s97
      %p99 = scmp.eq.s32.totalorder %s26, 0
      %p100 = por %p98, %p99
      %s102 = sadd.s32 %s101, 1
      %p105 = scmp.eq.s32.totalorder %s20, 1
      %p106 = scmp.ne.s32.totalorder %s101, %s103
      %p107 = scmp.eq.s32.totalorder %s20, 0
      %p108 = por %p106, %p107
      %p109 = scmp.ne.s32.totalorder %s101, %s103
      %p110 = scmp.eq.s32.totalorder %s25, 1
      %p111 = por %p109, %p110
      %p112 = scmp.ne.s32.totalorder %s103, %s104
      %p113 = scmp.eq.s32.totalorder %s25, 0
      %p114 = por %p112, %p113
      %p115 = scmp.ne.s32.totalorder %s103, %s104
      %p116 = scmp.eq.s32.totalorder %s26, 1
      %p117 = por %p115, %p116
      %p119 = scmp.ne.s32.totalorder %s104, %s118
      %p120 = scmp.eq.s32.totalorder %s26, 0
      %p121 = por %p119, %p120
      %s123 = sadd.s32 %s122, 1
      %p126 = scmp.eq.s32.totalorder %s20, 1
      %p127 = scmp.ne.s32.totalorder %s122, %s124
      %p128 = scmp.eq.s32.totalorder %s20, 0
      %p129 = por %p127, %p128
      %p130 = scmp.ne.s32.totalorder %s122, %s124
      %p131 = scmp.eq.s32.totalorder %s25, 1
      %p132 = por %p130, %p131
      %p133 = scmp.ne.s32.totalorder %s124, %s125
      %p134 = scmp.eq.s32.totalorder %s25, 0
      %p135 = por %p133, %p134
      %p136 = scmp.ne.s32.totalorder %s124, %s125
      %p137 = scmp.eq.s32.totalorder %s26, 1
      %p138 = por %p136, %p137
      %p140 = scmp.ne.s32.totalorder %s125, %s139
      %p141 = scmp.eq.s32.totalorder %s26, 0
      %p142 = por %p140, %p141
      %s144 = sadd.s32 %s143, 1
      %p147 = scmp.eq.s32.totalorder %s20, 1
      %p148 = scmp.ne.s32.totalorder %s143, %s145
      %p149 = scmp.eq.s32.totalorder %s20, 0
      %p150 = por %p148, %p149
      %p151 = scmp.ne.s32.totalorder %s143, %s145
      %p152 = scmp.eq.s32.totalorder %s25, 1
      %p153 = por %p151, %p152
      %p154 = scmp.ne.s32.totalorder %s145, %s146
      %p155 = scmp.eq.s32.totalorder %s25, 0
      %p156 = por %p154, %p155
      %p157 = scmp.ne.s32.totalorder %s145, %s146
      %p158 = scmp.eq.s32.totalorder %s26, 1
      %p159 = por %p157, %p158
      %p161 = scmp.ne.s32.totalorder %s146, %s160
      %p162 = scmp.eq.s32.totalorder %s26, 0
      %p163 = por %p161, %p162
      %s165 = sadd.s32 %s164, 1
      %p168 = scmp.eq.s32.totalorder %s20, 1
      %p169 = scmp.ne.s32.totalorder %s164, %s166
      %p170 = scmp.eq.s32.totalorder %s20, 0
      %p171 = por %p169, %p170
      %p172 = scmp.ne.s32.totalorder %s164, %s166
      %p173 = scmp.eq.s32.totalorder %s25, 1
      %p174 = por %p172, %p173
      %p175 = scmp.ne.s32.totalorder %s166, %s167
      %p176 = scmp.eq.s32.totalorder %s25, 0
      %p177 = por %p175, %p176
      %p178 = scmp.ne.s32.totalorder %s166, %s167
      %p179 = scmp.eq.s32.totalorder %s26, 1
      %p180 = por %p178, %p179
      %p182 = scmp.ne.s32.totalorder %s167, %s181
      %p183 = scmp.eq.s32.totalorder %s26, 0
      %p184 = por %p182, %p183
      %s186 = sadd.s32 %s185, 1
      %p189 = scmp.eq.s32.totalorder %s20, 1
      %p190 = scmp.ne.s32.totalorder %s185, %s187
      %p191 = scmp.eq.s32.totalorder %s20, 0
      %p192 = por %p190, %p191
      %p193 = scmp.ne.s32.totalorder %s185, %s187
      %p194 = scmp.eq.s32.totalorder %s25, 1
      %p195 = por %p193, %p194
      %p196 = scmp.ne.s32.totalorder %s187, %s188
      %p197 = scmp.eq.s32.totalorder %s25, 0
      %p198 = por %p196, %p197
      %p199 = scmp.ne.s32.totalorder %s187, %s188
      %p200 = scmp.eq.s32.totalorder %s26, 1
      %p201 = por %p199, %p200
      %p203 = scmp.ne.s32.totalorder %s188, %s202
      %p204 = scmp.eq.s32.totalorder %s26, 0
      %p205 = por %p203, %p204
      %s207 = sadd.s32 %s206, 1
      %p210 = scmp.eq.s32.totalorder %s20, 1
      %p211 = scmp.ne.s32.totalorder %s206, %s208
      %p212 = scmp.eq.s32.totalorder %s20, 0
      %p213 = por %p211, %p212
      %p214 = scmp.ne.s32.totalorder %s206, %s208
      %p215 = scmp.eq.s32.totalorder %s25, 1
      %p216 = por %p214, %p215
      %p217 = scmp.ne.s32.totalorder %s208, %s209
      %p218 = scmp.eq.s32.totalorder %s25, 0
      %p219 = por %p217, %p218
      %p220 = scmp.ne.s32.totalorder %s208, %s209
      %p221 = scmp.eq.s32.totalorder %s26, 1
      %p222 = por %p220, %p221
      %p224 = scmp.ne.s32.totalorder %s209, %s223
      %p225 = scmp.eq.s32.totalorder %s26, 0
      %p226 = por %p224, %p225
      %s228 = sadd.s32 %s227, 1
      %p231 = scmp.eq.s32.totalorder %s20, 1
      %p232 = scmp.ne.s32.totalorder %s227, %s229
      %p233 = scmp.eq.s32.totalorder %s20, 0
      %p234 = por %p232, %p233
      %p235 = scmp.ne.s32.totalorder %s227, %s229
      %p236 = scmp.eq.s32.totalorder %s25, 1
      %p237 = por %p235, %p236
      %p238 = scmp.ne.s32.totalorder %s229, %s230
      %p239 = scmp.eq.s32.totalorder %s25, 0
      %p240 = por %p238, %p239
      %p241 = scmp.ne.s32.totalorder %s229, %s230
      %p242 = scmp.eq.s32.totalorder %s26, 1
      %p243 = por %p241, %p242
      %p245 = scmp.ne.s32.totalorder %s230, %s244
      %p246 = scmp.eq.s32.totalorder %s26, 0
      %p247 = por %p245, %p246
      %s249 = sadd.s32 %s248, 1
      %p252 = scmp.eq.s32.totalorder %s20, 1
      %p253 = scmp.ne.s32.totalorder %s248, %s250
      %p254 = scmp.eq.s32.totalorder %s20, 0
      %p255 = por %p253, %p254
      %p256 = scmp.ne.s32.totalorder %s248, %s250
      %p257 = scmp.eq.s32.totalorder %s25, 1
      %p258 = por %p256, %p257
      %p259 = scmp.ne.s32.totalorder %s250, %s251
      %p260 = scmp.eq.s32.totalorder %s25, 0
      %p261 = por %p259, %p260
      %p262 = scmp.ne.s32.totalorder %s250, %s251
      %p263 = scmp.eq.s32.totalorder %s26, 1
      %p264 = por %p262, %p263
      %p266 = scmp.ne.s32.totalorder %s251, %s265
      %p267 = scmp.eq.s32.totalorder %s26, 0
      %p268 = por %p266, %p267
      %s269 = ssub.s32 %s20, %s27
      %p270 = scmp.eq.s32.totalorder %s269, 0
      %s272 = sadd.s32 %s271, 1
      %s273 = scalar_select %p270, %s271, %s272
      %p276 = pneg %p270
      %p277 = scmp.eq.s32.totalorder %s20, 1
      %p278 = por %p276, %p277
      %p279 = scmp.ne.s32.totalorder %s271, %s274
      %p280 = scmp.eq.s32.totalorder %s20, 0
      %p281 = por %p279, %p280
      %p282 = scmp.ne.s32.totalorder %s271, %s274
      %p283 = scmp.eq.s32.totalorder %s25, 1
      %p284 = por %p282, %p283
      %p285 = scmp.ne.s32.totalorder %s274, %s275
      %p286 = scmp.eq.s32.totalorder %s25, 0
      %p287 = por %p285, %p286
      %p288 = scmp.ne.s32.totalorder %s274, %s275
      %p289 = scmp.eq.s32.totalorder %s26, 1
      %p290 = por %p288, %p289
      %p292 = scmp.ne.s32.totalorder %s275, %s291
      %p293 = scmp.eq.s32.totalorder %s26, 0
      %p294 = por %p292, %p293
      %p295 = scmp.le.s32.totalorder 1, %s20
      %p296 = scmp.lt.s32.totalorder %s20, 3
      %p297 = pnand %p295, %p296
      %p298 = pneg %p297
      // Predicated region
      $region9: #{tpu_custom_call.1} parent=5 // pred_check
        _
      $region10: #{tpu_custom_call.1} parent=5 // pred_check_branch
        %300 = sbr.rel (%p297) target = $region12
      $region11: #{tpu_custom_call.1} parent=5 // pred_region
        %s301 = ssub.s32 %s20, 1
        // Predicated region
        $region13: #{tpu_custom_call.1} parent=11 // pred_check
          %p302 = pneg %p93
        $region14: #{tpu_custom_call.1} parent=11 // pred_check_branch
          %304 = sbr.rel (%p302) target = $region16
        $region15: #{tpu_custom_call.1} parent=11 // pred_region
          _
        $region16: #{tpu_custom_call.1} parent=11 // pred_fallthru
          _
        // Predicated region
        $region17: #{tpu_custom_call.1} parent=11 // pred_check
          %p305 = pneg %p114
        $region18: #{tpu_custom_call.1} parent=11 // pred_check_branch
          %307 = sbr.rel (%p305) target = $region20
        $region19: #{tpu_custom_call.1} parent=11 // pred_region
          _
        $region20: #{tpu_custom_call.1} parent=11 // pred_fallthru
          _
        // Predicated region
        $region21: #{tpu_custom_call.1} parent=11 // pred_check
          %p308 = pneg %p135
        $region22: #{tpu_custom_call.1} parent=11 // pred_check_branch
          %310 = sbr.rel (%p308) target = $region24
        $region23: #{tpu_custom_call.1} parent=11 // pred_region
          _
        $region24: #{tpu_custom_call.1} parent=11 // pred_fallthru
          _
        // Predicated region
        $region25: #{tpu_custom_call.1} parent=11 // pred_check
          %p311 = pneg %p156
        $region26: #{tpu_custom_call.1} parent=11 // pred_check_branch
          %313 = sbr.rel (%p311) target = $region28
        $region27: #{tpu_custom_call.1} parent=11 // pred_region
          _
        $region28: #{tpu_custom_call.1} parent=11 // pred_fallthru
          _
        // Predicated region
        $region29: #{tpu_custom_call.1} parent=11 // pred_check
          %p314 = pneg %p177
        $region30: #{tpu_custom_call.1} parent=11 // pred_check_branch
          %316 = sbr.rel (%p314) target = $region32
        $region31: #{tpu_custom_call.1} parent=11 // pred_region
          _
        $region32: #{tpu_custom_call.1} parent=11 // pred_fallthru
          _
        // Predicated region
        $region33: #{tpu_custom_call.1} parent=11 // pred_check
          %p317 = pneg %p198
        $region34: #{tpu_custom_call.1} parent=11 // pred_check_branch
          %319 = sbr.rel (%p317) target = $region36
        $region35: #{tpu_custom_call.1} parent=11 // pred_region
          _
        $region36: #{tpu_custom_call.1} parent=11 // pred_fallthru
          _
        // Predicated region
        $region37: #{tpu_custom_call.1} parent=11 // pred_check
          %p320 = pneg %p219
        $region38: #{tpu_custom_call.1} parent=11 // pred_check_branch
          %322 = sbr.rel (%p320) target = $region40
        $region39: #{tpu_custom_call.1} parent=11 // pred_region
          _
        $region40: #{tpu_custom_call.1} parent=11 // pred_fallthru
          _
        // Predicated region
        $region41: #{tpu_custom_call.1} parent=11 // pred_check
          %p323 = pneg %p240
        $region42: #{tpu_custom_call.1} parent=11 // pred_check_branch
          %325 = sbr.rel (%p323) target = $region44
        $region43: #{tpu_custom_call.1} parent=11 // pred_region
          _
        $region44: #{tpu_custom_call.1} parent=11 // pred_fallthru
          _
        // Predicated region
        $region45: #{tpu_custom_call.1} parent=11 // pred_check
          %p326 = pneg %p261
        $region46: #{tpu_custom_call.1} parent=11 // pred_check_branch
          %328 = sbr.rel (%p326) target = $region48
        $region47: #{tpu_custom_call.1} parent=11 // pred_region
          _
        $region48: #{tpu_custom_call.1} parent=11 // pred_fallthru
          _
      $region12: #{tpu_custom_call.1} parent=5 // pred_fallthru
        _
      %p329 = scmp.lt.s32.totalorder %s20, 2
      // Predicated region
      $region49: #{tpu_custom_call.1} parent=5 // pred_check
        %p330 = pneg %p329
      $region50: #{tpu_custom_call.1} parent=5 // pred_check_branch
        %332 = sbr.rel (%p330) target = $region52
      $region51: #{tpu_custom_call.1} parent=5 // pred_region
        // Predicated region
        $region53: #{tpu_custom_call.1} parent=51 // pred_check
          %p333 = pneg %p40
        $region54: #{tpu_custom_call.1} parent=51 // pred_check_branch
          %335 = sbr.rel (%p333) target = $region56
        $region55: #{tpu_custom_call.1} parent=51 // pred_region
          %p336 = scmp.lt.s32.totalorder %s20, 1
          %s337 = scalar_select %p336, %s20, 1
          %s338 = smul.addr %s337, 16
          %s339 = smul.addr %s338, 8
          %s340 = scalar_lea.vmem %s0, %s339
        $region56: #{tpu_custom_call.1} parent=51 // pred_fallthru
          _
        // Predicated region
        $region57: #{tpu_custom_call.1} parent=51 // pred_check
          %p341 = pneg %p66
        $region58: #{tpu_custom_call.1} parent=51 // pred_check_branch
          %343 = sbr.rel (%p341) target = $region60
        $region59: #{tpu_custom_call.1} parent=51 // pred_region
          %p344 = scmp.lt.s32.totalorder %s20, 1
          %s345 = scalar_select %p344, %s20, 1
          %s346 = smul.addr %s345, 8
          %s347 = smul.addr %s346, 8
          %s348 = scalar_lea.vmem %s1, %s347
        $region60: #{tpu_custom_call.1} parent=51 // pred_fallthru
          _
      $region52: #{tpu_custom_call.1} parent=5 // pred_fallthru
        _
      %p349 = scmp.le.s32.totalorder 1, %s20
      %p350 = scmp.lt.s32.totalorder %s20, 3
      %p351 = pnand %p349, %p350
      %p352 = pneg %p351
      // Predicated region
      $region61: #{tpu_custom_call.1} parent=5 // pred_check
        _
      $region62: #{tpu_custom_call.1} parent=5 // pred_check_branch
        %354 = sbr.rel (%p351) target = $region64
      $region63: #{tpu_custom_call.1} parent=5 // pred_region
        %s355 = ssub.s32 %s20, 1
        %p356 = scmp.lt.s32.totalorder %s25, 1
        %s357 = scalar_select %p356, %s25, 1
        %s358 = smul.addr %s357, 16
        %s359 = smul.addr %s358, 8
        %s360 = scalar_lea.vmem %s0, %s359
        %p361 = pneg %p46
        %p362 = pneg %p43
        %p363 = scmp.lt.s32.totalorder %s25, 1
        %s364 = scalar_select %p363, %s25, 1
        %s365 = smul.addr %s364, 8
        %s366 = smul.addr %s365, 8
        %s367 = scalar_lea.vmem %s1, %s366
        %p368 = pneg %p72
        %p369 = pneg %p69
        %p370 = pneg %p93
        %p371 = pneg %p90
        %p372 = pneg %p114
        %p373 = pneg %p111
        %p374 = pneg %p135
        %p375 = pneg %p132
        %p376 = pneg %p156
        %p377 = pneg %p153
        %p378 = pneg %p177
        %p379 = pneg %p174
        %p380 = pneg %p198
        %p381 = pneg %p195
        %p382 = pneg %p219
        %p383 = pneg %p216
        %p384 = pneg %p240
        %p385 = pneg %p237
        %p386 = pneg %p261
        %p387 = pneg %p258
        %p388 = pneg %p287
        %p389 = pneg %p284
        %s390 = sand.u32 %s274, 1
        %s391 = scalar_lea.sflag [#allocation3], %s390
        %s392 = sand.u32 %s274, 1
        %s393 = smul.addr %s392, 128
        %s394 = scalar_lea.vmem [#allocation2], %s393
        %p395 = scmp.lt.s32.totalorder %s25, 1
        %s396 = scalar_select %p395, %s25, 1
        %s397 = smul.addr %s396, 16
        %s398 = smul.addr %s397, 8
        %s399 = scalar_lea.vmem %s0, %s398
        %p400 = scmp.lt.s32.totalorder %s25, 1
        %s401 = scalar_select %p400, %s25, 1
        %s402 = smul.addr %s401, 8
        %s403 = smul.addr %s402, 8
        %s404 = scalar_lea.vmem %s1, %s403
        %v405 = vld [vmem:[%s2] sm:$0xff]
        %v406 = vld [vmem:[%s2 + $0x8] sm:$0xff]
        %v407 = vld [vmem:[%s2 + $0x10] sm:$0xff]
        %v408 = vld [vmem:[%s2 + $0x18] sm:$0xff]
        %v409 = vld [vmem:[%s2 + $0x20] sm:$0xff]
        %v410 = vld [vmem:[%s2 + $0x28] sm:$0xff]
        %v411 = vld [vmem:[%s2 + $0x30] sm:$0xff]
        %v412 = vld [vmem:[%s2 + $0x38] sm:$0xff]
        %v413 = vld [vmem:[%s3] sm:$0xff]
        %v414 = vld [vmem:[%s3 + $0x8] sm:$0xff]
        %v415 = vld [vmem:[%s3 + $0x10] sm:$0xff]
        %v416 = vld [vmem:[%s3 + $0x18] sm:$0xff]
        %v417 = vld [vmem:[%s4] sm:$0xff]
        %v418 = vld [vmem:[%s4 + $0x8] sm:$0xff]
        %v419 = vld [vmem:[%s4 + $0x10] sm:$0xff]
        %v420 = vld [vmem:[%s4 + $0x18] sm:$0xff]
        %v421 = vld [vmem:[%s4 + $0x20] sm:$0xff]
        %v422 = vld [vmem:[%s4 + $0x28] sm:$0xff]
        %v423 = vld [vmem:[%s4 + $0x30] sm:$0xff]
        %v424 = vld [vmem:[%s4 + $0x38] sm:$0xff]
        %v425 = vld [vmem:[%s5] sm:$0xff]
        %v426 = vld [vmem:[%s5 + $0x8] sm:$0xff]
        %v427 = vld [vmem:[%s5 + $0x10] sm:$0xff]
        %v428 = vld [vmem:[%s5 + $0x18] sm:$0xff]
        %v429 = vld [vmem:[%s5 + $0x20] sm:$0xff]
        %v430 = vld [vmem:[%s5 + $0x28] sm:$0xff]
        %v431 = vld [vmem:[%s5 + $0x30] sm:$0xff]
        %v432 = vld [vmem:[%s5 + $0x38] sm:$0xff]
        %v433 = vld [vmem:[%s7] sm:$0xff]
        %v434 = vld [vmem:[%s7 + $0x8] sm:$0xff]
        %v435 = vld [vmem:[%s7 + $0x10] sm:$0xff]
        %v436 = vld [vmem:[%s7 + $0x18] sm:$0xff]
        %v437 = vld [vmem:[%s7 + $0x20] sm:$0xff]
        %v438 = vld [vmem:[%s7 + $0x28] sm:$0xff]
        %v439 = vld [vmem:[%s7 + $0x30] sm:$0xff]
        %v440 = vld [vmem:[%s7 + $0x38] sm:$0xff]
        %v441 = vld [vmem:[%s8] sm:$0xff]
        %v442 = vld [vmem:[%s8 + $0x8] sm:$0xff]
        %v443 = vld [vmem:[%s8 + $0x10] sm:$0xff]
        %v444 = vld [vmem:[%s8 + $0x18] sm:$0xff]
        %v445 = vld [vmem:[%s8 + $0x20] sm:$0xff]
        %v446 = vld [vmem:[%s8 + $0x28] sm:$0xff]
        %v447 = vld [vmem:[%s8 + $0x30] sm:$0xff]
        %v448 = vld [vmem:[%s8 + $0x38] sm:$0xff]
        %v449 = vld [vmem:[%s6] sm:$0xff]
        %v450 = vld [vmem:[%s6 + $0x8] sm:$0xff]
        %v451 = vld [vmem:[%s6 + $0x10] sm:$0xff]
        %v452 = vld [vmem:[%s6 + $0x18] sm:$0xff]
        %v453 = vld [vmem:[%s6 + $0x20] sm:$0xff]
        %v454 = vld [vmem:[%s6 + $0x28] sm:$0xff]
        %v455 = vld [vmem:[%s6 + $0x30] sm:$0xff]
        %v456 = vld [vmem:[%s6 + $0x38] sm:$0xff]
        %v457 = vld [vmem:[%s9] sm:$0xff]
        %v458 = vld [vmem:[%s9 + $0x8] sm:$0xff]
        %v459 = vld [vmem:[%s9 + $0x10] sm:$0xff]
        %v460 = vld [vmem:[%s9 + $0x18] sm:$0xff]
        %v461 = vld [vmem:[%s9 + $0x20] sm:$0xff]
        %v462 = vld [vmem:[%s9 + $0x28] sm:$0xff]
        %v463 = vld [vmem:[%s9 + $0x30] sm:$0xff]
        %v464 = vld [vmem:[%s9 + $0x38] sm:$0xff]
        %v465 = vld [vmem:[%s10] sm:$0xff]
        %v466 = vld [vmem:[%s10 + $0x8] sm:$0xff]
        %v467 = vld [vmem:[%s10 + $0x10] sm:$0xff]
        %v468 = vld [vmem:[%s10 + $0x18] sm:$0xff]
        %v469 = vld [vmem:[%s10 + $0x20] sm:$0xff]
        %v470 = vld [vmem:[%s10 + $0x28] sm:$0xff]
        %v471 = vld [vmem:[%s10 + $0x30] sm:$0xff]
        %v472 = vld [vmem:[%s10 + $0x38] sm:$0xff]
        %v473 = vld [vmem:[%s399] sm:$0xff]
        %v474 = vld [vmem:[%s399 + $0x8] sm:$0xff]
        %v475 = vld [vmem:[%s399 + $0x10] sm:$0xff]
        %v476 = vld [vmem:[%s399 + $0x18] sm:$0xff]
        %v477 = vld [vmem:[%s399 + $0x20] sm:$0xff]
        %v478 = vld [vmem:[%s399 + $0x28] sm:$0xff]
        %v479 = vld [vmem:[%s399 + $0x30] sm:$0xff]
        %v480 = vld [vmem:[%s399 + $0x38] sm:$0xff]
        %v481 = vld [vmem:[%s399 + $0x40] sm:$0xff]
        %v482 = vld [vmem:[%s399 + $0x48] sm:$0xff]
        %v483 = vld [vmem:[%s399 + $0x50] sm:$0xff]
        %v484 = vld [vmem:[%s399 + $0x58] sm:$0xff]
        %v485 = vld [vmem:[%s399 + $0x60] sm:$0xff]
        %v486 = vld [vmem:[%s399 + $0x68] sm:$0xff]
        %v487 = vld [vmem:[%s399 + $0x70] sm:$0xff]
        %v488 = vld [vmem:[%s399 + $0x78] sm:$0xff]
        %v489 = vmul.f32 %v473, %v473
        %v490 = vmul.f32 %v474, %v474
        %v491 = vmul.f32 %v475, %v475
        %v492 = vmul.f32 %v476, %v476
        %v493 = vmul.f32 %v477, %v477
        %v494 = vmul.f32 %v478, %v478
        %v495 = vmul.f32 %v479, %v479
        %v496 = vmul.f32 %v480, %v480
        %v497 = vmul.f32 %v481, %v481
        %v498 = vmul.f32 %v482, %v482
        %v499 = vmul.f32 %v483, %v483
        %v500 = vmul.f32 %v484, %v484
        %v501 = vmul.f32 %v485, %v485
        %v502 = vmul.f32 %v486, %v486
        %v503 = vmul.f32 %v487, %v487
        %v504 = vmul.f32 %v488, %v488
        %vm505 = vcmask 523264
        %v507 = vsel %vm505, %v413, 0
        %v510 = vsel %vm505, %v414, 0
        %v513 = vsel %vm505, %v415, 0
        %v516 = vsel %vm505, %v416, 0
        %518 = vmatprep.subr.mxu0 %v474
        %519 = vmatpush1.msra.mxu0 %v473
        %520 = vmatprep.subr.mxu0 %v476
        %521 = vmatpush1.msra.mxu0 %v475
        %522 = vmatprep.subr.mxu0 %v478
        %523 = vmatpush1.msra.mxu0 %v477
        %524 = vmatprep.subr.mxu0 %v480
        %525 = vmatpush1.msra.mxu0 %v479
        %526 = vmatprep.subr.mxu0 %v482
        %527 = vmatpush1.msra.mxu0 %v481
        %528 = vmatprep.subr.mxu0 %v484
        %529 = vmatpush1.msra.mxu0 %v483
        %530 = vmatprep.subr.mxu0 %v486
        %531 = vmatpush1.msra.mxu0 %v485
        %532 = vmatprep.subr.mxu0 %v488
        %533 = vmatpush1.msra.mxu0 %v487
        %534 = vmatprep.subr.mxu0 0.0
        %535 = vmatpush1.msra.mxu0 0.0
        %536 = vmatprep.subr.mxu0 0.0
        %537 = vmatpush1.msra.mxu0 0.0
        %538 = vmatprep.subr.mxu0 0.0
        %539 = vmatpush1.msra.mxu0 0.0
        %540 = vmatprep.subr.mxu0 0.0
        %541 = vmatpush1.msra.mxu0 0.0
        %542 = vmatprep.subr.mxu0 0.0
        %543 = vmatpush1.msra.mxu0 0.0
        %544 = vmatprep.subr.mxu0 0.0
        %545 = vmatpush1.msra.mxu0 0.0
        %546 = vmatprep.subr.mxu0 0.0
        %547 = vmatpush1.msra.mxu0 0.0
        %548 = vmatprep.subr.mxu0 0.0
        %549 = vmatpush1.msra.mxu0 0.0
        %550 = vmatprep.subr.mxu0 0.0
        %551 = vmatpush1.msra.mxu0 0.0
        %552 = vmatprep.subr.mxu0 0.0
        %553 = vmatpush1.msra.mxu0 0.0
        %554 = vmatprep.subr.mxu0 0.0
        %555 = vmatpush1.msra.mxu0 0.0
        %556 = vmatprep.subr.mxu0 0.0
        %557 = vmatpush1.msra.mxu0 0.0
        %558 = vmatprep.subr.mxu0 0.0
        %559 = vmatpush1.msra.mxu0 0.0
        %560 = vmatprep.subr.mxu0 0.0
        %561 = vmatpush1.msra.mxu0 0.0
        %562 = vmatprep.subr.mxu0 0.0
        %563 = vmatpush1.msra.mxu0 0.0
        %564 = vmatprep.subr.mxu0 0.0
        %565 = vmatpush1.msra.mxu0 0.0
        %566 = vmatprep.subr.mxu0 0.0
        %567 = vmatpush1.msra.mxu0 0.0
        %568 = vmatprep.subr.mxu0 0.0
        %569 = vmatpush1.msra.mxu0 0.0
        %570 = vmatprep.subr.mxu0 0.0
        %571 = vmatpush1.msra.mxu0 0.0
        %572 = vmatprep.subr.mxu0 0.0
        %573 = vmatpush1.msra.mxu0 0.0
        %574 = vmatprep.subr.mxu0 0.0
        %575 = vmatpush1.msra.mxu0 0.0
        %576 = vmatprep.subr.mxu0 0.0
        %577 = vmatpush1.msra.mxu0 0.0
        %578 = vmatprep.subr.mxu0 0.0
        %579 = vmatpush1.msra.mxu0 0.0
        %580 = vmatprep.subr.mxu0 0.0
        %581 = vmatpush1.msra.mxu0 0.0
        %582 = vmatprep.mubr.f32.mxu0 0.0
        %583 = vmatmul.mubr.f32.gmra.mrb[0].mxu0 %v507
        %v584 = vpop.f32.mrb[0].mxu0
        %v585 = vadd.f32 0.0, %v584
        %v586 = vpop.f32.mrb[0].mxu0
        %v587 = vadd.f32 0.0, %v586
        %588 = vmatprep.mubr.f32.mxu0 0.0
        %589 = vmatmul.mubr.f32.gmra.mrb[0].mxu0 %v510
        %v590 = vpop.f32.mrb[0].mxu0
        %v591 = vadd.f32 0.0, %v590
        %v592 = vpop.f32.mrb[0].mxu0
        %v593 = vadd.f32 0.0, %v592
        %594 = vmatprep.mubr.f32.mxu0 0.0
        %595 = vmatmul.mubr.f32.gmra.mrb[0].mxu0 %v513
        %v596 = vpop.f32.mrb[0].mxu0
        %v597 = vadd.f32 0.0, %v596
        %v598 = vpop.f32.mrb[0].mxu0
        %v599 = vadd.f32 0.0, %v598
        %600 = vmatprep.mubr.f32.mxu0 0.0
        %601 = vmatmul.mubr.f32.gmra.mrb[0].mxu0 %v516
        %v602 = vpop.f32.mrb[0].mxu0
        %v603 = vadd.f32 0.0, %v602
        %v604 = vpop.f32.mrb[0].mxu0
        %v605 = vadd.f32 0.0, %v604
        %606 = vdwg.mxu0
        %607 = vmatprep.subr.mxu0 %v490
        %608 = vmatpush1.msra.mxu0 %v489
        %609 = vmatprep.subr.mxu0 %v492
        %610 = vmatpush1.msra.mxu0 %v491
        %611 = vmatprep.subr.mxu0 %v494
        %612 = vmatpush1.msra.mxu0 %v493
        %613 = vmatprep.subr.mxu0 %v496
        %614 = vmatpush1.msra.mxu0 %v495
        %615 = vmatprep.subr.mxu0 %v498
        %616 = vmatpush1.msra.mxu0 %v497
        %617 = vmatprep.subr.mxu0 %v500
        %618 = vmatpush1.msra.mxu0 %v499
        %619 = vmatprep.subr.mxu0 %v502
        %620 = vmatpush1.msra.mxu0 %v501
        %621 = vmatprep.subr.mxu0 %v504
        %622 = vmatpush1.msra.mxu0 %v503
        %623 = vmatprep.subr.mxu0 0.0
        %624 = vmatpush1.msra.mxu0 0.0
        %625 = vmatprep.subr.mxu0 0.0
        %626 = vmatpush1.msra.mxu0 0.0
        %627 = vmatprep.subr.mxu0 0.0
        %628 = vmatpush1.msra.mxu0 0.0
        %629 = vmatprep.subr.mxu0 0.0
        %630 = vmatpush1.msra.mxu0 0.0
        %631 = vmatprep.subr.mxu0 0.0
        %632 = vmatpush1.msra.mxu0 0.0
        %633 = vmatprep.subr.mxu0 0.0
        %634 = vmatpush1.msra.mxu0 0.0
        %635 = vmatprep.subr.mxu0 0.0
        %636 = vmatpush1.msra.mxu0 0.0
        %637 = vmatprep.subr.mxu0 0.0
        %638 = vmatpush1.msra.mxu0 0.0
        %639 = vmatprep.subr.mxu0 0.0
        %640 = vmatpush1.msra.mxu0 0.0
        %641 = vmatprep.subr.mxu0 0.0
        %642 = vmatpush1.msra.mxu0 0.0
        %643 = vmatprep.subr.mxu0 0.0
        %644 = vmatpush1.msra.mxu0 0.0
        %645 = vmatprep.subr.mxu0 0.0
        %646 = vmatpush1.msra.mxu0 0.0
        %647 = vmatprep.subr.mxu0 0.0
        %648 = vmatpush1.msra.mxu0 0.0
        %649 = vmatprep.subr.mxu0 0.0
        %650 = vmatpush1.msra.mxu0 0.0
        %651 = vmatprep.subr.mxu0 0.0
        %652 = vmatpush1.msra.mxu0 0.0
        %653 = vmatprep.subr.mxu0 0.0
        %654 = vmatpush1.msra.mxu0 0.0
        %655 = vmatprep.subr.mxu0 0.0
        %656 = vmatpush1.msra.mxu0 0.0
        %657 = vmatprep.subr.mxu0 0.0
        %658 = vmatpush1.msra.mxu0 0.0
        %659 = vmatprep.subr.mxu0 0.0
        %660 = vmatpush1.msra.mxu0 0.0
        %661 = vmatprep.subr.mxu0 0.0
        %662 = vmatpush1.msra.mxu0 0.0
        %663 = vmatprep.subr.mxu0 0.0
        %664 = vmatpush1.msra.mxu0 0.0
        %665 = vmatprep.subr.mxu0 0.0
        %666 = vmatpush1.msra.mxu0 0.0
        %667 = vmatprep.subr.mxu0 0.0
        %668 = vmatpush1.msra.mxu0 0.0
        %669 = vmatprep.subr.mxu0 0.0
        %670 = vmatpush1.msra.mxu0 0.0
        %671 = vmatprep.mubr.f32.mxu0 0.0
        %672 = vmatmul.mubr.f32.gmra.mrb[0].mxu0 %v507
        %v673 = vpop.f32.mrb[0].mxu0
        %v674 = vadd.f32 0.0, %v673
        %v675 = vpop.f32.mrb[0].mxu0
        %v676 = vadd.f32 0.0, %v675
        %677 = vmatprep.mubr.f32.mxu0 0.0
        %678 = vmatmul.mubr.f32.gmra.mrb[0].mxu0 %v510
        %v679 = vpop.f32.mrb[0].mxu0
        %v680 = vadd.f32 0.0, %v679
        %v681 = vpop.f32.mrb[0].mxu0
        %v682 = vadd.f32 0.0, %v681
        %683 = vmatprep.mubr.f32.mxu0 0.0
        %684 = vmatmul.mubr.f32.gmra.mrb[0].mxu0 %v513
        %v685 = vpop.f32.mrb[0].mxu0
        %v686 = vadd.f32 0.0, %v685
        %v687 = vpop.f32.mrb[0].mxu0
        %v688 = vadd.f32 0.0, %v687
        %689 = vmatprep.mubr.f32.mxu0 0.0
        %690 = vmatmul.mubr.f32.gmra.mrb[0].mxu0 %v516
        %v691 = vpop.f32.mrb[0].mxu0
        %v692 = vadd.f32 0.0, %v691
        %v693 = vpop.f32.mrb[0].mxu0
        %v694 = vadd.f32 0.0, %v693
        %695 = vdwg.mxu0
        %v696 = vadd.f32 %v585, %v587
        %697 = vadd.xlane.f32.xlu0 %v696
        %v698 = vpop.xlane.xlu0 %697
        %v699 = vadd.f32 %v591, %v593
        %700 = vadd.xlane.f32.xlu0 %v699
        %v701 = vpop.xlane.xlu0 %700
        %v702 = vadd.f32 %v597, %v599
        %703 = vadd.xlane.f32.xlu0 %v702
        %v704 = vpop.xlane.xlu0 %703
        %v705 = vadd.f32 %v603, %v605
        %706 = vadd.xlane.f32.xlu0 %v705
        %v707 = vpop.xlane.xlu0 %706
        %v708 = vmul.f32 %v698, 0.001953125
        %v709 = vmul.f32 %v701, 0.001953125
        %v710 = vmul.f32 %v704, 0.001953125
        %v711 = vmul.f32 %v707, 0.001953125
        %v712 = vadd.f32 %v674, %v676
        %713 = vadd.xlane.f32.xlu0 %v712
        %v714 = vpop.xlane.xlu0 %713
        %v715 = vadd.f32 %v680, %v682
        %716 = vadd.xlane.f32.xlu0 %v715
        %v717 = vpop.xlane.xlu0 %716
        %v718 = vadd.f32 %v686, %v688
        %719 = vadd.xlane.f32.xlu0 %v718
        %v720 = vpop.xlane.xlu0 %719
        %v721 = vadd.f32 %v692, %v694
        %722 = vadd.xlane.f32.xlu0 %v721
        %v723 = vpop.xlane.xlu0 %722
        %v724 = vmul.f32 %v714, 0.001953125
        %v725 = vmul.f32 %v717, 0.001953125
        %v726 = vmul.f32 %v720, 0.001953125
        %v727 = vmul.f32 %v723, 0.001953125
        %v728 = vmul.f32 %v708, %v708
        %v729 = vmul.f32 %v709, %v709
        %v730 = vmul.f32 %v710, %v710
        %v731 = vmul.f32 %v711, %v711
        %v732 = vsub.f32 %v724, %v728
        %v733 = vsub.f32 %v725, %v729
        %v734 = vsub.f32 %v726, %v730
        %v735 = vsub.f32 %v727, %v731
        %v736 = vmax.f32 %v732, 0.0
        %v737 = vmax.f32 %v733, 0.0
        %v738 = vmax.f32 %v734, 0.0
        %v739 = vmax.f32 %v735, 0.0
        %v740 = vadd.f32 %v736, 1e-06
        %v741 = vadd.f32 %v737, 1e-06
        %v742 = vadd.f32 %v738, 1e-06
        %v743 = vadd.f32 %v739, 1e-06
        %v744 = vrsqrt.pop %v740
        %v745 = vrsqrt.pop %v741
        %v746 = vrsqrt.pop %v742
        %v747 = vrsqrt.pop %v743
        %vm748 = vcmask 261120
        %v750 = vsel %vm748, %v405, 0
        %v753 = vsel %vm748, %v406, 0
        %v756 = vsel %vm748, %v407, 0
        %v759 = vsel %vm748, %v408, 0
        %v762 = vsel %vm748, %v409, 0
        %v765 = vsel %vm748, %v410, 0
        %v768 = vsel %vm748, %v411, 0
        %v771 = vsel %vm748, %v412, 0
        %773 = vmatprep.subr.mxu0 0.0
        %774 = vmatpush1.msra.mxu0 %v708
        %775 = vmatprep.subr.mxu0 0.0
        %776 = vmatpush1.msra.mxu0 %v709
        %777 = vmatprep.subr.mxu0 0.0
        %778 = vmatpush1.msra.mxu0 %v710
        %779 = vmatprep.subr.mxu0 0.0
        %780 = vmatpush1.msra.mxu0 %v711
        %781 = vmatprep.subr.mxu0 0.0
        %782 = vmatpush1.msra.mxu0 0.0
        %783 = vmatprep.subr.mxu0 0.0
        %784 = vmatpush1.msra.mxu0 0.0
        %785 = vmatprep.subr.mxu0 0.0
        %786 = vmatpush1.msra.mxu0 0.0
        %787 = vmatprep.subr.mxu0 0.0
        %788 = vmatpush1.msra.mxu0 0.0
        %789 = vmatprep.subr.mxu0 0.0
        %790 = vmatpush1.msra.mxu0 0.0
        %791 = vmatprep.subr.mxu0 0.0
        %792 = vmatpush1.msra.mxu0 0.0
        %793 = vmatprep.subr.mxu0 0.0
        %794 = vmatpush1.msra.mxu0 0.0
        %795 = vmatprep.subr.mxu0 0.0
        %796 = vmatpush1.msra.mxu0 0.0
        %797 = vmatprep.subr.mxu0 0.0
        %798 = vmatpush1.msra.mxu0 0.0
        %799 = vmatprep.subr.mxu0 0.0
        %800 = vmatpush1.msra.mxu0 0.0
        %801 = vmatprep.subr.mxu0 0.0
        %802 = vmatpush1.msra.mxu0 0.0
        %803 = vmatprep.subr.mxu0 0.0
        %804 = vmatpush1.msra.mxu0 0.0
        %805 = vmatprep.subr.mxu0 0.0
        %806 = vmatpush1.msra.mxu0 0.0
        %807 = vmatprep.subr.mxu0 0.0
        %808 = vmatpush1.msra.mxu0 0.0
        %809 = vmatprep.subr.mxu0 0.0
        %810 = vmatpush1.msra.mxu0 0.0
        %811 = vmatprep.subr.mxu0 0.0
        %812 = vmatpush1.msra.mxu0 0.0
        %813 = vmatprep.subr.mxu0 0.0
        %814 = vmatpush1.msra.mxu0 0.0
        %815 = vmatprep.subr.mxu0 0.0
        %816 = vmatpush1.msra.mxu0 0.0
        %817 = vmatprep.subr.mxu0 0.0
        %818 = vmatpush1.msra.mxu0 0.0
        %819 = vmatprep.subr.mxu0 0.0
        %820 = vmatpush1.msra.mxu0 0.0
        %821 = vmatprep.subr.mxu0 0.0
        %822 = vmatpush1.msra.mxu0 0.0
        %823 = vmatprep.subr.mxu0 0.0
        %824 = vmatpush1.msra.mxu0 0.0
        %825 = vmatprep.subr.mxu0 0.0
        %826 = vmatpush1.msra.mxu0 0.0
        %827 = vmatprep.subr.mxu0 0.0
        %828 = vmatpush1.msra.mxu0 0.0
        %829 = vmatprep.subr.mxu0 0.0
        %830 = vmatpush1.msra.mxu0 0.0
        %831 = vmatprep.subr.mxu0 0.0
        %832 = vmatpush1.msra.mxu0 0.0
        %833 = vmatprep.subr.mxu0 0.0
        %834 = vmatpush1.msra.mxu0 0.0
        %835 = vmatprep.subr.mxu0 0.0
        %836 = vmatpush1.msra.mxu0 0.0
        %837 = vmatprep.mubr.f32.mxu0 0.0
        %838 = vmatmul.mubr.f32.gmra.mrb[0].mxu0 %v750
        %v839 = vpop.f32.mrb[0].mxu0
        %v840 = vadd.f32 0.0, %v839
        %v841 = vpop.f32.mrb[0].mxu0
        %842 = vmatprep.mubr.f32.mxu0 0.0
        %843 = vmatmul.mubr.f32.gmra.mrb[0].mxu0 %v753
        %v844 = vpop.f32.mrb[0].mxu0
        %v845 = vadd.f32 0.0, %v844
        %v846 = vpop.f32.mrb[0].mxu0
        %847 = vmatprep.mubr.f32.mxu0 0.0
        %848 = vmatmul.mubr.f32.gmra.mrb[0].mxu0 %v756
        %v849 = vpop.f32.mrb[0].mxu0
        %v850 = vadd.f32 0.0, %v849
        %v851 = vpop.f32.mrb[0].mxu0
        %852 = vmatprep.mubr.f32.mxu0 0.0
        %853 = vmatmul.mubr.f32.gmra.mrb[0].mxu0 %v759
        %v854 = vpop.f32.mrb[0].mxu0
        %v855 = vadd.f32 0.0, %v854
        %v856 = vpop.f32.mrb[0].mxu0
        %857 = vmatprep.mubr.f32.mxu0 0.0
        %858 = vmatmul.mubr.f32.gmra.mrb[0].mxu0 %v762
        %v859 = vpop.f32.mrb[0].mxu0
        %v860 = vadd.f32 0.0, %v859
        %v861 = vpop.f32.mrb[0].mxu0
        %862 = vmatprep.mubr.f32.mxu0 0.0
        %863 = vmatmul.mubr.f32.gmra.mrb[0].mxu0 %v765
        %v864 = vpop.f32.mrb[0].mxu0
        %v865 = vadd.f32 0.0, %v864
        %v866 = vpop.f32.mrb[0].mxu0
        %867 = vmatprep.mubr.f32.mxu0 0.0
        %868 = vmatmul.mubr.f32.gmra.mrb[0].mxu0 %v768
        %v869 = vpop.f32.mrb[0].mxu0
        %v870 = vadd.f32 0.0, %v869
        %v871 = vpop.f32.mrb[0].mxu0
        %872 = vmatprep.mubr.f32.mxu0 0.0
        %873 = vmatmul.mubr.f32.gmra.mrb[0].mxu0 %v771
        %v874 = vpop.f32.mrb[0].mxu0
        %v875 = vadd.f32 0.0, %v874
        %v876 = vpop.f32.mrb[0].mxu0
        %877 = vdwg.mxu0
        %878 = vmatprep.subr.mxu0 0.0
        %879 = vmatpush1.msra.mxu0 %v744
        %880 = vmatprep.subr.mxu0 0.0
        %881 = vmatpush1.msra.mxu0 %v745
        %882 = vmatprep.subr.mxu0 0.0
        %883 = vmatpush1.msra.mxu0 %v746
        %884 = vmatprep.subr.mxu0 0.0
        %885 = vmatpush1.msra.mxu0 %v747
        %886 = vmatprep.subr.mxu0 0.0
        %887 = vmatpush1.msra.mxu0 0.0
        %888 = vmatprep.subr.mxu0 0.0
        %889 = vmatpush1.msra.mxu0 0.0
        %890 = vmatprep.subr.mxu0 0.0
        %891 = vmatpush1.msra.mxu0 0.0
        %892 = vmatprep.subr.mxu0 0.0
        %893 = vmatpush1.msra.mxu0 0.0
        %894 = vmatprep.subr.mxu0 0.0
        %895 = vmatpush1.msra.mxu0 0.0
        %896 = vmatprep.subr.mxu0 0.0
        %897 = vmatpush1.msra.mxu0 0.0
        %898 = vmatprep.subr.mxu0 0.0
        %899 = vmatpush1.msra.mxu0 0.0
        %900 = vmatprep.subr.mxu0 0.0
        %901 = vmatpush1.msra.mxu0 0.0
        %902 = vmatprep.subr.mxu0 0.0
        %903 = vmatpush1.msra.mxu0 0.0
        %904 = vmatprep.subr.mxu0 0.0
        %905 = vmatpush1.msra.mxu0 0.0
        %906 = vmatprep.subr.mxu0 0.0
        %907 = vmatpush1.msra.mxu0 0.0
        %908 = vmatprep.subr.mxu0 0.0
        %909 = vmatpush1.msra.mxu0 0.0
        %910 = vmatprep.subr.mxu0 0.0
        %911 = vmatpush1.msra.mxu0 0.0
        %912 = vmatprep.subr.mxu0 0.0
        %913 = vmatpush1.msra.mxu0 0.0
        %914 = vmatprep.subr.mxu0 0.0
        %915 = vmatpush1.msra.mxu0 0.0
        %916 = vmatprep.subr.mxu0 0.0
        %917 = vmatpush1.msra.mxu0 0.0
        %918 = vmatprep.subr.mxu0 0.0
        %919 = vmatpush1.msra.mxu0 0.0
        %920 = vmatprep.subr.mxu0 0.0
        %921 = vmatpush1.msra.mxu0 0.0
        %922 = vmatprep.subr.mxu0 0.0
        %923 = vmatpush1.msra.mxu0 0.0
        %924 = vmatprep.subr.mxu0 0.0
        %925 = vmatpush1.msra.mxu0 0.0
        %926 = vmatprep.subr.mxu0 0.0
        %927 = vmatpush1.msra.mxu0 0.0
        %928 = vmatprep.subr.mxu0 0.0
        %929 = vmatpush1.msra.mxu0 0.0
        %930 = vmatprep.subr.mxu0 0.0
        %931 = vmatpush1.msra.mxu0 0.0
        %932 = vmatprep.subr.mxu0 0.0
        %933 = vmatpush1.msra.mxu0 0.0
        %934 = vmatprep.subr.mxu0 0.0
        %935 = vmatpush1.msra.mxu0 0.0
        %936 = vmatprep.subr.mxu0 0.0
        %937 = vmatpush1.msra.mxu0 0.0
        %938 = vmatprep.subr.mxu0 0.0
        %939 = vmatpush1.msra.mxu0 0.0
        %940 = vmatprep.subr.mxu0 0.0
        %941 = vmatpush1.msra.mxu0 0.0
        %942 = vmatprep.mubr.f32.mxu0 0.0
        %943 = vmatmul.mubr.f32.gmra.mrb[0].mxu0 %v750
        %v944 = vpop.f32.mrb[0].mxu0
        %v945 = vadd.f32 0.0, %v944
        %v946 = vpop.f32.mrb[0].mxu0
        %947 = vmatprep.mubr.f32.mxu0 0.0
        %948 = vmatmul.mubr.f32.gmra.mrb[0].mxu0 %v753
        %v949 = vpop.f32.mrb[0].mxu0
        %v950 = vadd.f32 0.0, %v949
        %v951 = vpop.f32.mrb[0].mxu0
        %952 = vmatprep.mubr.f32.mxu0 0.0
        %953 = vmatmul.mubr.f32.gmra.mrb[0].mxu0 %v756
        %v954 = vpop.f32.mrb[0].mxu0
        %v955 = vadd.f32 0.0, %v954
        %v956 = vpop.f32.mrb[0].mxu0
        %957 = vmatprep.mubr.f32.mxu0 0.0
        %958 = vmatmul.mubr.f32.gmra.mrb[0].mxu0 %v759
        %v959 = vpop.f32.mrb[0].mxu0
        %v960 = vadd.f32 0.0, %v959
        %v961 = vpop.f32.mrb[0].mxu0
        %962 = vmatprep.mubr.f32.mxu0 0.0
        %963 = vmatmul.mubr.f32.gmra.mrb[0].mxu0 %v762
        %v964 = vpop.f32.mrb[0].mxu0
        %v965 = vadd.f32 0.0, %v964
        %v966 = vpop.f32.mrb[0].mxu0
        %967 = vmatprep.mubr.f32.mxu0 0.0
        %968 = vmatmul.mubr.f32.gmra.mrb[0].mxu0 %v765
        %v969 = vpop.f32.mrb[0].mxu0
        %v970 = vadd.f32 0.0, %v969
        %v971 = vpop.f32.mrb[0].mxu0
        %972 = vmatprep.mubr.f32.mxu0 0.0
        %973 = vmatmul.mubr.f32.gmra.mrb[0].mxu0 %v768
        %v974 = vpop.f32.mrb[0].mxu0
        %v975 = vadd.f32 0.0, %v974
        %v976 = vpop.f32.mrb[0].mxu0
        %977 = vmatprep.mubr.f32.mxu0 0.0
        %978 = vmatmul.mubr.f32.gmra.mrb[0].mxu0 %v771
        %v979 = vpop.f32.mrb[0].mxu0
        %v980 = vadd.f32 0.0, %v979
        %v981 = vpop.f32.mrb[0].mxu0
        %982 = vdwg.mxu0
        %v983 = vmul.f32 %v945, %v417
        %v984 = vmul.f32 %v950, %v418
        %v985 = vmul.f32 %v955, %v419
        %v986 = vmul.f32 %v960, %v420
        %v987 = vmul.f32 %v965, %v421
        %v988 = vmul.f32 %v970, %v422
        %v989 = vmul.f32 %v975, %v423
        %v990 = vmul.f32 %v980, %v424
        %v991 = vmul.f32 %v840, %v983
        %v992 = vmul.f32 %v845, %v984
        %v993 = vmul.f32 %v850, %v985
        %v994 = vmul.f32 %v855, %v986
        %v995 = vmul.f32 %v860, %v987
        %v996 = vmul.f32 %v865, %v988
        %v997 = vmul.f32 %v870, %v989
        %v998 = vmul.f32 %v875, %v990
        %v999 = vsub.f32 %v425, %v991
        %v1000 = vsub.f32 %v426, %v992
        %v1001 = vsub.f32 %v427, %v993
        %v1002 = vsub.f32 %v428, %v994
        %v1003 = vsub.f32 %v429, %v995
        %v1004 = vsub.f32 %v430, %v996
        %v1005 = vsub.f32 %v431, %v997
        %v1006 = vsub.f32 %v432, %v998
        %1008 = vset.pattern.permute.xlu0 0
        %1009 = vperm.xlu0 %1008, %v983
        %v1010 = vpop.permute.xlu0 %1009
        %1013 = vset.pattern.permute.xlu0 0
        %1014 = vperm.xlu0 %1013, %v984
        %v1015 = vpop.permute.xlu0 %1014
        %1018 = vset.pattern.permute.xlu0 0
        %1019 = vperm.xlu0 %1018, %v985
        %v1020 = vpop.permute.xlu0 %1019
        %1023 = vset.pattern.permute.xlu0 0
        %1024 = vperm.xlu0 %1023, %v986
        %v1025 = vpop.permute.xlu0 %1024
        %1028 = vset.pattern.permute.xlu0 0
        %1029 = vperm.xlu0 %1028, %v987
        %v1030 = vpop.permute.xlu0 %1029
        %1033 = vset.pattern.permute.xlu0 0
        %1034 = vperm.xlu0 %1033, %v988
        %v1035 = vpop.permute.xlu0 %1034
        %1038 = vset.pattern.permute.xlu0 0
        %1039 = vperm.xlu0 %1038, %v989
        %v1040 = vpop.permute.xlu0 %1039
        %1043 = vset.pattern.permute.xlu0 0
        %1044 = vperm.xlu0 %1043, %v990
        %v1045 = vpop.permute.xlu0 %1044
        %v1047 = vmul.f32 %v473, %v1010
        %v1048 = vmul.f32 %v474, %v1010
        %v1049 = vmul.f32 %v475, %v1015
        %v1050 = vmul.f32 %v476, %v1015
        %v1051 = vmul.f32 %v477, %v1020
        %v1052 = vmul.f32 %v478, %v1020
        %v1053 = vmul.f32 %v479, %v1025
        %v1054 = vmul.f32 %v480, %v1025
        %v1055 = vmul.f32 %v481, %v1030
        %v1056 = vmul.f32 %v482, %v1030
        %v1057 = vmul.f32 %v483, %v1035
        %v1058 = vmul.f32 %v484, %v1035
        %v1059 = vmul.f32 %v485, %v1040
        %v1060 = vmul.f32 %v486, %v1040
        %v1061 = vmul.f32 %v487, %v1045
        %v1062 = vmul.f32 %v488, %v1045
        %1064 = vset.pattern.permute.xlu0 0
        %1065 = vperm.xlu0 %1064, %v999
        %v1066 = vpop.permute.xlu0 %1065
        %1069 = vset.pattern.permute.xlu0 0
        %1070 = vperm.xlu0 %1069, %v1000
        %v1071 = vpop.permute.xlu0 %1070
        %1074 = vset.pattern.permute.xlu0 0
        %1075 = vperm.xlu0 %1074, %v1001
        %v1076 = vpop.permute.xlu0 %1075
        %1079 = vset.pattern.permute.xlu0 0
        %1080 = vperm.xlu0 %1079, %v1002
        %v1081 = vpop.permute.xlu0 %1080
        %1084 = vset.pattern.permute.xlu0 0
        %1085 = vperm.xlu0 %1084, %v1003
        %v1086 = vpop.permute.xlu0 %1085
        %1089 = vset.pattern.permute.xlu0 0
        %1090 = vperm.xlu0 %1089, %v1004
        %v1091 = vpop.permute.xlu0 %1090
        %1094 = vset.pattern.permute.xlu0 0
        %1095 = vperm.xlu0 %1094, %v1005
        %v1096 = vpop.permute.xlu0 %1095
        %1099 = vset.pattern.permute.xlu0 0
        %1100 = vperm.xlu0 %1099, %v1006
        %v1101 = vpop.permute.xlu0 %1100
        %v1103 = vadd.f32 %v1047, %v1066
        %v1104 = vadd.f32 %v1048, %v1066
        %v1105 = vadd.f32 %v1049, %v1071
        %v1106 = vadd.f32 %v1050, %v1071
        %v1107 = vadd.f32 %v1051, %v1076
        %v1108 = vadd.f32 %v1052, %v1076
        %v1109 = vadd.f32 %v1053, %v1081
        %v1110 = vadd.f32 %v1054, %v1081
        %v1111 = vadd.f32 %v1055, %v1086
        %v1112 = vadd.f32 %v1056, %v1086
        %v1113 = vadd.f32 %v1057, %v1091
        %v1114 = vadd.f32 %v1058, %v1091
        %v1115 = vadd.f32 %v1059, %v1096
        %v1116 = vadd.f32 %v1060, %v1096
        %v1117 = vadd.f32 %v1061, %v1101
        %v1118 = vadd.f32 %v1062, %v1101
        %v1119 = vxor.u32 %v1103, 2147483648
        %v1120 = vxor.u32 %v1104, 2147483648
        %v1121 = vxor.u32 %v1105, 2147483648
        %v1122 = vxor.u32 %v1106, 2147483648
        %v1123 = vxor.u32 %v1107, 2147483648
        %v1124 = vxor.u32 %v1108, 2147483648
        %v1125 = vxor.u32 %v1109, 2147483648
        %v1126 = vxor.u32 %v1110, 2147483648
        %v1127 = vxor.u32 %v1111, 2147483648
        %v1128 = vxor.u32 %v1112, 2147483648
        %v1129 = vxor.u32 %v1113, 2147483648
        %v1130 = vxor.u32 %v1114, 2147483648
        %v1131 = vxor.u32 %v1115, 2147483648
        %v1132 = vxor.u32 %v1116, 2147483648
        %v1133 = vxor.u32 %v1117, 2147483648
        %v1134 = vxor.u32 %v1118, 2147483648
        %v1135 = vmul.f32 %v1119, 1.442695
        %v1136 = vpow.pop %v1135
        %v1137 = vmul.f32 %v1120, 1.442695
        %v1138 = vpow.pop %v1137
        %v1139 = vmul.f32 %v1121, 1.442695
        %v1140 = vpow.pop %v1139
        %v1141 = vmul.f32 %v1122, 1.442695
        %v1142 = vpow.pop %v1141
        %v1143 = vmul.f32 %v1123, 1.442695
        %v1144 = vpow.pop %v1143
        %v1145 = vmul.f32 %v1124, 1.442695
        %v1146 = vpow.pop %v1145
        %v1147 = vmul.f32 %v1125, 1.442695
        %v1148 = vpow.pop %v1147
        %v1149 = vmul.f32 %v1126, 1.442695
        %v1150 = vpow.pop %v1149
        %v1151 = vmul.f32 %v1127, 1.442695
        %v1152 = vpow.pop %v1151
        %v1153 = vmul.f32 %v1128, 1.442695
        %v1154 = vpow.pop %v1153
        %v1155 = vmul.f32 %v1129, 1.442695
        %v1156 = vpow.pop %v1155
        %v1157 = vmul.f32 %v1130, 1.442695
        %v1158 = vpow.pop %v1157
        %v1159 = vmul.f32 %v1131, 1.442695
        %v1160 = vpow.pop %v1159
        %v1161 = vmul.f32 %v1132, 1.442695
        %v1162 = vpow.pop %v1161
        %v1163 = vmul.f32 %v1133, 1.442695
        %v1164 = vpow.pop %v1163
        %v1165 = vmul.f32 %v1134, 1.442695
        %v1166 = vpow.pop %v1165
        %v1167 = vadd.f32 %v1136, 1.0
        %v1168 = vadd.f32 %v1138, 1.0
        %v1169 = vadd.f32 %v1140, 1.0
        %v1170 = vadd.f32 %v1142, 1.0
        %v1171 = vadd.f32 %v1144, 1.0
        %v1172 = vadd.f32 %v1146, 1.0
        %v1173 = vadd.f32 %v1148, 1.0
        %v1174 = vadd.f32 %v1150, 1.0
        %v1175 = vadd.f32 %v1152, 1.0
        %v1176 = vadd.f32 %v1154, 1.0
        %v1177 = vadd.f32 %v1156, 1.0
        %v1178 = vadd.f32 %v1158, 1.0
        %v1179 = vadd.f32 %v1160, 1.0
        %v1180 = vadd.f32 %v1162, 1.0
        %v1181 = vadd.f32 %v1164, 1.0
        %v1182 = vadd.f32 %v1166, 1.0
        %v1183 = vrcp.pop %v1167
        %v1184 = vmul.f32 1.0, %v1183
        %v1185 = vrcp.pop %v1168
        %v1186 = vmul.f32 1.0, %v1185
        %v1187 = vrcp.pop %v1169
        %v1188 = vmul.f32 1.0, %v1187
        %v1189 = vrcp.pop %v1170
        %v1190 = vmul.f32 1.0, %v1189
        %v1191 = vrcp.pop %v1171
        %v1192 = vmul.f32 1.0, %v1191
        %v1193 = vrcp.pop %v1172
        %v1194 = vmul.f32 1.0, %v1193
        %v1195 = vrcp.pop %v1173
        %v1196 = vmul.f32 1.0, %v1195
        %v1197 = vrcp.pop %v1174
        %v1198 = vmul.f32 1.0, %v1197
        %v1199 = vrcp.pop %v1175
        %v1200 = vmul.f32 1.0, %v1199
        %v1201 = vrcp.pop %v1176
        %v1202 = vmul.f32 1.0, %v1201
        %v1203 = vrcp.pop %v1177
        %v1204 = vmul.f32 1.0, %v1203
        %v1205 = vrcp.pop %v1178
        %v1206 = vmul.f32 1.0, %v1205
        %v1207 = vrcp.pop %v1179
        %v1208 = vmul.f32 1.0, %v1207
        %v1209 = vrcp.pop %v1180
        %v1210 = vmul.f32 1.0, %v1209
        %v1211 = vrcp.pop %v1181
        %v1212 = vmul.f32 1.0, %v1211
        %v1213 = vrcp.pop %v1182
        %v1214 = vmul.f32 1.0, %v1213
        %v1215 = vmul.f32 %v1103, %v1184
        %v1216 = vmul.f32 %v1104, %v1186
        %v1217 = vmul.f32 %v1105, %v1188
        %v1218 = vmul.f32 %v1106, %v1190
        %v1219 = vmul.f32 %v1107, %v1192
        %v1220 = vmul.f32 %v1108, %v1194
        %v1221 = vmul.f32 %v1109, %v1196
        %v1222 = vmul.f32 %v1110, %v1198
        %v1223 = vmul.f32 %v1111, %v1200
        %v1224 = vmul.f32 %v1112, %v1202
        %v1225 = vmul.f32 %v1113, %v1204
        %v1226 = vmul.f32 %v1114, %v1206
        %v1227 = vmul.f32 %v1115, %v1208
        %v1228 = vmul.f32 %v1116, %v1210
        %v1229 = vmul.f32 %v1117, %v1212
        %v1230 = vmul.f32 %v1118, %v1214
        %v1231 = vld [vmem:[%s404] sm:$0xff]
        %v1232 = vld [vmem:[%s404 + $0x8] sm:$0xff]
        %v1233 = vld [vmem:[%s404 + $0x10] sm:$0xff]
        %v1234 = vld [vmem:[%s404 + $0x18] sm:$0xff]
        %v1235 = vld [vmem:[%s404 + $0x20] sm:$0xff]
        %v1236 = vld [vmem:[%s404 + $0x28] sm:$0xff]
        %v1237 = vld [vmem:[%s404 + $0x30] sm:$0xff]
        %v1238 = vld [vmem:[%s404 + $0x38] sm:$0xff]
        %1240 = vset.pattern.permute.xlu0 0
        %1241 = vperm.xlu0 %1240, %v1231
        %v1242 = vpop.permute.xlu0 %1241
        %1245 = vset.pattern.permute.xlu0 0
        %1246 = vperm.xlu0 %1245, %v1232
        %v1247 = vpop.permute.xlu0 %1246
        %1250 = vset.pattern.permute.xlu0 0
        %1251 = vperm.xlu0 %1250, %v1233
        %v1252 = vpop.permute.xlu0 %1251
        %1255 = vset.pattern.permute.xlu0 0
        %1256 = vperm.xlu0 %1255, %v1234
        %v1257 = vpop.permute.xlu0 %1256
        %1260 = vset.pattern.permute.xlu0 0
        %1261 = vperm.xlu0 %1260, %v1235
        %v1262 = vpop.permute.xlu0 %1261
        %1265 = vset.pattern.permute.xlu0 0
        %1266 = vperm.xlu0 %1265, %v1236
        %v1267 = vpop.permute.xlu0 %1266
        %1270 = vset.pattern.permute.xlu0 0
        %1271 = vperm.xlu0 %1270, %v1237
        %v1272 = vpop.permute.xlu0 %1271
        %1275 = vset.pattern.permute.xlu0 0
        %1276 = vperm.xlu0 %1275, %v1238
        %v1277 = vpop.permute.xlu0 %1276
        %v1280 = vsel %vm505, %v449, 0
        %v1283 = vsel %vm505, %v450, 0
        %v1286 = vsel %vm505, %v451, 0
        %v1289 = vsel %vm505, %v452, 0
        %v1292 = vsel %vm505, %v453, 0
        %v1295 = vsel %vm505, %v454, 0
        %v1298 = vsel %vm505, %v455, 0
        %v1301 = vsel %vm505, %v456, 0
        %1303 = vmatprep.subr.mxu0 %v1216
        %1304 = vmatpush1.msra.mxu0 %v1215
        %1305 = vmatprep.subr.mxu0 %v1218
        %1306 = vmatpush1.msra.mxu0 %v1217
        %1307 = vmatprep.subr.mxu0 %v1220
        %1308 = vmatpush1.msra.mxu0 %v1219
        %1309 = vmatprep.subr.mxu0 %v1222
        %1310 = vmatpush1.msra.mxu0 %v1221
        %1311 = vmatprep.subr.mxu0 %v1224
        %1312 = vmatpush1.msra.mxu0 %v1223
        %1313 = vmatprep.subr.mxu0 %v1226
        %1314 = vmatpush1.msra.mxu0 %v1225
        %1315 = vmatprep.subr.mxu0 %v1228
        %1316 = vmatpush1.msra.mxu0 %v1227
        %1317 = vmatprep.subr.mxu0 %v1230
        %1318 = vmatpush1.msra.mxu0 %v1229
        %1319 = vmatprep.subr.mxu0 0.0
        %1320 = vmatpush1.msra.mxu0 0.0
        %1321 = vmatprep.subr.mxu0 0.0
        %1322 = vmatpush1.msra.mxu0 0.0
        %1323 = vmatprep.subr.mxu0 0.0
        %1324 = vmatpush1.msra.mxu0 0.0
        %1325 = vmatprep.subr.mxu0 0.0
        %1326 = vmatpush1.msra.mxu0 0.0
        %1327 = vmatprep.subr.mxu0 0.0
        %1328 = vmatpush1.msra.mxu0 0.0
        %1329 = vmatprep.subr.mxu0 0.0
        %1330 = vmatpush1.msra.mxu0 0.0
        %1331 = vmatprep.subr.mxu0 0.0
        %1332 = vmatpush1.msra.mxu0 0.0
        %1333 = vmatprep.subr.mxu0 0.0
        %1334 = vmatpush1.msra.mxu0 0.0
        %1335 = vmatprep.subr.mxu0 0.0
        %1336 = vmatpush1.msra.mxu0 0.0
        %1337 = vmatprep.subr.mxu0 0.0
        %1338 = vmatpush1.msra.mxu0 0.0
        %1339 = vmatprep.subr.mxu0 0.0
        %1340 = vmatpush1.msra.mxu0 0.0
        %1341 = vmatprep.subr.mxu0 0.0
        %1342 = vmatpush1.msra.mxu0 0.0
        %1343 = vmatprep.subr.mxu0 0.0
        %1344 = vmatpush1.msra.mxu0 0.0
        %1345 = vmatprep.subr.mxu0 0.0
        %1346 = vmatpush1.msra.mxu0 0.0
        %1347 = vmatprep.subr.mxu0 0.0
        %1348 = vmatpush1.msra.mxu0 0.0
        %1349 = vmatprep.subr.mxu0 0.0
        %1350 = vmatpush1.msra.mxu0 0.0
        %1351 = vmatprep.subr.mxu0 0.0
        %1352 = vmatpush1.msra.mxu0 0.0
        %1353 = vmatprep.subr.mxu0 0.0
        %1354 = vmatpush1.msra.mxu0 0.0
        %1355 = vmatprep.subr.mxu0 0.0
        %1356 = vmatpush1.msra.mxu0 0.0
        %1357 = vmatprep.subr.mxu0 0.0
        %1358 = vmatpush1.msra.mxu0 0.0
        %1359 = vmatprep.subr.mxu0 0.0
        %1360 = vmatpush1.msra.mxu0 0.0
        %1361 = vmatprep.subr.mxu0 0.0
        %1362 = vmatpush1.msra.mxu0 0.0
        %1363 = vmatprep.subr.mxu0 0.0
        %1364 = vmatpush1.msra.mxu0 0.0
        %1365 = vmatprep.subr.mxu0 0.0
        %1366 = vmatpush1.msra.mxu0 0.0
        %1367 = vmatprep.mubr.f32.mxu0 0.0
        %1368 = vmatmul.mubr.f32.gmra.mrb[0].mxu0 %v1280
        %v1369 = vpop.f32.mrb[0].mxu0
        %v1370 = vadd.f32 %v1242, %v1369
        %v1371 = vpop.f32.mrb[0].mxu0
        %v1372 = vadd.f32 %v1242, %v1371
        %1373 = vmatprep.mubr.f32.mxu0 0.0
        %1374 = vmatmul.mubr.f32.gmra.mrb[0].mxu0 %v1283
        %v1375 = vpop.f32.mrb[0].mxu0
        %v1376 = vadd.f32 %v1247, %v1375
        %v1377 = vpop.f32.mrb[0].mxu0
        %v1378 = vadd.f32 %v1247, %v1377
        %1379 = vmatprep.mubr.f32.mxu0 0.0
        %1380 = vmatmul.mubr.f32.gmra.mrb[0].mxu0 %v1286
        %v1381 = vpop.f32.mrb[0].mxu0
        %v1382 = vadd.f32 %v1252, %v1381
        %v1383 = vpop.f32.mrb[0].mxu0
        %v1384 = vadd.f32 %v1252, %v1383
        %1385 = vmatprep.mubr.f32.mxu0 0.0
        %1386 = vmatmul.mubr.f32.gmra.mrb[0].mxu0 %v1289
        %v1387 = vpop.f32.mrb[0].mxu0
        %v1388 = vadd.f32 %v1257, %v1387
        %v1389 = vpop.f32.mrb[0].mxu0
        %v1390 = vadd.f32 %v1257, %v1389
        %1391 = vmatprep.mubr.f32.mxu0 0.0
        %1392 = vmatmul.mubr.f32.gmra.mrb[0].mxu0 %v1292
        %v1393 = vpop.f32.mrb[0].mxu0
        %v1394 = vadd.f32 %v1262, %v1393
        %v1395 = vpop.f32.mrb[0].mxu0
        %v1396 = vadd.f32 %v1262, %v1395
        %1397 = vmatprep.mubr.f32.mxu0 0.0
        %1398 = vmatmul.mubr.f32.gmra.mrb[0].mxu0 %v1295
        %v1399 = vpop.f32.mrb[0].mxu0
        %v1400 = vadd.f32 %v1267, %v1399
        %v1401 = vpop.f32.mrb[0].mxu0
        %v1402 = vadd.f32 %v1267, %v1401
        %1403 = vmatprep.mubr.f32.mxu0 0.0
        %1404 = vmatmul.mubr.f32.gmra.mrb[0].mxu0 %v1298
        %v1405 = vpop.f32.mrb[0].mxu0
        %v1406 = vadd.f32 %v1272, %v1405
        %v1407 = vpop.f32.mrb[0].mxu0
        %v1408 = vadd.f32 %v1272, %v1407
        %1409 = vmatprep.mubr.f32.mxu0 0.0
        %1410 = vmatmul.mubr.f32.gmra.mrb[0].mxu0 %v1301
        %v1411 = vpop.f32.mrb[0].mxu0
        %v1412 = vadd.f32 %v1277, %v1411
        %v1413 = vpop.f32.mrb[0].mxu0
        %v1414 = vadd.f32 %v1277, %v1413
        %1415 = vdwg.mxu0
        %v1416 = vmul.f32 %v1370, %v1370
        %v1417 = vmul.f32 %v1372, %v1372
        %v1418 = vmul.f32 %v1376, %v1376
        %v1419 = vmul.f32 %v1378, %v1378
        %v1420 = vmul.f32 %v1382, %v1382
        %v1421 = vmul.f32 %v1384, %v1384
        %v1422 = vmul.f32 %v1388, %v1388
        %v1423 = vmul.f32 %v1390, %v1390
        %v1424 = vmul.f32 %v1394, %v1394
        %v1425 = vmul.f32 %v1396, %v1396
        %v1426 = vmul.f32 %v1400, %v1400
        %v1427 = vmul.f32 %v1402, %v1402
        %v1428 = vmul.f32 %v1406, %v1406
        %v1429 = vmul.f32 %v1408, %v1408
        %v1430 = vmul.f32 %v1412, %v1412
        %v1431 = vmul.f32 %v1414, %v1414
        %1432 = vmatprep.subr.mxu0 %v1372
        %1433 = vmatpush1.msra.mxu0 %v1370
        %1434 = vmatprep.subr.mxu0 %v1378
        %1435 = vmatpush1.msra.mxu0 %v1376
        %1436 = vmatprep.subr.mxu0 %v1384
        %1437 = vmatpush1.msra.mxu0 %v1382
        %1438 = vmatprep.subr.mxu0 %v1390
        %1439 = vmatpush1.msra.mxu0 %v1388
        %1440 = vmatprep.subr.mxu0 %v1396
        %1441 = vmatpush1.msra.mxu0 %v1394
        %1442 = vmatprep.subr.mxu0 %v1402
        %1443 = vmatpush1.msra.mxu0 %v1400
        %1444 = vmatprep.subr.mxu0 %v1408
        %1445 = vmatpush1.msra.mxu0 %v1406
        %1446 = vmatprep.subr.mxu0 %v1414
        %1447 = vmatpush1.msra.mxu0 %v1412
        %1448 = vmatprep.subr.mxu0 0.0
        %1449 = vmatpush1.msra.mxu0 0.0
        %1450 = vmatprep.subr.mxu0 0.0
        %1451 = vmatpush1.msra.mxu0 0.0
        %1452 = vmatprep.subr.mxu0 0.0
        %1453 = vmatpush1.msra.mxu0 0.0
        %1454 = vmatprep.subr.mxu0 0.0
        %1455 = vmatpush1.msra.mxu0 0.0
        %1456 = vmatprep.subr.mxu0 0.0
        %1457 = vmatpush1.msra.mxu0 0.0
        %1458 = vmatprep.subr.mxu0 0.0
        %1459 = vmatpush1.msra.mxu0 0.0
        %1460 = vmatprep.subr.mxu0 0.0
        %1461 = vmatpush1.msra.mxu0 0.0
        %1462 = vmatprep.subr.mxu0 0.0
        %1463 = vmatpush1.msra.mxu0 0.0
        %1464 = vmatprep.subr.mxu0 0.0
        %1465 = vmatpush1.msra.mxu0 0.0
        %1466 = vmatprep.subr.mxu0 0.0
        %1467 = vmatpush1.msra.mxu0 0.0
        %1468 = vmatprep.subr.mxu0 0.0
        %1469 = vmatpush1.msra.mxu0 0.0
        %1470 = vmatprep.subr.mxu0 0.0
        %1471 = vmatpush1.msra.mxu0 0.0
        %1472 = vmatprep.subr.mxu0 0.0
        %1473 = vmatpush1.msra.mxu0 0.0
        %1474 = vmatprep.subr.mxu0 0.0
        %1475 = vmatpush1.msra.mxu0 0.0
        %1476 = vmatprep.subr.mxu0 0.0
        %1477 = vmatpush1.msra.mxu0 0.0
        %1478 = vmatprep.subr.mxu0 0.0
        %1479 = vmatpush1.msra.mxu0 0.0
        %1480 = vmatprep.subr.mxu0 0.0
        %1481 = vmatpush1.msra.mxu0 0.0
        %1482 = vmatprep.subr.mxu0 0.0
        %1483 = vmatpush1.msra.mxu0 0.0
        %1484 = vmatprep.subr.mxu0 0.0
        %1485 = vmatpush1.msra.mxu0 0.0
        %1486 = vmatprep.subr.mxu0 0.0
        %1487 = vmatpush1.msra.mxu0 0.0
        %1488 = vmatprep.subr.mxu0 0.0
        %1489 = vmatpush1.msra.mxu0 0.0
        %1490 = vmatprep.subr.mxu0 0.0
        %1491 = vmatpush1.msra.mxu0 0.0
        %1492 = vmatprep.subr.mxu0 0.0
        %1493 = vmatpush1.msra.mxu0 0.0
        %1494 = vmatprep.subr.mxu0 0.0
        %1495 = vmatpush1.msra.mxu0 0.0
        %1496 = vmatprep.mubr.f32.mxu0 0.0
        %1497 = vmatmul.mubr.f32.gmra.mrb[0].mxu0 %v507
        %v1498 = vpop.f32.mrb[0].mxu0
        %v1499 = vadd.f32 0.0, %v1498
        %v1500 = vpop.f32.mrb[0].mxu0
        %v1501 = vadd.f32 0.0, %v1500
        %1502 = vmatprep.mubr.f32.mxu0 0.0
        %1503 = vmatmul.mubr.f32.gmra.mrb[0].mxu0 %v510
        %v1504 = vpop.f32.mrb[0].mxu0
        %v1505 = vadd.f32 0.0, %v1504
        %v1506 = vpop.f32.mrb[0].mxu0
        %v1507 = vadd.f32 0.0, %v1506
        %1508 = vmatprep.mubr.f32.mxu0 0.0
        %1509 = vmatmul.mubr.f32.gmra.mrb[0].mxu0 %v513
        %v1510 = vpop.f32.mrb[0].mxu0
        %v1511 = vadd.f32 0.0, %v1510
        %v1512 = vpop.f32.mrb[0].mxu0
        %v1513 = vadd.f32 0.0, %v1512
        %1514 = vmatprep.mubr.f32.mxu0 0.0
        %1515 = vmatmul.mubr.f32.gmra.mrb[0].mxu0 %v516
        %v1516 = vpop.f32.mrb[0].mxu0
        %v1517 = vadd.f32 0.0, %v1516
        %v1518 = vpop.f32.mrb[0].mxu0
        %v1519 = vadd.f32 0.0, %v1518
        %1520 = vdwg.mxu0
        %1521 = vmatprep.subr.mxu0 %v1417
        %1522 = vmatpush1.msra.mxu0 %v1416
        %1523 = vmatprep.subr.mxu0 %v1419
        %1524 = vmatpush1.msra.mxu0 %v1418
        %1525 = vmatprep.subr.mxu0 %v1421
        %1526 = vmatpush1.msra.mxu0 %v1420
        %1527 = vmatprep.subr.mxu0 %v1423
        %1528 = vmatpush1.msra.mxu0 %v1422
        %1529 = vmatprep.subr.mxu0 %v1425
        %1530 = vmatpush1.msra.mxu0 %v1424
        %1531 = vmatprep.subr.mxu0 %v1427
        %1532 = vmatpush1.msra.mxu0 %v1426
        %1533 = vmatprep.subr.mxu0 %v1429
        %1534 = vmatpush1.msra.mxu0 %v1428
        %1535 = vmatprep.subr.mxu0 %v1431
        %1536 = vmatpush1.msra.mxu0 %v1430
        %1537 = vmatprep.subr.mxu0 0.0
        %1538 = vmatpush1.msra.mxu0 0.0
        %1539 = vmatprep.subr.mxu0 0.0
        %1540 = vmatpush1.msra.mxu0 0.0
        %1541 = vmatprep.subr.mxu0 0.0
        %1542 = vmatpush1.msra.mxu0 0.0
        %1543 = vmatprep.subr.mxu0 0.0
        %1544 = vmatpush1.msra.mxu0 0.0
        %1545 = vmatprep.subr.mxu0 0.0
        %1546 = vmatpush1.msra.mxu0 0.0
        %1547 = vmatprep.subr.mxu0 0.0
        %1548 = vmatpush1.msra.mxu0 0.0
        %1549 = vmatprep.subr.mxu0 0.0
        %1550 = vmatpush1.msra.mxu0 0.0
        %1551 = vmatprep.subr.mxu0 0.0
        %1552 = vmatpush1.msra.mxu0 0.0
        %1553 = vmatprep.subr.mxu0 0.0
        %1554 = vmatpush1.msra.mxu0 0.0
        %1555 = vmatprep.subr.mxu0 0.0
        %1556 = vmatpush1.msra.mxu0 0.0
        %1557 = vmatprep.subr.mxu0 0.0
        %1558 = vmatpush1.msra.mxu0 0.0
        %1559 = vmatprep.subr.mxu0 0.0
        %1560 = vmatpush1.msra.mxu0 0.0
        %1561 = vmatprep.subr.mxu0 0.0
        %1562 = vmatpush1.msra.mxu0 0.0
        %1563 = vmatprep.subr.mxu0 0.0
        %1564 = vmatpush1.msra.mxu0 0.0
        %1565 = vmatprep.subr.mxu0 0.0
        %1566 = vmatpush1.msra.mxu0 0.0
        %1567 = vmatprep.subr.mxu0 0.0
        %1568 = vmatpush1.msra.mxu0 0.0
        %1569 = vmatprep.subr.mxu0 0.0
        %1570 = vmatpush1.msra.mxu0 0.0
        %1571 = vmatprep.subr.mxu0 0.0
        %1572 = vmatpush1.msra.mxu0 0.0
        %1573 = vmatprep.subr.mxu0 0.0
        %1574 = vmatpush1.msra.mxu0 0.0
        %1575 = vmatprep.subr.mxu0 0.0
        %1576 = vmatpush1.msra.mxu0 0.0
        %1577 = vmatprep.subr.mxu0 0.0
        %1578 = vmatpush1.msra.mxu0 0.0
        %1579 = vmatprep.subr.mxu0 0.0
        %1580 = vmatpush1.msra.mxu0 0.0
        %1581 = vmatprep.subr.mxu0 0.0
        %1582 = vmatpush1.msra.mxu0 0.0
        %1583 = vmatprep.subr.mxu0 0.0
        %1584 = vmatpush1.msra.mxu0 0.0
        %1585 = vmatprep.mubr.f32.mxu0 0.0
        %1586 = vmatmul.mubr.f32.gmra.mrb[0].mxu0 %v507
        %v1587 = vpop.f32.mrb[0].mxu0
        %v1588 = vadd.f32 0.0, %v1587
        %v1589 = vpop.f32.mrb[0].mxu0
        %v1590 = vadd.f32 0.0, %v1589
        %1591 = vmatprep.mubr.f32.mxu0 0.0
        %1592 = vmatmul.mubr.f32.gmra.mrb[0].mxu0 %v510
        %v1593 = vpop.f32.mrb[0].mxu0
        %v1594 = vadd.f32 0.0, %v1593
        %v1595 = vpop.f32.mrb[0].mxu0
        %v1596 = vadd.f32 0.0, %v1595
        %1597 = vmatprep.mubr.f32.mxu0 0.0
        %1598 = vmatmul.mubr.f32.gmra.mrb[0].mxu0 %v513
        %v1599 = vpop.f32.mrb[0].mxu0
        %v1600 = vadd.f32 0.0, %v1599
        %v1601 = vpop.f32.mrb[0].mxu0
        %v1602 = vadd.f32 0.0, %v1601
        %1603 = vmatprep.mubr.f32.mxu0 0.0
        %1604 = vmatmul.mubr.f32.gmra.mrb[0].mxu0 %v516
        %v1605 = vpop.f32.mrb[0].mxu0
        %v1606 = vadd.f32 0.0, %v1605
        %v1607 = vpop.f32.mrb[0].mxu0
        %v1608 = vadd.f32 0.0, %v1607
        %1609 = vdwg.mxu0
        %v1610 = vadd.f32 %v1499, %v1501
        %1611 = vadd.xlane.f32.xlu0 %v1610
        %v1612 = vpop.xlane.xlu0 %1611
        %v1613 = vadd.f32 %v1505, %v1507
        %1614 = vadd.xlane.f32.xlu0 %v1613
        %v1615 = vpop.xlane.xlu0 %1614
        %v1616 = vadd.f32 %v1511, %v1513
        %1617 = vadd.xlane.f32.xlu0 %v1616
        %v1618 = vpop.xlane.xlu0 %1617
        %v1619 = vadd.f32 %v1517, %v1519
        %1620 = vadd.xlane.f32.xlu0 %v1619
        %v1621 = vpop.xlane.xlu0 %1620
        %v1622 = vmul.f32 %v1612, 0.001953125
        %v1623 = vmul.f32 %v1615, 0.001953125
        %v1624 = vmul.f32 %v1618, 0.001953125
        %v1625 = vmul.f32 %v1621, 0.001953125
        %v1626 = vadd.f32 %v1588, %v1590
        %1627 = vadd.xlane.f32.xlu0 %v1626
        %v1628 = vpop.xlane.xlu0 %1627
        %v1629 = vadd.f32 %v1594, %v1596
        %1630 = vadd.xlane.f32.xlu0 %v1629
        %v1631 = vpop.xlane.xlu0 %1630
        %v1632 = vadd.f32 %v1600, %v1602
        %1633 = vadd.xlane.f32.xlu0 %v1632
        %v1634 = vpop.xlane.xlu0 %1633
        %v1635 = vadd.f32 %v1606, %v1608
        %1636 = vadd.xlane.f32.xlu0 %v1635
        %v1637 = vpop.xlane.xlu0 %1636
        %v1638 = vmul.f32 %v1628, 0.001953125
        %v1639 = vmul.f32 %v1631, 0.001953125
        %v1640 = vmul.f32 %v1634, 0.001953125
        %v1641 = vmul.f32 %v1637, 0.001953125
        %v1642 = vmul.f32 %v1622, %v1622
        %v1643 = vmul.f32 %v1623, %v1623
        %v1644 = vmul.f32 %v1624, %v1624
        %v1645 = vmul.f32 %v1625, %v1625
        %v1646 = vsub.f32 %v1638, %v1642
        %v1647 = vsub.f32 %v1639, %v1643
        %v1648 = vsub.f32 %v1640, %v1644
        %v1649 = vsub.f32 %v1641, %v1645
        %v1650 = vmax.f32 %v1646, 0.0
        %v1651 = vmax.f32 %v1647, 0.0
        %v1652 = vmax.f32 %v1648, 0.0
        %v1653 = vmax.f32 %v1649, 0.0
        %v1654 = vadd.f32 %v1650, 1e-06
        %v1655 = vadd.f32 %v1651, 1e-06
        %v1656 = vadd.f32 %v1652, 1e-06
        %v1657 = vadd.f32 %v1653, 1e-06
        %v1658 = vrsqrt.pop %v1654
        %v1659 = vrsqrt.pop %v1655
        %v1660 = vrsqrt.pop %v1656
        %v1661 = vrsqrt.pop %v1657
        %1662 = vmatprep.subr.mxu0 0.0
        %1663 = vmatpush1.msra.mxu0 %v1622
        %1664 = vmatprep.subr.mxu0 0.0
        %1665 = vmatpush1.msra.mxu0 %v1623
        %1666 = vmatprep.subr.mxu0 0.0
        %1667 = vmatpush1.msra.mxu0 %v1624
        %1668 = vmatprep.subr.mxu0 0.0
        %1669 = vmatpush1.msra.mxu0 %v1625
        %1670 = vmatprep.subr.mxu0 0.0
        %1671 = vmatpush1.msra.mxu0 0.0
        %1672 = vmatprep.subr.mxu0 0.0
        %1673 = vmatpush1.msra.mxu0 0.0
        %1674 = vmatprep.subr.mxu0 0.0
        %1675 = vmatpush1.msra.mxu0 0.0
        %1676 = vmatprep.subr.mxu0 0.0
        %1677 = vmatpush1.msra.mxu0 0.0
        %1678 = vmatprep.subr.mxu0 0.0
        %1679 = vmatpush1.msra.mxu0 0.0
        %1680 = vmatprep.subr.mxu0 0.0
        %1681 = vmatpush1.msra.mxu0 0.0
        %1682 = vmatprep.subr.mxu0 0.0
        %1683 = vmatpush1.msra.mxu0 0.0
        %1684 = vmatprep.subr.mxu0 0.0
        %1685 = vmatpush1.msra.mxu0 0.0
        %1686 = vmatprep.subr.mxu0 0.0
        %1687 = vmatpush1.msra.mxu0 0.0
        %1688 = vmatprep.subr.mxu0 0.0
        %1689 = vmatpush1.msra.mxu0 0.0
        %1690 = vmatprep.subr.mxu0 0.0
        %1691 = vmatpush1.msra.mxu0 0.0
        %1692 = vmatprep.subr.mxu0 0.0
        %1693 = vmatpush1.msra.mxu0 0.0
        %1694 = vmatprep.subr.mxu0 0.0
        %1695 = vmatpush1.msra.mxu0 0.0
        %1696 = vmatprep.subr.mxu0 0.0
        %1697 = vmatpush1.msra.mxu0 0.0
        %1698 = vmatprep.subr.mxu0 0.0
        %1699 = vmatpush1.msra.mxu0 0.0
        %1700 = vmatprep.subr.mxu0 0.0
        %1701 = vmatpush1.msra.mxu0 0.0
        %1702 = vmatprep.subr.mxu0 0.0
        %1703 = vmatpush1.msra.mxu0 0.0
        %1704 = vmatprep.subr.mxu0 0.0
        %1705 = vmatpush1.msra.mxu0 0.0
        %1706 = vmatprep.subr.mxu0 0.0
        %1707 = vmatpush1.msra.mxu0 0.0
        %1708 = vmatprep.subr.mxu0 0.0
        %1709 = vmatpush1.msra.mxu0 0.0
        %1710 = vmatprep.subr.mxu0 0.0
        %1711 = vmatpush1.msra.mxu0 0.0
        %1712 = vmatprep.subr.mxu0 0.0
        %1713 = vmatpush1.msra.mxu0 0.0
        %1714 = vmatprep.subr.mxu0 0.0
        %1715 = vmatpush1.msra.mxu0 0.0
        %1716 = vmatprep.subr.mxu0 0.0
        %1717 = vmatpush1.msra.mxu0 0.0
        %1718 = vmatprep.subr.mxu0 0.0
        %1719 = vmatpush1.msra.mxu0 0.0
        %1720 = vmatprep.subr.mxu0 0.0
        %1721 = vmatpush1.msra.mxu0 0.0
        %1722 = vmatprep.subr.mxu0 0.0
        %1723 = vmatpush1.msra.mxu0 0.0
        %1724 = vmatprep.subr.mxu0 0.0
        %1725 = vmatpush1.msra.mxu0 0.0
        %1726 = vmatprep.mubr.f32.mxu0 0.0
        %1727 = vmatmul.mubr.f32.gmra.mrb[0].mxu0 %v750
        %v1728 = vpop.f32.mrb[0].mxu0
        %v1729 = vadd.f32 0.0, %v1728
        %v1730 = vpop.f32.mrb[0].mxu0
        %1731 = vmatprep.mubr.f32.mxu0 0.0
        %1732 = vmatmul.mubr.f32.gmra.mrb[0].mxu0 %v753
        %v1733 = vpop.f32.mrb[0].mxu0
        %v1734 = vadd.f32 0.0, %v1733
        %v1735 = vpop.f32.mrb[0].mxu0
        %1736 = vmatprep.mubr.f32.mxu0 0.0
        %1737 = vmatmul.mubr.f32.gmra.mrb[0].mxu0 %v756
        %v1738 = vpop.f32.mrb[0].mxu0
        %v1739 = vadd.f32 0.0, %v1738
        %v1740 = vpop.f32.mrb[0].mxu0
        %1741 = vmatprep.mubr.f32.mxu0 0.0
        %1742 = vmatmul.mubr.f32.gmra.mrb[0].mxu0 %v759
        %v1743 = vpop.f32.mrb[0].mxu0
        %v1744 = vadd.f32 0.0, %v1743
        %v1745 = vpop.f32.mrb[0].mxu0
        %1746 = vmatprep.mubr.f32.mxu0 0.0
        %1747 = vmatmul.mubr.f32.gmra.mrb[0].mxu0 %v762
        %v1748 = vpop.f32.mrb[0].mxu0
        %v1749 = vadd.f32 0.0, %v1748
        %v1750 = vpop.f32.mrb[0].mxu0
        %1751 = vmatprep.mubr.f32.mxu0 0.0
        %1752 = vmatmul.mubr.f32.gmra.mrb[0].mxu0 %v765
        %v1753 = vpop.f32.mrb[0].mxu0
        %v1754 = vadd.f32 0.0, %v1753
        %v1755 = vpop.f32.mrb[0].mxu0
        %1756 = vmatprep.mubr.f32.mxu0 0.0
        %1757 = vmatmul.mubr.f32.gmra.mrb[0].mxu0 %v768
        %v1758 = vpop.f32.mrb[0].mxu0
        %v1759 = vadd.f32 0.0, %v1758
        %v1760 = vpop.f32.mrb[0].mxu0
        %1761 = vmatprep.mubr.f32.mxu0 0.0
        %1762 = vmatmul.mubr.f32.gmra.mrb[0].mxu0 %v771
        %v1763 = vpop.f32.mrb[0].mxu0
        %v1764 = vadd.f32 0.0, %v1763
        %v1765 = vpop.f32.mrb[0].mxu0
        %1766 = vdwg.mxu0
        %1767 = vmatprep.subr.mxu0 0.0
        %1768 = vmatpush1.msra.mxu0 %v1658
        %1769 = vmatprep.subr.mxu0 0.0
        %1770 = vmatpush1.msra.mxu0 %v1659
        %1771 = vmatprep.subr.mxu0 0.0
        %1772 = vmatpush1.msra.mxu0 %v1660
        %1773 = vmatprep.subr.mxu0 0.0
        %1774 = vmatpush1.msra.mxu0 %v1661
        %1775 = vmatprep.subr.mxu0 0.0
        %1776 = vmatpush1.msra.mxu0 0.0
        %1777 = vmatprep.subr.mxu0 0.0
        %1778 = vmatpush1.msra.mxu0 0.0
        %1779 = vmatprep.subr.mxu0 0.0
        %1780 = vmatpush1.msra.mxu0 0.0
        %1781 = vmatprep.subr.mxu0 0.0
        %1782 = vmatpush1.msra.mxu0 0.0
        %1783 = vmatprep.subr.mxu0 0.0
        %1784 = vmatpush1.msra.mxu0 0.0
        %1785 = vmatprep.subr.mxu0 0.0
        %1786 = vmatpush1.msra.mxu0 0.0
        %1787 = vmatprep.subr.mxu0 0.0
        %1788 = vmatpush1.msra.mxu0 0.0
        %1789 = vmatprep.subr.mxu0 0.0
        %1790 = vmatpush1.msra.mxu0 0.0
        %1791 = vmatprep.subr.mxu0 0.0
        %1792 = vmatpush1.msra.mxu0 0.0
        %1793 = vmatprep.subr.mxu0 0.0
        %1794 = vmatpush1.msra.mxu0 0.0
        %1795 = vmatprep.subr.mxu0 0.0
        %1796 = vmatpush1.msra.mxu0 0.0
        %1797 = vmatprep.subr.mxu0 0.0
        %1798 = vmatpush1.msra.mxu0 0.0
        %1799 = vmatprep.subr.mxu0 0.0
        %1800 = vmatpush1.msra.mxu0 0.0
        %1801 = vmatprep.subr.mxu0 0.0
        %1802 = vmatpush1.msra.mxu0 0.0
        %1803 = vmatprep.subr.mxu0 0.0
        %1804 = vmatpush1.msra.mxu0 0.0
        %1805 = vmatprep.subr.mxu0 0.0
        %1806 = vmatpush1.msra.mxu0 0.0
        %1807 = vmatprep.subr.mxu0 0.0
        %1808 = vmatpush1.msra.mxu0 0.0
        %1809 = vmatprep.subr.mxu0 0.0
        %1810 = vmatpush1.msra.mxu0 0.0
        %1811 = vmatprep.subr.mxu0 0.0
        %1812 = vmatpush1.msra.mxu0 0.0
        %1813 = vmatprep.subr.mxu0 0.0
        %1814 = vmatpush1.msra.mxu0 0.0
        %1815 = vmatprep.subr.mxu0 0.0
        %1816 = vmatpush1.msra.mxu0 0.0
        %1817 = vmatprep.subr.mxu0 0.0
        %1818 = vmatpush1.msra.mxu0 0.0
        %1819 = vmatprep.subr.mxu0 0.0
        %1820 = vmatpush1.msra.mxu0 0.0
        %1821 = vmatprep.subr.mxu0 0.0
        %1822 = vmatpush1.msra.mxu0 0.0
        %1823 = vmatprep.subr.mxu0 0.0
        %1824 = vmatpush1.msra.mxu0 0.0
        %1825 = vmatprep.subr.mxu0 0.0
        %1826 = vmatpush1.msra.mxu0 0.0
        %1827 = vmatprep.subr.mxu0 0.0
        %1828 = vmatpush1.msra.mxu0 0.0
        %1829 = vmatprep.subr.mxu0 0.0
        %1830 = vmatpush1.msra.mxu0 0.0
        %1831 = vmatprep.mubr.f32.mxu0 0.0
        %1832 = vmatmul.mubr.f32.gmra.mrb[0].mxu0 %v750
        %v1833 = vpop.f32.mrb[0].mxu0
        %v1834 = vadd.f32 0.0, %v1833
        %v1835 = vpop.f32.mrb[0].mxu0
        %1836 = vmatprep.mubr.f32.mxu0 0.0
        %1837 = vmatmul.mubr.f32.gmra.mrb[0].mxu0 %v753
        %v1838 = vpop.f32.mrb[0].mxu0
        %v1839 = vadd.f32 0.0, %v1838
        %v1840 = vpop.f32.mrb[0].mxu0
        %1841 = vmatprep.mubr.f32.mxu0 0.0
        %1842 = vmatmul.mubr.f32.gmra.mrb[0].mxu0 %v756
        %v1843 = vpop.f32.mrb[0].mxu0
        %v1844 = vadd.f32 0.0, %v1843
        %v1845 = vpop.f32.mrb[0].mxu0
        %1846 = vmatprep.mubr.f32.mxu0 0.0
        %1847 = vmatmul.mubr.f32.gmra.mrb[0].mxu0 %v759
        %v1848 = vpop.f32.mrb[0].mxu0
        %v1849 = vadd.f32 0.0, %v1848
        %v1850 = vpop.f32.mrb[0].mxu0
        %1851 = vmatprep.mubr.f32.mxu0 0.0
        %1852 = vmatmul.mubr.f32.gmra.mrb[0].mxu0 %v762
        %v1853 = vpop.f32.mrb[0].mxu0
        %v1854 = vadd.f32 0.0, %v1853
        %v1855 = vpop.f32.mrb[0].mxu0
        %1856 = vmatprep.mubr.f32.mxu0 0.0
        %1857 = vmatmul.mubr.f32.gmra.mrb[0].mxu0 %v765
        %v1858 = vpop.f32.mrb[0].mxu0
        %v1859 = vadd.f32 0.0, %v1858
        %v1860 = vpop.f32.mrb[0].mxu0
        %1861 = vmatprep.mubr.f32.mxu0 0.0
        %1862 = vmatmul.mubr.f32.gmra.mrb[0].mxu0 %v768
        %v1863 = vpop.f32.mrb[0].mxu0
        %v1864 = vadd.f32 0.0, %v1863
        %v1865 = vpop.f32.mrb[0].mxu0
        %1866 = vmatprep.mubr.f32.mxu0 0.0
        %1867 = vmatmul.mubr.f32.gmra.mrb[0].mxu0 %v771
        %v1868 = vpop.f32.mrb[0].mxu0
        %v1869 = vadd.f32 0.0, %v1868
        %v1870 = vpop.f32.mrb[0].mxu0
        %1871 = vdwg.mxu0
        %v1872 = vmul.f32 %v1834, %v433
        %v1873 = vmul.f32 %v1839, %v434
        %v1874 = vmul.f32 %v1844, %v435
        %v1875 = vmul.f32 %v1849, %v436
        %v1876 = vmul.f32 %v1854, %v437
        %v1877 = vmul.f32 %v1859, %v438
        %v1878 = vmul.f32 %v1864, %v439
        %v1879 = vmul.f32 %v1869, %v440
        %v1880 = vmul.f32 %v1729, %v1872
        %v1881 = vmul.f32 %v1734, %v1873
        %v1882 = vmul.f32 %v1739, %v1874
        %v1883 = vmul.f32 %v1744, %v1875
        %v1884 = vmul.f32 %v1749, %v1876
        %v1885 = vmul.f32 %v1754, %v1877
        %v1886 = vmul.f32 %v1759, %v1878
        %v1887 = vmul.f32 %v1764, %v1879
        %v1888 = vsub.f32 %v441, %v1880
        %v1889 = vsub.f32 %v442, %v1881
        %v1890 = vsub.f32 %v443, %v1882
        %v1891 = vsub.f32 %v444, %v1883
        %v1892 = vsub.f32 %v445, %v1884
        %v1893 = vsub.f32 %v446, %v1885
        %v1894 = vsub.f32 %v447, %v1886
        %v1895 = vsub.f32 %v448, %v1887
        %1897 = vset.pattern.permute.xlu0 0
        %1898 = vperm.xlu0 %1897, %v1872
        %v1899 = vpop.permute.xlu0 %1898
        %1902 = vset.pattern.permute.xlu0 0
        %1903 = vperm.xlu0 %1902, %v1873
        %v1904 = vpop.permute.xlu0 %1903
        %1907 = vset.pattern.permute.xlu0 0
        %1908 = vperm.xlu0 %1907, %v1874
        %v1909 = vpop.permute.xlu0 %1908
        %1912 = vset.pattern.permute.xlu0 0
        %1913 = vperm.xlu0 %1912, %v1875
        %v1914 = vpop.permute.xlu0 %1913
        %1917 = vset.pattern.permute.xlu0 0
        %1918 = vperm.xlu0 %1917, %v1876
        %v1919 = vpop.permute.xlu0 %1918
        %1922 = vset.pattern.permute.xlu0 0
        %1923 = vperm.xlu0 %1922, %v1877
        %v1924 = vpop.permute.xlu0 %1923
        %1927 = vset.pattern.permute.xlu0 0
        %1928 = vperm.xlu0 %1927, %v1878
        %v1929 = vpop.permute.xlu0 %1928
        %1932 = vset.pattern.permute.xlu0 0
        %1933 = vperm.xlu0 %1932, %v1879
        %v1934 = vpop.permute.xlu0 %1933
        %v1936 = vmul.f32 %v1370, %v1899
        %v1937 = vmul.f32 %v1372, %v1899
        %v1938 = vmul.f32 %v1376, %v1904
        %v1939 = vmul.f32 %v1378, %v1904
        %v1940 = vmul.f32 %v1382, %v1909
        %v1941 = vmul.f32 %v1384, %v1909
        %v1942 = vmul.f32 %v1388, %v1914
        %v1943 = vmul.f32 %v1390, %v1914
        %v1944 = vmul.f32 %v1394, %v1919
        %v1945 = vmul.f32 %v1396, %v1919
        %v1946 = vmul.f32 %v1400, %v1924
        %v1947 = vmul.f32 %v1402, %v1924
        %v1948 = vmul.f32 %v1406, %v1929
        %v1949 = vmul.f32 %v1408, %v1929
        %v1950 = vmul.f32 %v1412, %v1934
        %v1951 = vmul.f32 %v1414, %v1934
        %1953 = vset.pattern.permute.xlu0 0
        %1954 = vperm.xlu0 %1953, %v1888
        %v1955 = vpop.permute.xlu0 %1954
        %1958 = vset.pattern.permute.xlu0 0
        %1959 = vperm.xlu0 %1958, %v1889
        %v1960 = vpop.permute.xlu0 %1959
        %1963 = vset.pattern.permute.xlu0 0
        %1964 = vperm.xlu0 %1963, %v1890
        %v1965 = vpop.permute.xlu0 %1964
        %1968 = vset.pattern.permute.xlu0 0
        %1969 = vperm.xlu0 %1968, %v1891
        %v1970 = vpop.permute.xlu0 %1969
        %1973 = vset.pattern.permute.xlu0 0
        %1974 = vperm.xlu0 %1973, %v1892
        %v1975 = vpop.permute.xlu0 %1974
        %1978 = vset.pattern.permute.xlu0 0
        %1979 = vperm.xlu0 %1978, %v1893
        %v1980 = vpop.permute.xlu0 %1979
        %1983 = vset.pattern.permute.xlu0 0
        %1984 = vperm.xlu0 %1983, %v1894
        %v1985 = vpop.permute.xlu0 %1984
        %1988 = vset.pattern.permute.xlu0 0
        %1989 = vperm.xlu0 %1988, %v1895
        %v1990 = vpop.permute.xlu0 %1989
        %v1992 = vadd.f32 %v1936, %v1955
        %v1993 = vadd.f32 %v1937, %v1955
        %v1994 = vadd.f32 %v1938, %v1960
        %v1995 = vadd.f32 %v1939, %v1960
        %v1996 = vadd.f32 %v1940, %v1965
        %v1997 = vadd.f32 %v1941, %v1965
        %v1998 = vadd.f32 %v1942, %v1970
        %v1999 = vadd.f32 %v1943, %v1970
        %v2000 = vadd.f32 %v1944, %v1975
        %v2001 = vadd.f32 %v1945, %v1975
        %v2002 = vadd.f32 %v1946, %v1980
        %v2003 = vadd.f32 %v1947, %v1980
        %v2004 = vadd.f32 %v1948, %v1985
        %v2005 = vadd.f32 %v1949, %v1985
        %v2006 = vadd.f32 %v1950, %v1990
        %v2007 = vadd.f32 %v1951, %v1990
        %v2008 = vxor.u32 %v1992, 2147483648
        %v2009 = vxor.u32 %v1993, 2147483648
        %v2010 = vxor.u32 %v1994, 2147483648
        %v2011 = vxor.u32 %v1995, 2147483648
        %v2012 = vxor.u32 %v1996, 2147483648
        %v2013 = vxor.u32 %v1997, 2147483648
        %v2014 = vxor.u32 %v1998, 2147483648
        %v2015 = vxor.u32 %v1999, 2147483648
        %v2016 = vxor.u32 %v2000, 2147483648
        %v2017 = vxor.u32 %v2001, 2147483648
        %v2018 = vxor.u32 %v2002, 2147483648
        %v2019 = vxor.u32 %v2003, 2147483648
        %v2020 = vxor.u32 %v2004, 2147483648
        %v2021 = vxor.u32 %v2005, 2147483648
        %v2022 = vxor.u32 %v2006, 2147483648
        %v2023 = vxor.u32 %v2007, 2147483648
        %v2024 = vmul.f32 %v2008, 1.442695
        %v2025 = vpow.pop %v2024
        %v2026 = vmul.f32 %v2009, 1.442695
        %v2027 = vpow.pop %v2026
        %v2028 = vmul.f32 %v2010, 1.442695
        %v2029 = vpow.pop %v2028
        %v2030 = vmul.f32 %v2011, 1.442695
        %v2031 = vpow.pop %v2030
        %v2032 = vmul.f32 %v2012, 1.442695
        %v2033 = vpow.pop %v2032
        %v2034 = vmul.f32 %v2013, 1.442695
        %v2035 = vpow.pop %v2034
        %v2036 = vmul.f32 %v2014, 1.442695
        %v2037 = vpow.pop %v2036
        %v2038 = vmul.f32 %v2015, 1.442695
        %v2039 = vpow.pop %v2038
        %v2040 = vmul.f32 %v2016, 1.442695
        %v2041 = vpow.pop %v2040
        %v2042 = vmul.f32 %v2017, 1.442695
        %v2043 = vpow.pop %v2042
        %v2044 = vmul.f32 %v2018, 1.442695
        %v2045 = vpow.pop %v2044
        %v2046 = vmul.f32 %v2019, 1.442695
        %v2047 = vpow.pop %v2046
        %v2048 = vmul.f32 %v2020, 1.442695
        %v2049 = vpow.pop %v2048
        %v2050 = vmul.f32 %v2021, 1.442695
        %v2051 = vpow.pop %v2050
        %v2052 = vmul.f32 %v2022, 1.442695
        %v2053 = vpow.pop %v2052
        %v2054 = vmul.f32 %v2023, 1.442695
        %v2055 = vpow.pop %v2054
        %v2056 = vadd.f32 %v2025, 1.0
        %v2057 = vadd.f32 %v2027, 1.0
        %v2058 = vadd.f32 %v2029, 1.0
        %v2059 = vadd.f32 %v2031, 1.0
        %v2060 = vadd.f32 %v2033, 1.0
        %v2061 = vadd.f32 %v2035, 1.0
        %v2062 = vadd.f32 %v2037, 1.0
        %v2063 = vadd.f32 %v2039, 1.0
        %v2064 = vadd.f32 %v2041, 1.0
        %v2065 = vadd.f32 %v2043, 1.0
        %v2066 = vadd.f32 %v2045, 1.0
        %v2067 = vadd.f32 %v2047, 1.0
        %v2068 = vadd.f32 %v2049, 1.0
        %v2069 = vadd.f32 %v2051, 1.0
        %v2070 = vadd.f32 %v2053, 1.0
        %v2071 = vadd.f32 %v2055, 1.0
        %v2072 = vrcp.pop %v2056
        %v2073 = vmul.f32 1.0, %v2072
        %v2074 = vrcp.pop %v2057
        %v2075 = vmul.f32 1.0, %v2074
        %v2076 = vrcp.pop %v2058
        %v2077 = vmul.f32 1.0, %v2076
        %v2078 = vrcp.pop %v2059
        %v2079 = vmul.f32 1.0, %v2078
        %v2080 = vrcp.pop %v2060
        %v2081 = vmul.f32 1.0, %v2080
        %v2082 = vrcp.pop %v2061
        %v2083 = vmul.f32 1.0, %v2082
        %v2084 = vrcp.pop %v2062
        %v2085 = vmul.f32 1.0, %v2084
        %v2086 = vrcp.pop %v2063
        %v2087 = vmul.f32 1.0, %v2086
        %v2088 = vrcp.pop %v2064
        %v2089 = vmul.f32 1.0, %v2088
        %v2090 = vrcp.pop %v2065
        %v2091 = vmul.f32 1.0, %v2090
        %v2092 = vrcp.pop %v2066
        %v2093 = vmul.f32 1.0, %v2092
        %v2094 = vrcp.pop %v2067
        %v2095 = vmul.f32 1.0, %v2094
        %v2096 = vrcp.pop %v2068
        %v2097 = vmul.f32 1.0, %v2096
        %v2098 = vrcp.pop %v2069
        %v2099 = vmul.f32 1.0, %v2098
        %v2100 = vrcp.pop %v2070
        %v2101 = vmul.f32 1.0, %v2100
        %v2102 = vrcp.pop %v2071
        %v2103 = vmul.f32 1.0, %v2102
        %v2104 = vmul.f32 %v1992, %v2073
        %v2105 = vmul.f32 %v1993, %v2075
        %v2106 = vmul.f32 %v1994, %v2077
        %v2107 = vmul.f32 %v1995, %v2079
        %v2108 = vmul.f32 %v1996, %v2081
        %v2109 = vmul.f32 %v1997, %v2083
        %v2110 = vmul.f32 %v1998, %v2085
        %v2111 = vmul.f32 %v1999, %v2087
        %v2112 = vmul.f32 %v2000, %v2089
        %v2113 = vmul.f32 %v2001, %v2091
        %v2114 = vmul.f32 %v2002, %v2093
        %v2115 = vmul.f32 %v2003, %v2095
        %v2116 = vmul.f32 %v2004, %v2097
        %v2117 = vmul.f32 %v2005, %v2099
        %v2118 = vmul.f32 %v2006, %v2101
        %v2119 = vmul.f32 %v2007, %v2103
        %2121 = vset.pattern.permute.xlu0 0
        %2122 = vperm.xlu0 %2121, %v465
        %v2123 = vpop.permute.xlu0 %2122
        %2126 = vset.pattern.permute.xlu0 0
        %2127 = vperm.xlu0 %2126, %v466
        %v2128 = vpop.permute.xlu0 %2127
        %2131 = vset.pattern.permute.xlu0 0
        %2132 = vperm.xlu0 %2131, %v467
        %v2133 = vpop.permute.xlu0 %2132
        %2136 = vset.pattern.permute.xlu0 0
        %2137 = vperm.xlu0 %2136, %v468
        %v2138 = vpop.permute.xlu0 %2137
        %2141 = vset.pattern.permute.xlu0 0
        %2142 = vperm.xlu0 %2141, %v469
        %v2143 = vpop.permute.xlu0 %2142
        %2146 = vset.pattern.permute.xlu0 0
        %2147 = vperm.xlu0 %2146, %v470
        %v2148 = vpop.permute.xlu0 %2147
        %2151 = vset.pattern.permute.xlu0 0
        %2152 = vperm.xlu0 %2151, %v471
        %v2153 = vpop.permute.xlu0 %2152
        %2156 = vset.pattern.permute.xlu0 0
        %2157 = vperm.xlu0 %2156, %v472
        %v2158 = vpop.permute.xlu0 %2157
        %v2161 = vsel %vm505, %v457, 0
        %v2164 = vsel %vm505, %v458, 0
        %v2167 = vsel %vm505, %v459, 0
        %v2170 = vsel %vm505, %v460, 0
        %v2173 = vsel %vm505, %v461, 0
        %v2176 = vsel %vm505, %v462, 0
        %v2179 = vsel %vm505, %v463, 0
        %v2182 = vsel %vm505, %v464, 0
        %2184 = vmatprep.subr.mxu0 %v2105
        %2185 = vmatpush1.msra.mxu0 %v2104
        %2186 = vmatprep.subr.mxu0 %v2107
        %2187 = vmatpush1.msra.mxu0 %v2106
        %2188 = vmatprep.subr.mxu0 %v2109
        %2189 = vmatpush1.msra.mxu0 %v2108
        %2190 = vmatprep.subr.mxu0 %v2111
        %2191 = vmatpush1.msra.mxu0 %v2110
        %2192 = vmatprep.subr.mxu0 %v2113
        %2193 = vmatpush1.msra.mxu0 %v2112
        %2194 = vmatprep.subr.mxu0 %v2115
        %2195 = vmatpush1.msra.mxu0 %v2114
        %2196 = vmatprep.subr.mxu0 %v2117
        %2197 = vmatpush1.msra.mxu0 %v2116
        %2198 = vmatprep.subr.mxu0 %v2119
        %2199 = vmatpush1.msra.mxu0 %v2118
        %2200 = vmatprep.subr.mxu0 0.0
        %2201 = vmatpush1.msra.mxu0 0.0
        %2202 = vmatprep.subr.mxu0 0.0
        %2203 = vmatpush1.msra.mxu0 0.0
        %2204 = vmatprep.subr.mxu0 0.0
        %2205 = vmatpush1.msra.mxu0 0.0
        %2206 = vmatprep.subr.mxu0 0.0
        %2207 = vmatpush1.msra.mxu0 0.0
        %2208 = vmatprep.subr.mxu0 0.0
        %2209 = vmatpush1.msra.mxu0 0.0
        %2210 = vmatprep.subr.mxu0 0.0
        %2211 = vmatpush1.msra.mxu0 0.0
        %2212 = vmatprep.subr.mxu0 0.0
        %2213 = vmatpush1.msra.mxu0 0.0
        %2214 = vmatprep.subr.mxu0 0.0
        %2215 = vmatpush1.msra.mxu0 0.0
        %2216 = vmatprep.subr.mxu0 0.0
        %2217 = vmatpush1.msra.mxu0 0.0
        %2218 = vmatprep.subr.mxu0 0.0
        %2219 = vmatpush1.msra.mxu0 0.0
        %2220 = vmatprep.subr.mxu0 0.0
        %2221 = vmatpush1.msra.mxu0 0.0
        %2222 = vmatprep.subr.mxu0 0.0
        %2223 = vmatpush1.msra.mxu0 0.0
        %2224 = vmatprep.subr.mxu0 0.0
        %2225 = vmatpush1.msra.mxu0 0.0
        %2226 = vmatprep.subr.mxu0 0.0
        %2227 = vmatpush1.msra.mxu0 0.0
        %2228 = vmatprep.subr.mxu0 0.0
        %2229 = vmatpush1.msra.mxu0 0.0
        %2230 = vmatprep.subr.mxu0 0.0
        %2231 = vmatpush1.msra.mxu0 0.0
        %2232 = vmatprep.subr.mxu0 0.0
        %2233 = vmatpush1.msra.mxu0 0.0
        %2234 = vmatprep.subr.mxu0 0.0
        %2235 = vmatpush1.msra.mxu0 0.0
        %2236 = vmatprep.subr.mxu0 0.0
        %2237 = vmatpush1.msra.mxu0 0.0
        %2238 = vmatprep.subr.mxu0 0.0
        %2239 = vmatpush1.msra.mxu0 0.0
        %2240 = vmatprep.subr.mxu0 0.0
        %2241 = vmatpush1.msra.mxu0 0.0
        %2242 = vmatprep.subr.mxu0 0.0
        %2243 = vmatpush1.msra.mxu0 0.0
        %2244 = vmatprep.subr.mxu0 0.0
        %2245 = vmatpush1.msra.mxu0 0.0
        %2246 = vmatprep.subr.mxu0 0.0
        %2247 = vmatpush1.msra.mxu0 0.0
        %2248 = vmatprep.mubr.f32.mxu0 0.0
        %2249 = vmatmul.mubr.f32.gmra.mrb[0].mxu0 %v2161
        %v2250 = vpop.f32.mrb[0].mxu0
        %v2251 = vadd.f32 %v2123, %v2250
        %v2252 = vpop.f32.mrb[0].mxu0
        %v2253 = vadd.f32 %v2123, %v2252
        %2254 = vmatprep.mubr.f32.mxu0 0.0
        %2255 = vmatmul.mubr.f32.gmra.mrb[0].mxu0 %v2164
        %v2256 = vpop.f32.mrb[0].mxu0
        %v2257 = vadd.f32 %v2128, %v2256
        %v2258 = vpop.f32.mrb[0].mxu0
        %v2259 = vadd.f32 %v2128, %v2258
        %2260 = vmatprep.mubr.f32.mxu0 0.0
        %2261 = vmatmul.mubr.f32.gmra.mrb[0].mxu0 %v2167
        %v2262 = vpop.f32.mrb[0].mxu0
        %v2263 = vadd.f32 %v2133, %v2262
        %v2264 = vpop.f32.mrb[0].mxu0
        %v2265 = vadd.f32 %v2133, %v2264
        %2266 = vmatprep.mubr.f32.mxu0 0.0
        %2267 = vmatmul.mubr.f32.gmra.mrb[0].mxu0 %v2170
        %v2268 = vpop.f32.mrb[0].mxu0
        %v2269 = vadd.f32 %v2138, %v2268
        %v2270 = vpop.f32.mrb[0].mxu0
        %v2271 = vadd.f32 %v2138, %v2270
        %2272 = vmatprep.mubr.f32.mxu0 0.0
        %2273 = vmatmul.mubr.f32.gmra.mrb[0].mxu0 %v2173
        %v2274 = vpop.f32.mrb[0].mxu0
        %v2275 = vadd.f32 %v2143, %v2274
        %v2276 = vpop.f32.mrb[0].mxu0
        %v2277 = vadd.f32 %v2143, %v2276
        %2278 = vmatprep.mubr.f32.mxu0 0.0
        %2279 = vmatmul.mubr.f32.gmra.mrb[0].mxu0 %v2176
        %v2280 = vpop.f32.mrb[0].mxu0
        %v2281 = vadd.f32 %v2148, %v2280
        %v2282 = vpop.f32.mrb[0].mxu0
        %v2283 = vadd.f32 %v2148, %v2282
        %2284 = vmatprep.mubr.f32.mxu0 0.0
        %2285 = vmatmul.mubr.f32.gmra.mrb[0].mxu0 %v2179
        %v2286 = vpop.f32.mrb[0].mxu0
        %v2287 = vadd.f32 %v2153, %v2286
        %v2288 = vpop.f32.mrb[0].mxu0
        %v2289 = vadd.f32 %v2153, %v2288
        %2290 = vmatprep.mubr.f32.mxu0 0.0
        %2291 = vmatmul.mubr.f32.gmra.mrb[0].mxu0 %v2182
        %v2292 = vpop.f32.mrb[0].mxu0
        %v2293 = vadd.f32 %v2158, %v2292
        %v2294 = vpop.f32.mrb[0].mxu0
        %v2295 = vadd.f32 %v2158, %v2294
        %2296 = vdwg.mxu0
        %v2297 = vadd.f32 %v473, %v2251
        %v2298 = vadd.f32 %v474, %v2253
        %v2299 = vadd.f32 %v475, %v2257
        %v2300 = vadd.f32 %v476, %v2259
        %v2301 = vadd.f32 %v477, %v2263
        %v2302 = vadd.f32 %v478, %v2265
        %v2303 = vadd.f32 %v479, %v2269
        %v2304 = vadd.f32 %v480, %v2271
        %v2305 = vadd.f32 %v481, %v2275
        %v2306 = vadd.f32 %v482, %v2277
        %v2307 = vadd.f32 %v483, %v2281
        %v2308 = vadd.f32 %v484, %v2283
        %v2309 = vadd.f32 %v485, %v2287
        %v2310 = vadd.f32 %v486, %v2289
        %v2311 = vadd.f32 %v487, %v2293
        %v2312 = vadd.f32 %v488, %v2295
        %2313 = vst [vmem:[%s394] sm:$0xff] %v2297
        %2314 = vst [vmem:[%s394 + $0x8] sm:$0xff] %v2298
        %2315 = vst [vmem:[%s394 + $0x10] sm:$0xff] %v2299
        %2316 = vst [vmem:[%s394 + $0x18] sm:$0xff] %v2300
        %2317 = vst [vmem:[%s394 + $0x20] sm:$0xff] %v2301
        %2318 = vst [vmem:[%s394 + $0x28] sm:$0xff] %v2302
        %2319 = vst [vmem:[%s394 + $0x30] sm:$0xff] %v2303
        %2320 = vst [vmem:[%s394 + $0x38] sm:$0xff] %v2304
        %2321 = vst [vmem:[%s394 + $0x40] sm:$0xff] %v2305
        %2322 = vst [vmem:[%s394 + $0x48] sm:$0xff] %v2306
        %2323 = vst [vmem:[%s394 + $0x50] sm:$0xff] %v2307
        %2324 = vst [vmem:[%s394 + $0x58] sm:$0xff] %v2308
        %2325 = vst [vmem:[%s394 + $0x60] sm:$0xff] %v2309
        %2326 = vst [vmem:[%s394 + $0x68] sm:$0xff] %v2310
        %2327 = vst [vmem:[%s394 + $0x70] sm:$0xff] %v2311
        %2328 = vst [vmem:[%s394 + $0x78] sm:$0xff] %v2312
        %s2329 = sand.u32 %s274, 1
        %s2330 = scalar_lea.sflag [#allocation3], %s2329
        %s2331 = sand.u32 %s274, 1
        %s2332 = smul.addr %s2331, 128
        %s2333 = scalar_lea.vmem [#allocation2], %s2332
        // Predicated region
        $region65: #{tpu_custom_call.1} parent=63 // pred_check
          %p2334 = pneg %p284
        $region66: #{tpu_custom_call.1} parent=63 // pred_check_branch
          %2336 = sbr.rel (%p2334) target = $region68
        $region67: #{tpu_custom_call.1} parent=63 // pred_region
          %s2338 = ssub.s32 2048, 2048
          %2339 = vsyncadd %s2330, %s2338
          %s2340 = smul.addr %s25, 16
          %s2341 = smul.addr %s2340, 128
          %s2342 = scalar_lea.hbm %s11, %s2341
          %s2343 = sshll.u32 %s2333, 4
          %s2344 = int_to_ptr.vmem [resolvable:$true] %s2343
          %2349 = dma.vmem_to_hbm [thread:$0]  %s2344, 2048, %s2342, %s2330, 256, 256, 16
        $region68: #{tpu_custom_call.1} parent=63 // pred_fallthru
          _
      $region64: #{tpu_custom_call.1} parent=5 // pred_fallthru
        _
      %p2350 = scmp.le.s32.totalorder 2, %s20
      // Predicated region
      $region69: #{tpu_custom_call.1} parent=5 // pred_check
        %p2351 = pneg %p2350
      $region70: #{tpu_custom_call.1} parent=5 // pred_check_branch
        %2353 = sbr.rel (%p2351) target = $region72
      $region71: #{tpu_custom_call.1} parent=5 // pred_region
        %s2354 = ssub.s32 %s20, 2
        // Predicated region
        $region73: #{tpu_custom_call.1} parent=71 // pred_check
          %p2355 = pneg %p290
        $region74: #{tpu_custom_call.1} parent=71 // pred_check_branch
          %2357 = sbr.rel (%p2355) target = $region76
        $region75: #{tpu_custom_call.1} parent=71 // pred_region
          %s2358 = sand.u32 %s275, 1
          %s2359 = scalar_lea.sflag [#allocation3], %s2358
          %s2360 = sand.u32 %s275, 1
          %s2361 = smul.addr %s2360, 128
          %s2362 = scalar_lea.vmem [#allocation2], %s2361
          %2363 = dma.done %s2359, 2048
        $region76: #{tpu_custom_call.1} parent=71 // pred_fallthru
          _
      $region72: #{tpu_custom_call.1} parent=5 // pred_fallthru
        _
    $region6: #{tpu_custom_call.1} parent=1 // loop_footer
      %s24 = sadd.s32 1, %s20
    $region7: #{tpu_custom_call.1} parent=1 // loop_footer_branch
      %19 = sbr.rel target = $region3
    $region8: #{tpu_custom_call.1} parent=1 // loop_exit
      _
    %2364 = vsyncpa [#allocation3], 1
    %s2365 = scalar_lea.sflag [#allocation3], 1
    %2366 = vsyncpa %s2365, 1

</llo_original>
